<compile_context>
chip_gen: v5e
topology: v5e:2x2
jax: 0.10.0
libtpu: 0.0.40
codegen_flags: <defaults>
</compile_context>

<pallas_src>
import functools
import math

import jax
import jax.numpy as jnp
from jax.experimental import pallas as pl
from jax.experimental.pallas import tpu as pltpu


MOD_SHIFT = 0.0          # ExponentialModulation(shift=0.0)
MOD_FAST_DECAY = 0.3
MOD_SLOW_DECAY = 1.5
MOD_TARGET = 0.01

FILTER_TILE_L = 2048     # L tile for the implicit-filter MLP kernel
CONV_TILE_L = 256        # L tile (query / key block) for the causal-conv kernel


def _round_up(x, m):
    return ((x + m - 1) // m) * m


# ---------------------------------------------------------------------------
# Kernel 1: implicit filter MLP + exponential modulation, transposed layout.
#   blocks: zT:(E,TL), tT:(1,TL)  ->  h:(C,TL); weights resident (constant maps)
#   All intermediates are (features, TL): lane-dense in L.
# ---------------------------------------------------------------------------
def _filter_kernel(zt_ref, t_ref, w1_ref, b1_ref, w2_ref, b2_ref,
                   w3_ref, b3_ref, w4_ref, freq_ref, deltas_ref, h_ref):
    freq = freq_ref[...]                                              # (O, 1)
    h = jnp.sin(freq * (jnp.dot(w1_ref[...], zt_ref[...],
                                preferred_element_type=jnp.float32) + b1_ref[...]))
    h = jnp.sin(freq * (jnp.dot(w2_ref[...], h,
                                preferred_element_type=jnp.float32) + b2_ref[...]))
    h = jnp.sin(freq * (jnp.dot(w3_ref[...], h,
                                preferred_element_type=jnp.float32) + b3_ref[...]))
    h = jnp.dot(w4_ref[...], h, preferred_element_type=jnp.float32)   # (C, TL)
    decay = jnp.exp(-deltas_ref[...] * t_ref[...])                    # (C,1)*(1,TL)
    h_ref[...] = h * (decay + MOD_SHIFT)


# ---------------------------------------------------------------------------
# Kernel 2: fft_conv as a causal block-Toeplitz matmul + skip.
#   grid = (C, nQ); second axis is the block lag d = query_block - key_block.
#   Per grid point (c, d):
#     kpad_ref: (1, 1, T+Lp) bf16  channel-c filter, left-padded with T zeros
#     x_ref   : (1, nQB, T) bf16   channel-c stacked query blocks (row = qi*B+b)
#     d_ref   : (C,) f32 in SMEM   skip ("bias") coefficients
#     o_ref   : (1, nQB, T) f32    resident accumulator (constant in d)
#   Scratch:
#     tt_ref  : (T, T) bf16        Toeplitz tile  tt[j, q] = k[c, d*T + q - j]
#     z_ref   : (2*nQB, T) bf16    [zeros ; x]: causal shift = one dyn. slice
# ---------------------------------------------------------------------------
def _causal_conv_kernel(kpad_ref, x_ref, d_ref, o_ref, tt_ref, z_ref, *, T, nQ, B):
    c = pl.program_id(0)      # channel
    d = pl.program_id(1)      # block lag
    nQB = nQ * B

    # First visit for this channel: skip-connection init of the resident
    # output row and one-time staging of [zeros ; x] into the shift scratch.
    @pl.when(d == 0)
    def _init():
        z_ref[0:nQB, :] = jnp.zeros((nQB, T), jnp.bfloat16)
        z_ref[nQB:, :] = x_ref[0]
        o_ref[0] = x_ref[0].astype(jnp.float32) * d_ref[c]

    # Vectorized Toeplitz-tile build for this block lag:
    #   window kwin[m] = kpad[c, d*T + m]          (m in [0, 2T))
    #   broadcast to (T, 2T); strided roll rotates row j by j lanes, so
    #   rolled[j, q] = kwin[(q - j) mod 2T]; the [:, T:] slice never wraps:
    #   tt[j, q] = kwin[T + q - j] = k[c, d*T + q - j]  (0 for negative lags).
    base = pl.multiple_of(d * T, T)
    win = kpad_ref[0, :, pl.ds(base, 2 * T)].astype(jnp.float32)      # (1, 2T)
    big = jnp.broadcast_to(win, (T, 2 * T))
    rolled = pltpu.roll(big, 0, 1, stride=1, stride_axis=0)           # row j <- roll j
    tt_ref[...] = rolled[:, T:].astype(jnp.bfloat16)                  # (T, T) bf16

    # One stacked matmul per (c, d): LHS rows r = qi*B + b hold key block
    # (qi - d) of batch b (zeros for qi < d thanks to the zero-padded top half
    # of z_ref), so the full (nQB, T) @ (T, T) product adds the lag-d
    # contribution of every causal query block at once (MXU M dim = nQ*B).
    row0 = (nQ - d) * B
    lhs = z_ref[pl.ds(row0, nQB), :]                                  # (nQB, T) bf16
    o_ref[0] += jnp.dot(lhs, tt_ref[...], preferred_element_type=jnp.float32)


# ---------------------------------------------------------------------------
# Wrappers
# ---------------------------------------------------------------------------
def hyena_implicit_filter(params, seq_len, *, tile_l=FILTER_TILE_L):
    """HyenaFilter.filter(seq_len), emitted directly as k = (num_channels, L)."""
    L = seq_len
    zT = params["z"][:L].T                                            # (E, L)
    tT = params["time_emb"][:L].T                                     # (1, L)
    num_channels = params["w4"].shape[-1]

    TL = min(tile_l, _round_up(L, 128))
    nL = pl.cdiv(L, TL)
    Lp = nL * TL
    if Lp != L:
        zT = jnp.pad(zT, ((0, 0), (0, Lp - L)))
        tT = jnp.pad(tT, ((0, 0), (0, Lp - L)))

    # Transposed weights so the whole MLP runs (features, L) lane-dense.
    w_args = (params["w1"].T, params["b1"].T, params["w2"].T, params["b2"].T,
              params["w3"].T, params["b3"].T, params["w4"].T,
              params["freq"].T, params["deltas_abs"].T)
    E = zT.shape[0]
    in_specs = ([pl.BlockSpec((E, TL), lambda i: (0, i)),
                 pl.BlockSpec((1, TL), lambda i: (0, i))] +
                [pl.BlockSpec(a.shape, lambda i: (0, 0)) for a in w_args])

    h = pl.pallas_call(
        _filter_kernel,
        out_shape=jax.ShapeDtypeStruct((num_channels, Lp), jnp.float32),
        grid=(nL,),
        in_specs=in_specs,
        out_specs=pl.BlockSpec((num_channels, TL), lambda i: (0, i)),
        compiler_params=pltpu.CompilerParams(dimension_semantics=("parallel",)),
    )(zT, tT, *w_args)
    return h[:, :L]                                                   # (C, L)


def fft_conv_pallas(u, k, D, *, tile=CONV_TILE_L):
    """fft_conv(u:(B,C,L), k:(C,L), D:(C,)) -> (B,C,L) via the causal-conv kernel."""
    B, C, L = u.shape
    T = min(tile, _round_up(L, 128))          # pad tiny L up to a 128 multiple
    nQ = pl.cdiv(L, T)
    Lp = nQ * T
    nQB = nQ * B

    # bf16 operands for the MXU (f32 accumulation); halves HBM->VMEM DMA.
    x = u.astype(jnp.bfloat16)
    kf = k.astype(jnp.bfloat16)
    if Lp != L:
        x = jnp.pad(x, ((0, 0), (0, 0), (0, Lp - L)))
        kf = jnp.pad(kf, ((0, 0), (0, Lp - L)))

    # Stack query blocks into the matmul M dimension: xs[c, qi*B + b, :] is
    # x[b, c, qi*T:(qi+1)*T].  L stays minor -> lane-dense loads/stores.
    xs = x.reshape(B, C, nQ, T).transpose(1, 2, 0, 3).reshape(C, nQB, T)
    # Left-pad the filter with T zeros so negative lags read zeros (causality)
    # and every block-lag window is a clean 2T slice.
    kpad = jnp.concatenate([jnp.zeros((C, T), jnp.bfloat16), kf], axis=-1)
    kpad = kpad.reshape(C, 1, T + Lp)
    Dv = D.astype(jnp.float32)

    kernel = functools.partial(_causal_conv_kernel, T=T, nQ=nQ, B=B)
    ys = pl.pallas_call(
        kernel,
        out_shape=jax.ShapeDtypeStruct((C, nQB, T), jnp.float32),
        grid=(C, nQ),
        in_specs=[
            pl.BlockSpec((1, 1, T + Lp), lambda c, d: (c, 0, 0)),     # filter / chan
            pl.BlockSpec((1, nQB, T), lambda c, d: (c, 0, 0)),        # x, 1 DMA / chan
            pl.BlockSpec(memory_space=pltpu.MemorySpace.SMEM),        # D, scalar reads
        ],
        out_specs=pl.BlockSpec((1, nQB, T), lambda c, d: (c, 0, 0)),  # resident acc
        scratch_shapes=[
            pltpu.VMEM((T, T), jnp.bfloat16),                         # Toeplitz tile
            pltpu.VMEM((2 * nQB, T), jnp.bfloat16),                   # [zeros ; x]
        ],
        compiler_params=pltpu.CompilerParams(
            dimension_semantics=("parallel", "arbitrary")),
    )(kpad, xs, Dv)

    y = ys.reshape(C, nQ, B, T).transpose(2, 0, 1, 3).reshape(B, C, Lp)
    return y[..., :L].astype(u.dtype)                                 # (B, C, L)


def hyena_filter_forward(params, x, seq_len, k=None, bias=None):
    """HyenaFilter.forward(x, seq_len, k=None, bias=None)."""
    if bias is None:
        bias = params["bias"]                 # the module's self.bias parameter
    if k is None:
        k = hyena_implicit_filter(params, seq_len)                    # (C, L)
    elif isinstance(k, tuple):
        k = k[0]
    return fft_conv_pallas(x, k, bias)


# ---------------------------------------------------------------------------
# Deterministic parameter / buffer construction (mirrors __init__ shapes)
# ---------------------------------------------------------------------------
def init_hyena_filter_params(key, num_channels, emb_dim=3, order=16,
                             seq_len=1024, freq=1.0):
    assert emb_dim % 2 == 1 and emb_dim >= 3
    kb, k1, k2, k3, k4 = jax.random.split(key, 5)

    def linear(kk, fan_in, fan_out, use_bias=True):
        kw, kbb = jax.random.split(kk)
        bound = 1.0 / math.sqrt(fan_in)
        w = jax.random.uniform(kw, (fan_in, fan_out), jnp.float32, -bound, bound)
        b = (jax.random.uniform(kbb, (1, fan_out), jnp.float32, -bound, bound)
             if use_bias else None)
        return w, b

    w1, b1 = linear(k1, emb_dim, order)
    w2, b2 = linear(k2, order, order)
    w3, b3 = linear(k3, order, order)
    w4, _ = linear(k4, order, num_channels, use_bias=False)

    # PositionalEmbedding
    time_emb = jnp.linspace(0.0, 1.0, seq_len)[:, None]               # (L, 1)
    bands = (emb_dim - 1) // 2
    t_resc = jnp.linspace(0.0, seq_len - 1, seq_len)[:, None]
    w_ang = 2.0 * math.pi * t_resc / seq_len
    f = jnp.linspace(1e-4, bands - 1, bands)[None, :]
    zc = jnp.exp(-1j * f * w_ang)
    z = jnp.concatenate([time_emb, jnp.real(zc), jnp.imag(zc)], axis=-1)

    # ExponentialModulation deltas
    max_decay = math.log(MOD_TARGET) / MOD_FAST_DECAY
    min_decay = math.log(MOD_TARGET) / MOD_SLOW_DECAY
    deltas = jnp.linspace(min_decay, max_decay, num_channels)[None, :]

    return dict(
        w1=w1, b1=b1, w2=w2, b2=b2, w3=w3, b3=b3, w4=w4,
        freq=freq * jnp.ones((1, order), jnp.float32),
        deltas_abs=jnp.abs(deltas).astype(jnp.float32),
        z=z.astype(jnp.float32),
        time_emb=time_emb.astype(jnp.float32),
        bias=jax.random.normal(kb, (num_channels,), jnp.float32),
    )


# ---------------------------------------------------------------------------
# Pure-JAX references (mirror the PyTorch code, incl. the FFT path)
# ---------------------------------------------------------------------------
def reference_filter(params, seq_len):
    z = params["z"][:seq_len]
    t = params["time_emb"][:seq_len]
    h = jnp.sin(params["freq"] * (z @ params["w1"] + params["b1"]))
    h = jnp.sin(params["freq"] * (h @ params["w2"] + params["b2"]))
    h = jnp.sin(params["freq"] * (h @ params["w3"] + params["b3"]))
    h = h @ params["w4"]
    return h * (jnp.exp(-t * params["deltas_abs"]) + MOD_SHIFT)       # (L, C)


def reference_fft_conv(u, k, D):
    L = u.shape[-1]
    fft_size = 2 * L
    k_f = jnp.fft.rfft(k, n=fft_size) / fft_size
    u_f = jnp.fft.rfft(u, n=fft_size)
    y = jnp.fft.irfft(u_f * k_f, n=fft_size, norm="forward")[..., :L]
    return (y + u * D[:, None]).astype(u.dtype)


def reference_forward(params, x, seq_len):
    return reference_fft_conv(x, reference_filter(params, seq_len).T,
                              params["bias"])


def reference_forward_bf16_inputs(x, k, D):
    """FFT conv fed the same bf16-quantized x / k the kernel's MXU sees."""
    xq = x.astype(jnp.bfloat16).astype(jnp.float32)
    kq = k.astype(jnp.bfloat16).astype(jnp.float32)
    L = x.shape[-1]
    fft_size = 2 * L
    k_f = jnp.fft.rfft(kq, n=fft_size) / fft_size
    u_f = jnp.fft.rfft(xq, n=fft_size)
    y = jnp.fft.irfft(u_f * k_f, n=fft_size, norm="forward")[..., :L]
    return y + xq * D[:, None]


if __name__ == "__main__":
    B, C, L = 2, 8, 512         # batch, num_channels (width), seq_len
    EMB_DIM, ORDER = 3, 16

    key = jax.random.PRNGKey(0)
    kp, kx = jax.random.split(key)
    params = init_hyena_filter_params(kp, num_channels=C, emb_dim=EMB_DIM,
                                      order=ORDER, seq_len=L, freq=1.0)
    x = jax.random.normal(kx, (B, C, L), jnp.float32)

    # Full forward through both Pallas kernels.
    y = jax.block_until_ready(hyena_filter_forward(params, x, seq_len=L))
    assert y.shape == (B, C, L), y.shape

    # Check 1: implicit-filter kernel (pure f32) vs pure-JAX reference (tight).
    h = jax.block_until_ready(hyena_implicit_filter(params, L))       # (C, L)
    h_ref = reference_filter(params, L).T
    if not jnp.allclose(h, h_ref, rtol=2e-3, atol=2e-3):
        raise AssertionError(
            f"filter mismatch, max abs err = "
            f"{float(jnp.max(jnp.abs(h - h_ref)))}")

    # Check 2: conv kernel vs an FFT reference fed the same bf16-quantized
    # x / k the MXU consumes (isolates kernel error from bf16 input rounding).
    y_q = reference_forward_bf16_inputs(x, h, params["bias"])
    if not jnp.allclose(y, y_q, rtol=2e-3, atol=2e-3):
        raise AssertionError(
            f"conv mismatch vs bf16-input FFT reference, max abs err = "
            f"{float(jnp.max(jnp.abs(y - y_q)))}")

    # Check 3: end-to-end vs the exact f32 FFT reference; tolerance reflects
    # the intentional bf16 MXU operands.
    y_ref = reference_forward(params, x, L)
    if not jnp.allclose(y, y_ref, rtol=5e-2, atol=5e-2):
        raise AssertionError(
            f"forward mismatch vs f32 FFT reference, max abs err = "
            f"{float(jnp.max(jnp.abs(y - y_ref)))}")

    print("KERNEL_OK")
</pallas_src>

<mosaic_0001>
module attributes {stable_mosaic.version = 11 : i64} {
  func.func @_filter_kernel(%arg0: i32, %arg1: memref<3x512xf32, #tpu.memory_space<vmem>>, %arg2: memref<1x512xf32, #tpu.memory_space<vmem>>, %arg3: memref<16x3xf32, #tpu.memory_space<vmem>>, %arg4: memref<16x1xf32, #tpu.memory_space<vmem>>, %arg5: memref<16x16xf32, #tpu.memory_space<vmem>>, %arg6: memref<16x1xf32, #tpu.memory_space<vmem>>, %arg7: memref<16x16xf32, #tpu.memory_space<vmem>>, %arg8: memref<16x1xf32, #tpu.memory_space<vmem>>, %arg9: memref<8x16xf32, #tpu.memory_space<vmem>>, %arg10: memref<16x1xf32, #tpu.memory_space<vmem>>, %arg11: memref<8x1xf32, #tpu.memory_space<vmem>>, %arg12: memref<8x512xf32, #tpu.memory_space<vmem>>) attributes {dimension_semantics = [#tpu.dimension_semantics<parallel>], iteration_bounds = array<i64: 1>, scalar_prefetch = 0 : i64, scratch_operands = 0 : i64, tpu.core_type = #tpu.core_type<tc>, window_params = [{transform_indices = @transform_0, window_bounds = array<i64: 3, 512>}, {transform_indices = @transform_1, window_bounds = array<i64: 1, 512>}, {pipeline_mode = #tpu.pipeline_mode<synchronous>, transform_indices = @transform_2, window_bounds = array<i64: 16, 3>}, {pipeline_mode = #tpu.pipeline_mode<synchronous>, transform_indices = @transform_3, window_bounds = array<i64: 16, 1>}, {pipeline_mode = #tpu.pipeline_mode<synchronous>, transform_indices = @transform_4, window_bounds = array<i64: 16, 16>}, {pipeline_mode = #tpu.pipeline_mode<synchronous>, transform_indices = @transform_5, window_bounds = array<i64: 16, 1>}, {pipeline_mode = #tpu.pipeline_mode<synchronous>, transform_indices = @transform_6, window_bounds = array<i64: 16, 16>}, {pipeline_mode = #tpu.pipeline_mode<synchronous>, transform_indices = @transform_7, window_bounds = array<i64: 16, 1>}, {pipeline_mode = #tpu.pipeline_mode<synchronous>, transform_indices = @transform_8, window_bounds = array<i64: 8, 16>}, {pipeline_mode = #tpu.pipeline_mode<synchronous>, transform_indices = @transform_9, window_bounds = array<i64: 16, 1>}, {pipeline_mode = #tpu.pipeline_mode<synchronous>, transform_indices = @transform_10, window_bounds = array<i64: 8, 1>}, {transform_indices = @transform_11, window_bounds = array<i64: 8, 512>}]} {
    %c0 = arith.constant 0 : index
    %c0_0 = arith.constant 0 : index
    %0 = vector.load %arg10[%c0, %c0_0] : memref<16x1xf32, #tpu.memory_space<vmem>>, vector<16x1xf32>
    %c0_1 = arith.constant 0 : index
    %c0_2 = arith.constant 0 : index
    %1 = vector.load %arg3[%c0_1, %c0_2] : memref<16x3xf32, #tpu.memory_space<vmem>>, vector<16x3xf32>
    %c0_3 = arith.constant 0 : index
    %c0_4 = arith.constant 0 : index
    %2 = vector.load %arg1[%c0_3, %c0_4] : memref<3x512xf32, #tpu.memory_space<vmem>>, vector<3x512xf32>
    %cst = arith.constant dense<0.000000e+00> : vector<16x512xf32>
    %3 = tpu.matmul %1, %2, %cst {dimension_numbers = #tpu.dot_dimension_numbers<[1], [0], [0], [1], [0, 0, 1, 1], [], []>} : vector<16x3xf32>, vector<3x512xf32>, vector<16x512xf32> -> vector<16x512xf32>
    %c0_5 = arith.constant 0 : index
    %c0_6 = arith.constant 0 : index
    %4 = vector.load %arg4[%c0_5, %c0_6] : memref<16x1xf32, #tpu.memory_space<vmem>>, vector<16x1xf32>
    %5 = vector.broadcast %4 : vector<16x1xf32> to vector<16x512xf32>
    %6 = arith.addf %3, %5 : vector<16x512xf32>
    %7 = vector.broadcast %0 : vector<16x1xf32> to vector<16x512xf32>
    %8 = arith.mulf %7, %6 : vector<16x512xf32>
    %9 = math.sin %8 : vector<16x512xf32>
    %c0_7 = arith.constant 0 : index
    %c0_8 = arith.constant 0 : index
    %10 = vector.load %arg5[%c0_7, %c0_8] : memref<16x16xf32, #tpu.memory_space<vmem>>, vector<16x16xf32>
    %cst_9 = arith.constant dense<0.000000e+00> : vector<16x512xf32>
    %11 = tpu.matmul %10, %9, %cst_9 {dimension_numbers = #tpu.dot_dimension_numbers<[1], [0], [0], [1], [0, 0, 1, 1], [], []>} : vector<16x16xf32>, vector<16x512xf32>, vector<16x512xf32> -> vector<16x512xf32>
    %c0_10 = arith.constant 0 : index
    %c0_11 = arith.constant 0 : index
    %12 = vector.load %arg6[%c0_10, %c0_11] : memref<16x1xf32, #tpu.memory_space<vmem>>, vector<16x1xf32>
    %13 = vector.broadcast %12 : vector<16x1xf32> to vector<16x512xf32>
    %14 = arith.addf %11, %13 : vector<16x512xf32>
    %15 = vector.broadcast %0 : vector<16x1xf32> to vector<16x512xf32>
    %16 = arith.mulf %15, %14 : vector<16x512xf32>
    %17 = math.sin %16 : vector<16x512xf32>
    %c0_12 = arith.constant 0 : index
    %c0_13 = arith.constant 0 : index
    %18 = vector.load %arg7[%c0_12, %c0_13] : memref<16x16xf32, #tpu.memory_space<vmem>>, vector<16x16xf32>
    %cst_14 = arith.constant dense<0.000000e+00> : vector<16x512xf32>
    %19 = tpu.matmul %18, %17, %cst_14 {dimension_numbers = #tpu.dot_dimension_numbers<[1], [0], [0], [1], [0, 0, 1, 1], [], []>} : vector<16x16xf32>, vector<16x512xf32>, vector<16x512xf32> -> vector<16x512xf32>
    %c0_15 = arith.constant 0 : index
    %c0_16 = arith.constant 0 : index
    %20 = vector.load %arg8[%c0_15, %c0_16] : memref<16x1xf32, #tpu.memory_space<vmem>>, vector<16x1xf32>
    %21 = vector.broadcast %20 : vector<16x1xf32> to vector<16x512xf32>
    %22 = arith.addf %19, %21 : vector<16x512xf32>
    %23 = vector.broadcast %0 : vector<16x1xf32> to vector<16x512xf32>
    %24 = arith.mulf %23, %22 : vector<16x512xf32>
    %25 = math.sin %24 : vector<16x512xf32>
    %c0_17 = arith.constant 0 : index
    %c0_18 = arith.constant 0 : index
    %26 = vector.load %arg9[%c0_17, %c0_18] : memref<8x16xf32, #tpu.memory_space<vmem>>, vector<8x16xf32>
    %cst_19 = arith.constant dense<0.000000e+00> : vector<8x512xf32>
    %27 = tpu.matmul %26, %25, %cst_19 {dimension_numbers = #tpu.dot_dimension_numbers<[1], [0], [0], [1], [0, 0, 1, 1], [], []>} : vector<8x16xf32>, vector<16x512xf32>, vector<8x512xf32> -> vector<8x512xf32>
    %c0_20 = arith.constant 0 : index
    %c0_21 = arith.constant 0 : index
    %28 = vector.load %arg11[%c0_20, %c0_21] : memref<8x1xf32, #tpu.memory_space<vmem>>, vector<8x1xf32>
    %cst_22 = arith.constant 0.000000e+00 : f32
    %29 = vector.broadcast %cst_22 : f32 to vector<8x1xf32>
    %30 = arith.subf %29, %28 : vector<8x1xf32>
    %c0_23 = arith.constant 0 : index
    %c0_24 = arith.constant 0 : index
    %31 = vector.load %arg2[%c0_23, %c0_24] : memref<1x512xf32, #tpu.memory_space<vmem>>, vector<1x512xf32>
    %32 = vector.broadcast %30 : vector<8x1xf32> to vector<8x512xf32>
    %33 = vector.broadcast %31 : vector<1x512xf32> to vector<8x512xf32>
    %34 = arith.mulf %32, %33 : vector<8x512xf32>
    %35 = math.exp %34 : vector<8x512xf32>
    %cst_25 = arith.constant 0.000000e+00 : f32
    %36 = vector.broadcast %cst_25 : f32 to vector<8x512xf32>
    %37 = arith.addf %35, %36 : vector<8x512xf32>
    %38 = arith.mulf %27, %37 : vector<8x512xf32>
    %c0_26 = arith.constant 0 : index
    %c0_27 = arith.constant 0 : index
    %39 = vector.load %arg12[%c0_26, %c0_27] : memref<8x512xf32, #tpu.memory_space<vmem>>, vector<8x512xf32>
    tpu.vector_store %arg12[%c0_26, %c0_27], %38 {strides = array<i32>} : memref<8x512xf32, #tpu.memory_space<vmem>>, vector<8x512xf32>,
    return
  }
  func.func @transform_0(%arg0: i32) -> (i32, i32) {
    %c0_i32 = arith.constant 0 : i32
    %c0_i32_0 = arith.constant 0 : i32
    return %c0_i32, %arg0 : i32, i32
  }
  func.func @transform_1(%arg0: i32) -> (i32, i32) {
    %c0_i32 = arith.constant 0 : i32
    %c0_i32_0 = arith.constant 0 : i32
    return %c0_i32, %arg0 : i32, i32
  }
  func.func @transform_2(%arg0: i32) -> (i32, i32) {
    %c0_i32 = arith.constant 0 : i32
    %c0_i32_0 = arith.constant 0 : i32
    %c0_i32_1 = arith.constant 0 : i32
    return %c0_i32, %c0_i32_0 : i32, i32
  }
  func.func @transform_3(%arg0: i32) -> (i32, i32) {
    %c0_i32 = arith.constant 0 : i32
    %c0_i32_0 = arith.constant 0 : i32
    %c0_i32_1 = arith.constant 0 : i32
    return %c0_i32, %c0_i32_0 : i32, i32
  }
  func.func @transform_4(%arg0: i32) -> (i32, i32) {
    %c0_i32 = arith.constant 0 : i32
    %c0_i32_0 = arith.constant 0 : i32
    %c0_i32_1 = arith.constant 0 : i32
    return %c0_i32, %c0_i32_0 : i32, i32
  }
  func.func @transform_5(%arg0: i32) -> (i32, i32) {
    %c0_i32 = arith.constant 0 : i32
    %c0_i32_0 = arith.constant 0 : i32
    %c0_i32_1 = arith.constant 0 : i32
    return %c0_i32, %c0_i32_0 : i32, i32
  }
  func.func @transform_6(%arg0: i32) -> (i32, i32) {
    %c0_i32 = arith.constant 0 : i32
    %c0_i32_0 = arith.constant 0 : i32
    %c0_i32_1 = arith.constant 0 : i32
    return %c0_i32, %c0_i32_0 : i32, i32
  }
  func.func @transform_7(%arg0: i32) -> (i32, i32) {
    %c0_i32 = arith.constant 0 : i32
    %c0_i32_0 = arith.constant 0 : i32
    %c0_i32_1 = arith.constant 0 : i32
    return %c0_i32, %c0_i32_0 : i32, i32
  }
  func.func @transform_8(%arg0: i32) -> (i32, i32) {
    %c0_i32 = arith.constant 0 : i32
    %c0_i32_0 = arith.constant 0 : i32
    %c0_i32_1 = arith.constant 0 : i32
    return %c0_i32, %c0_i32_0 : i32, i32
  }
  func.func @transform_9(%arg0: i32) -> (i32, i32) {
    %c0_i32 = arith.constant 0 : i32
    %c0_i32_0 = arith.constant 0 : i32
    %c0_i32_1 = arith.constant 0 : i32
    return %c0_i32, %c0_i32_0 : i32, i32
  }
  func.func @transform_10(%arg0: i32) -> (i32, i32) {
    %c0_i32 = arith.constant 0 : i32
    %c0_i32_0 = arith.constant 0 : i32
    %c0_i32_1 = arith.constant 0 : i32
    return %c0_i32, %c0_i32_0 : i32, i32
  }
  func.func @transform_11(%arg0: i32) -> (i32, i32) {
    %c0_i32 = arith.constant 0 : i32
    %c0_i32_0 = arith.constant 0 : i32
    return %c0_i32, %arg0 : i32, i32
  }
}

</mosaic_0001>

<llo_original>
// kernel: tpu_custom_call.1
$region0: #{tpu_custom_call.1}
  #allocation0 [shape = 'u32[]', space=smem, size = 0x4, offset = 0x4, fixed_abs, tag = 'smem constant byte address 0x4 - core index']
  #allocation1 [shape = 'u32[72,128]{1,0:T(1,128)}', space=vmem, size = 0x9000, scoped, tag = 'internal scratch']
  %s0 = inlined_call_operand.vmem [shape: f32[3,512], index: 0, kind: input, shape index: {}]
  %s1 = inlined_call_operand.vmem [shape: f32[1,512], index: 1, kind: input, shape index: {}]
  %s2 = inlined_call_operand.vmem [shape: f32[16,3], index: 2, kind: input, shape index: {}]
  %s3 = inlined_call_operand.vmem [shape: f32[16,1], index: 3, kind: input, shape index: {}]
  %s4 = inlined_call_operand.vmem [shape: f32[16,16], index: 4, kind: input, shape index: {}]
  %s5 = inlined_call_operand.vmem [shape: f32[16,1], index: 5, kind: input, shape index: {}]
  %s6 = inlined_call_operand.vmem [shape: f32[16,16], index: 6, kind: input, shape index: {}]
  %s7 = inlined_call_operand.vmem [shape: f32[16,1], index: 7, kind: input, shape index: {}]
  %s8 = inlined_call_operand.vmem [shape: f32[8,16], index: 8, kind: input, shape index: {}]
  %s9 = inlined_call_operand.vmem [shape: f32[16,1], index: 9, kind: input, shape index: {}]
  %s10 = inlined_call_operand.vmem [shape: f32[8,1], index: 10, kind: input, shape index: {}]
  %s11 = inlined_call_operand.hbm [shape: f32[8,512], index: 11, kind: output, shape index: {}]
  %s12 = sld [smem:[#allocation0]]
  $region54: #{tpu_custom_call.1} parent=0
    _
  %s14 = ssub.s32 1, %s12
  %s15 = scalar_select 0, %s14, %s12
  $region1: #{tpu_custom_call.1} parent=0
    #allocation2 [shape = 'u8[16384]{0}', space=vmem, size = 0x4000, scoped, tag = 'output window, operand 0, single buffered']
    #allocation3 [shape = 's32[1]{0}', space=sflag, size = 0x4, scoped, tag = 'scoped memory for tpu_custom_call.1']
    %16 = vsyncpa [#allocation3], 0
    // Predicated region
    $region2: #{tpu_custom_call.1} parent=1 // pred_check
      _
    $region3: #{tpu_custom_call.1} parent=1 // pred_check_branch
      %18 = sbr.rel (0) target = $region5
    $region4: #{tpu_custom_call.1} parent=1 // pred_region
      _
    $region5: #{tpu_custom_call.1} parent=1 // pred_fallthru
      _
    // Predicated region
    $region6: #{tpu_custom_call.1} parent=1 // pred_check
      _
    $region7: #{tpu_custom_call.1} parent=1 // pred_check_branch
      %20 = sbr.rel (0) target = $region9
    $region8: #{tpu_custom_call.1} parent=1 // pred_region
      _
    $region9: #{tpu_custom_call.1} parent=1 // pred_fallthru
      _
    // Predicated region
    $region10: #{tpu_custom_call.1} parent=1 // pred_check
      _
    $region11: #{tpu_custom_call.1} parent=1 // pred_check_branch
      %22 = sbr.rel (0) target = $region13
    $region12: #{tpu_custom_call.1} parent=1 // pred_region
      _
    $region13: #{tpu_custom_call.1} parent=1 // pred_fallthru
      _
    // Predicated region
    $region14: #{tpu_custom_call.1} parent=1 // pred_check
      _
    $region15: #{tpu_custom_call.1} parent=1 // pred_check_branch
      %24 = sbr.rel (0) target = $region17
    $region16: #{tpu_custom_call.1} parent=1 // pred_region
      _
    $region17: #{tpu_custom_call.1} parent=1 // pred_fallthru
      _
    // Predicated region
    $region18: #{tpu_custom_call.1} parent=1 // pred_check
      _
    $region19: #{tpu_custom_call.1} parent=1 // pred_check_branch
      %26 = sbr.rel (0) target = $region21
    $region20: #{tpu_custom_call.1} parent=1 // pred_region
      _
    $region21: #{tpu_custom_call.1} parent=1 // pred_fallthru
      _
    // Predicated region
    $region22: #{tpu_custom_call.1} parent=1 // pred_check
      _
    $region23: #{tpu_custom_call.1} parent=1 // pred_check_branch
      %28 = sbr.rel (0) target = $region25
    $region24: #{tpu_custom_call.1} parent=1 // pred_region
      _
    $region25: #{tpu_custom_call.1} parent=1 // pred_fallthru
      _
    // Predicated region
    $region26: #{tpu_custom_call.1} parent=1 // pred_check
      _
    $region27: #{tpu_custom_call.1} parent=1 // pred_check_branch
      %30 = sbr.rel (0) target = $region29
    $region28: #{tpu_custom_call.1} parent=1 // pred_region
      _
    $region29: #{tpu_custom_call.1} parent=1 // pred_fallthru
      _
    // Predicated region
    $region30: #{tpu_custom_call.1} parent=1 // pred_check
      _
    $region31: #{tpu_custom_call.1} parent=1 // pred_check_branch
      %32 = sbr.rel (0) target = $region33
    $region32: #{tpu_custom_call.1} parent=1 // pred_region
      _
    $region33: #{tpu_custom_call.1} parent=1 // pred_fallthru
      _
    // Predicated region
    $region34: #{tpu_custom_call.1} parent=1 // pred_check
      _
    $region35: #{tpu_custom_call.1} parent=1 // pred_check_branch
      %34 = sbr.rel (0) target = $region37
    $region36: #{tpu_custom_call.1} parent=1 // pred_region
      _
    $region37: #{tpu_custom_call.1} parent=1 // pred_fallthru
      _
    // Predicated region
    $region38: #{tpu_custom_call.1} parent=1 // pred_check
      _
    $region39: #{tpu_custom_call.1} parent=1 // pred_check_branch
      %36 = sbr.rel (0) target = $region41
    $region40: #{tpu_custom_call.1} parent=1 // pred_region
      _
    $region41: #{tpu_custom_call.1} parent=1 // pred_fallthru
      _
    // Predicated region
    $region42: #{tpu_custom_call.1} parent=1 // pred_check
      _
    $region43: #{tpu_custom_call.1} parent=1 // pred_check_branch
      %38 = sbr.rel (0) target = $region45
    $region44: #{tpu_custom_call.1} parent=1 // pred_region
      _
    $region45: #{tpu_custom_call.1} parent=1 // pred_fallthru
      _
    %v39 = vld [vmem:[%s9] sm:$0xff]
    %v40 = vld [vmem:[%s9 + $0x8] sm:$0xff]
    %v41 = vld [vmem:[%s2] sm:$0xff]
    %v42 = vld [vmem:[%s2 + $0x8] sm:$0xff]
    %v43 = vld [vmem:[%s0] sm:$0x77]
    %v44 = vld [vmem:[%s0 + $0x8] sm:$0x77]
    %v45 = vld [vmem:[%s3] sm:$0xff]
    %v46 = vld [vmem:[%s3 + $0x8] sm:$0xff]
    %48 = vset.pattern.permute.xlu0 0
    %49 = vperm.xlu0 %48, %v45
    %v50 = vpop.permute.xlu0 %49
    %53 = vset.pattern.permute.xlu0 0
    %54 = vperm.xlu0 %53, %v46
    %v55 = vpop.permute.xlu0 %54
    %59 = vst [vmem:[#allocation1] ss:$2 sm:$0xff] %v43
    %s60 = scalar_lea.vmem [#allocation1], 16
    %61 = vst [vmem:[%s60] ss:$2 sm:$0xff] %v44
    %v62 = vld.sshfl [vmem:[#allocation1] sm:$0xff pattern:$0x75316420]
    %v63 = vld.sshfl [vmem:[#allocation1 + $0x8] sm:$0xff pattern:$0x75316420]
    %v64 = vld.sshfl [vmem:[#allocation1 + $0x10] sm:$0xff pattern:$0x75316420]
    %v65 = vld.sshfl [vmem:[#allocation1 + $0x18] sm:$0xff pattern:$0x75316420]
    %vm66 = vcmask 23552
    %v68 = vsel %vm66, %v41, 0
    %v71 = vsel %vm66, %v42, 0
    %vm73 = vcmask 1042432
    %v74 = vsel %vm73, %v62, 0
    %v76 = vsel %vm73, %v63, 0
    %v78 = vsel %vm73, %v64, 0
    %v80 = vsel %vm73, %v65, 0
    %82 = vmatpush.msra.mxu0 0.0
    %83 = vmatpush.msra.mxu0 0.0
    %84 = vmatpush.msra.mxu0 0.0
    %85 = vmatpush.msra.mxu0 0.0
    %86 = vmatpush.msra.mxu0 0.0
    %87 = vmatpush.msra.mxu0 0.0
    %88 = vmatpush.msra.mxu0 0.0
    %89 = vmatpush.msra.mxu0 0.0
    %90 = vmatpush.msra.mxu0 0.0
    %91 = vmatpush.msra.mxu0 0.0
    %92 = vmatpush.msra.mxu0 0.0
    %93 = vmatpush.msra.mxu0 0.0
    %94 = vmatpush.msra.mxu0 0.0
    %95 = vmatpush.msra.mxu0 0.0
    %96 = vmatpush.msra.mxu0 0.0
    %97 = vmatpush.msra.mxu0 %v74
    %98 = vmatmul.f32.gmra.mxu0 %v68
    %v99 = vpop.f32.mrf.mxu0
    %v100 = vadd.f32 %v50, %v99
    %101 = vmatmul.f32.gmra.mxu0 %v71
    %v102 = vpop.f32.mrf.mxu0
    %v103 = vadd.f32 %v55, %v102
    %104 = vdwg.mxu0
    %105 = vmatpush.msra.mxu0 0.0
    %106 = vmatpush.msra.mxu0 0.0
    %107 = vmatpush.msra.mxu0 0.0
    %108 = vmatpush.msra.mxu0 0.0
    %109 = vmatpush.msra.mxu0 0.0
    %110 = vmatpush.msra.mxu0 0.0
    %111 = vmatpush.msra.mxu0 0.0
    %112 = vmatpush.msra.mxu0 0.0
    %113 = vmatpush.msra.mxu0 0.0
    %114 = vmatpush.msra.mxu0 0.0
    %115 = vmatpush.msra.mxu0 0.0
    %116 = vmatpush.msra.mxu0 0.0
    %117 = vmatpush.msra.mxu0 0.0
    %118 = vmatpush.msra.mxu0 0.0
    %119 = vmatpush.msra.mxu0 0.0
    %120 = vmatpush.msra.mxu0 %v76
    %121 = vmatmul.f32.gmra.mxu0 %v68
    %v122 = vpop.f32.mrf.mxu0
    %v123 = vadd.f32 %v50, %v122
    %124 = vmatmul.f32.gmra.mxu0 %v71
    %v125 = vpop.f32.mrf.mxu0
    %v126 = vadd.f32 %v55, %v125
    %127 = vdwg.mxu0
    %128 = vmatpush.msra.mxu0 0.0
    %129 = vmatpush.msra.mxu0 0.0
    %130 = vmatpush.msra.mxu0 0.0
    %131 = vmatpush.msra.mxu0 0.0
    %132 = vmatpush.msra.mxu0 0.0
    %133 = vmatpush.msra.mxu0 0.0
    %134 = vmatpush.msra.mxu0 0.0
    %135 = vmatpush.msra.mxu0 0.0
    %136 = vmatpush.msra.mxu0 0.0
    %137 = vmatpush.msra.mxu0 0.0
    %138 = vmatpush.msra.mxu0 0.0
    %139 = vmatpush.msra.mxu0 0.0
    %140 = vmatpush.msra.mxu0 0.0
    %141 = vmatpush.msra.mxu0 0.0
    %142 = vmatpush.msra.mxu0 0.0
    %143 = vmatpush.msra.mxu0 %v78
    %144 = vmatmul.f32.gmra.mxu0 %v68
    %v145 = vpop.f32.mrf.mxu0
    %v146 = vadd.f32 %v50, %v145
    %147 = vmatmul.f32.gmra.mxu0 %v71
    %v148 = vpop.f32.mrf.mxu0
    %v149 = vadd.f32 %v55, %v148
    %150 = vdwg.mxu0
    %151 = vmatpush.msra.mxu0 0.0
    %152 = vmatpush.msra.mxu0 0.0
    %153 = vmatpush.msra.mxu0 0.0
    %154 = vmatpush.msra.mxu0 0.0
    %155 = vmatpush.msra.mxu0 0.0
    %156 = vmatpush.msra.mxu0 0.0
    %157 = vmatpush.msra.mxu0 0.0
    %158 = vmatpush.msra.mxu0 0.0
    %159 = vmatpush.msra.mxu0 0.0
    %160 = vmatpush.msra.mxu0 0.0
    %161 = vmatpush.msra.mxu0 0.0
    %162 = vmatpush.msra.mxu0 0.0
    %163 = vmatpush.msra.mxu0 0.0
    %164 = vmatpush.msra.mxu0 0.0
    %165 = vmatpush.msra.mxu0 0.0
    %166 = vmatpush.msra.mxu0 %v80
    %167 = vmatmul.f32.gmra.mxu0 %v68
    %v168 = vpop.f32.mrf.mxu0
    %v169 = vadd.f32 %v50, %v168
    %170 = vmatmul.f32.gmra.mxu0 %v71
    %v171 = vpop.f32.mrf.mxu0
    %v172 = vadd.f32 %v55, %v171
    %173 = vdwg.mxu0
    %175 = vset.pattern.permute.xlu0 0
    %176 = vperm.xlu0 %175, %v39
    %v177 = vpop.permute.xlu0 %176
    %180 = vset.pattern.permute.xlu0 0
    %181 = vperm.xlu0 %180, %v40
    %v182 = vpop.permute.xlu0 %181
    %v184 = vmul.f32 %v177, %v100
    %v185 = vmul.f32 %v177, %v123
    %v186 = vmul.f32 %v177, %v146
    %v187 = vmul.f32 %v177, %v169
    %v188 = vmul.f32 %v182, %v103
    %v189 = vmul.f32 %v182, %v126
    %v190 = vmul.f32 %v182, %v149
    %v191 = vmul.f32 %v182, %v172
    %v192 = vand.u32 2147483647, %v184
    %vm193 = vcmp.le.f32.partialorder %v192, 0.7853982
    %vm194 = vcmp.lt.s32.totalorder %v184, 0
    %v195 = vand.u32 %v184, 2139095040
    %v196 = vshrl.u32 %v195, 23
    %v197 = vsub.s32 %v196, 127
    %v198 = vand.u32 2147483647, %v184
    %v199 = vand.u32 %v198, 8388607
    %v200 = vor.u32 %v199, 8388608
    %v201 = vsub.s32 0, %v200
    %v202 = vadd.s32 %v197, 1
    %vm203 = vcmp.gt.s32.totalorder %v202, 0
    %v204 = vsel %vm203, %v202, 0
    %v205 = vshrl.u32 %v204, 5
    %v206 = vand.u32 %v204, 31
    %v207 = vsub.s32 32, %v206
    %v208 = vshrl.u32 683565275, %v207
    %v209 = vshll.u32 683565275, %v206
    %v210 = vshrl.u32 2475754826, %v207
    %v211 = vor.u32 %v209, %v210
    %v212 = vshll.u32 2475754826, %v206
    %v213 = vshrl.u32 2131351028, %v207
    %v214 = vor.u32 %v212, %v213
    %v215 = vshll.u32 2131351028, %v206
    %v216 = vshrl.u32 2102212464, %v207
    %v217 = vor.u32 %v215, %v216
    %v218 = vshll.u32 2102212464, %v206
    %v219 = vshrl.u32 920167782, %v207
    %v220 = vor.u32 %v218, %v219
    %v221 = vshll.u32 920167782, %v206
    %v222 = vshrl.u32 1326507024, %v207
    %v223 = vor.u32 %v221, %v222
    %vm224 = vcmp.lt.s32.totalorder %v205, 1
    %vm225 = vcmp.lt.s32.totalorder %v205, 2
    %vm226 = vcmp.lt.s32.totalorder %v205, 3
    %vm227 = vcmp.lt.s32.totalorder %v205, 4
    %v228 = vsel %vm224, %v208, %v211
    %v229 = vsel %vm227, %v217, 2102212464
    %v230 = vsel %vm226, %v214, %v229
    %v231 = vsel %vm225, %v228, %v230
    %v232 = vsel %vm224, %v211, %v214
    %v233 = vsel %vm227, %v220, 920167782
    %v234 = vsel %vm226, %v217, %v233
    %v235 = vsel %vm225, %v232, %v234
    %v236 = vsel %vm224, %v214, %v217
    %v237 = vsel %vm227, %v223, 1326507024
    %v238 = vsel %vm226, %v220, %v237
    %v239 = vsel %vm225, %v236, %v238
    %v240 = vshll.u32 %v200, 8
    %v241 = vand.u32 %v240, 65535
    %v242 = vshrl.u32 %v240, 16
    %v243 = vand.u32 %v239, 65535
    %v244 = vshrl.u32 %v239, 16
    %v245 = vmul.u32 %v241, %v243
    %v246 = vmul.u32 %v241, %v244
    %v247 = vmul.u32 %v242, %v243
    %v248 = vmul.u32 %v242, %v244
    %v249 = vshll.u32 %v246, 16
    %v250 = vshrl.u32 %v246, 16
    %v251 = vshll.u32 %v247, 16
    %v252 = vshrl.u32 %v247, 16
    %vm253 = vc.u32 %v245, %v249
    %v254 = vsel %vm253, 1, 0
    %v255 = vadd.s32 %v245, %v249
    %v256 = vadd.s32 %v248, %v254
    %vm257 = vc.u32 %v255, %v251
    %v258 = vsel %vm257, 1, 0
    %v259 = vadd.s32 %v255, %v251
    %v260 = vadd.s32 %v256, %v258
    %v261 = vadd.s32 %v260, %v250
    %v262 = vadd.s32 %v261, %v252
    %v263 = vand.u32 %v240, 65535
    %v264 = vshrl.u32 %v240, 16
    %v265 = vand.u32 %v235, 65535
    %v266 = vshrl.u32 %v235, 16
    %v267 = vmul.u32 %v263, %v265
    %v268 = vmul.u32 %v263, %v266
    %v269 = vmul.u32 %v264, %v265
    %v270 = vmul.u32 %v264, %v266
    %v271 = vshll.u32 %v268, 16
    %v272 = vshrl.u32 %v268, 16
    %v273 = vshll.u32 %v269, 16
    %v274 = vshrl.u32 %v269, 16
    %vm275 = vc.u32 %v267, %v271
    %v276 = vsel %vm275, 1, 0
    %v277 = vadd.s32 %v267, %v271
    %v278 = vadd.s32 %v270, %v276
    %vm279 = vc.u32 %v277, %v273
    %v280 = vsel %vm279, 1, 0
    %v281 = vadd.s32 %v277, %v273
    %v282 = vadd.s32 %v278, %v280
    %v283 = vadd.s32 %v282, %v272
    %v284 = vadd.s32 %v283, %v274
    %v285 = vmul.u32 %v240, %v231
    %v286 = vadd.s32 %v262, %v281
    %vm287 = vc.u32 %v262, %v281
    %v288 = vadd.s32 %v284, 1
    %v289 = vsel %vm287, %v288, %v284
    %v290 = vadd.s32 %v285, %v289
    %v291 = vadd.s32 %v290, 536870912
    %v292 = vshrl.u32 %v291, 30
    %v293 = vshll.u32 %v292, 30
    %v294 = vsub.s32 %v290, %v293
    %vm295 = vcmp.lt.s32.totalorder %v294, 0
    %v296 = vsub.s32 0, %v294
    %v297 = vsel %vm295, %v296, %v294
    %v298 = vclz %v297
    %v299 = vsub.s32 %v298, 2
    %vm300 = vcmp.gt.s32.totalorder 0, %v299
    %v301 = vsel %vm300, 0, %v299
    %v302 = vsub.s32 32, %v301
    %v303 = vshll.u32 %v294, %v301
    %v304 = vshrl.u32 %v286, %v302
    %v305 = vor.u32 %v303, %v304
    %v306 = vsub.s32 4294967266, %v301
    %v307 = vadd.s32 %v306, 127
    %v308 = vshll.u32 %v307, 23
    %v309 = vor.u32 4788187, %v308
    %v310 = vand.u32 2147483647, %v309
    %v312 = vcvt.s32.f32 %v305
    %v313 = vmul.f32 %v312, %v310
    %v314 = vxor.u32 %v313, 2147483648
    %v315 = vsel %vm194, %v314, %v313
    %v316 = vsub.s32 4, %v292
    %v317 = vsel %vm194, %v316, %v292
    %v318 = vsel %vm193, %v184, %v315
    %v319 = vsel %vm193, 0, %v317
    %v320 = vmul.f32 %v318, %v318
    %v321 = vmul.f32 %v320, -0.001358992
    %v322 = vadd.f32 %v321, 0.041655596
    %v323 = vmul.f32 %v320, %v322
    %v324 = vadd.f32 %v323, -0.4999988
    %v325 = vmul.f32 %v320, %v324
    %v326 = vadd.f32 1.0, %v325
    %v327 = vmul.f32 %v318, %v318
    %v328 = vmul.f32 %v327, -0.00019511016
    %v329 = vadd.f32 %v328, 0.008332121
    %v330 = vmul.f32 %v327, %v329
    %v331 = vadd.f32 %v330, -0.16666654
    %v332 = vmul.f32 %v327, %v331
    %v333 = vadd.f32 %v332, 1.0
    %v334 = vmul.f32 %v333, %v318
    %vm335 = vweird.f32 %v184
    %v336 = vadd.s32 %v319, 3
    %v337 = vand.u32 %v336, 3
    %vm338 = vcmp.lt.s32.totalorder %v337, 2
    %vm339 = vcmp.eq.s32.totalorder %v337, 0
    %v340 = vxor.u32 %v334, 2147483648
    %v341 = vsel %vm339, %v326, %v340
    %vm342 = vcmp.eq.s32.totalorder %v337, 2
    %v343 = vxor.u32 %v326, 2147483648
    %v344 = vsel %vm342, %v343, %v334
    %v345 = vsel %vm338, %v341, %v344
    %v346 = vsel %vm335, nan, %v345
    %v347 = vand.u32 2147483647, %v185
    %vm348 = vcmp.le.f32.partialorder %v347, 0.7853982
    %vm349 = vcmp.lt.s32.totalorder %v185, 0
    %v350 = vand.u32 %v185, 2139095040
    %v351 = vshrl.u32 %v350, 23
    %v352 = vsub.s32 %v351, 127
    %v353 = vand.u32 2147483647, %v185
    %v354 = vand.u32 %v353, 8388607
    %v355 = vor.u32 %v354, 8388608
    %v356 = vsub.s32 0, %v355
    %v357 = vadd.s32 %v352, 1
    %vm358 = vcmp.gt.s32.totalorder %v357, 0
    %v359 = vsel %vm358, %v357, 0
    %v360 = vshrl.u32 %v359, 5
    %v361 = vand.u32 %v359, 31
    %v362 = vsub.s32 32, %v361
    %v363 = vshrl.u32 683565275, %v362
    %v364 = vshll.u32 683565275, %v361
    %v365 = vshrl.u32 2475754826, %v362
    %v366 = vor.u32 %v364, %v365
    %v367 = vshll.u32 2475754826, %v361
    %v368 = vshrl.u32 2131351028, %v362
    %v369 = vor.u32 %v367, %v368
    %v370 = vshll.u32 2131351028, %v361
    %v371 = vshrl.u32 2102212464, %v362
    %v372 = vor.u32 %v370, %v371
    %v373 = vshll.u32 2102212464, %v361
    %v374 = vshrl.u32 920167782, %v362
    %v375 = vor.u32 %v373, %v374
    %v376 = vshll.u32 920167782, %v361
    %v377 = vshrl.u32 1326507024, %v362
    %v378 = vor.u32 %v376, %v377
    %vm379 = vcmp.lt.s32.totalorder %v360, 1
    %vm380 = vcmp.lt.s32.totalorder %v360, 2
    %vm381 = vcmp.lt.s32.totalorder %v360, 3
    %vm382 = vcmp.lt.s32.totalorder %v360, 4
    %v383 = vsel %vm379, %v363, %v366
    %v384 = vsel %vm382, %v372, 2102212464
    %v385 = vsel %vm381, %v369, %v384
    %v386 = vsel %vm380, %v383, %v385
    %v387 = vsel %vm379, %v366, %v369
    %v388 = vsel %vm382, %v375, 920167782
    %v389 = vsel %vm381, %v372, %v388
    %v390 = vsel %vm380, %v387, %v389
    %v391 = vsel %vm379, %v369, %v372
    %v392 = vsel %vm382, %v378, 1326507024
    %v393 = vsel %vm381, %v375, %v392
    %v394 = vsel %vm380, %v391, %v393
    %v395 = vshll.u32 %v355, 8
    %v396 = vand.u32 %v395, 65535
    %v397 = vshrl.u32 %v395, 16
    %v398 = vand.u32 %v394, 65535
    %v399 = vshrl.u32 %v394, 16
    %v400 = vmul.u32 %v396, %v398
    %v401 = vmul.u32 %v396, %v399
    %v402 = vmul.u32 %v397, %v398
    %v403 = vmul.u32 %v397, %v399
    %v404 = vshll.u32 %v401, 16
    %v405 = vshrl.u32 %v401, 16
    %v406 = vshll.u32 %v402, 16
    %v407 = vshrl.u32 %v402, 16
    %vm408 = vc.u32 %v400, %v404
    %v409 = vsel %vm408, 1, 0
    %v410 = vadd.s32 %v400, %v404
    %v411 = vadd.s32 %v403, %v409
    %vm412 = vc.u32 %v410, %v406
    %v413 = vsel %vm412, 1, 0
    %v414 = vadd.s32 %v410, %v406
    %v415 = vadd.s32 %v411, %v413
    %v416 = vadd.s32 %v415, %v405
    %v417 = vadd.s32 %v416, %v407
    %v418 = vand.u32 %v395, 65535
    %v419 = vshrl.u32 %v395, 16
    %v420 = vand.u32 %v390, 65535
    %v421 = vshrl.u32 %v390, 16
    %v422 = vmul.u32 %v418, %v420
    %v423 = vmul.u32 %v418, %v421
    %v424 = vmul.u32 %v419, %v420
    %v425 = vmul.u32 %v419, %v421
    %v426 = vshll.u32 %v423, 16
    %v427 = vshrl.u32 %v423, 16
    %v428 = vshll.u32 %v424, 16
    %v429 = vshrl.u32 %v424, 16
    %vm430 = vc.u32 %v422, %v426
    %v431 = vsel %vm430, 1, 0
    %v432 = vadd.s32 %v422, %v426
    %v433 = vadd.s32 %v425, %v431
    %vm434 = vc.u32 %v432, %v428
    %v435 = vsel %vm434, 1, 0
    %v436 = vadd.s32 %v432, %v428
    %v437 = vadd.s32 %v433, %v435
    %v438 = vadd.s32 %v437, %v427
    %v439 = vadd.s32 %v438, %v429
    %v440 = vmul.u32 %v395, %v386
    %v441 = vadd.s32 %v417, %v436
    %vm442 = vc.u32 %v417, %v436
    %v443 = vadd.s32 %v439, 1
    %v444 = vsel %vm442, %v443, %v439
    %v445 = vadd.s32 %v440, %v444
    %v446 = vadd.s32 %v445, 536870912
    %v447 = vshrl.u32 %v446, 30
    %v448 = vshll.u32 %v447, 30
    %v449 = vsub.s32 %v445, %v448
    %vm450 = vcmp.lt.s32.totalorder %v449, 0
    %v451 = vsub.s32 0, %v449
    %v452 = vsel %vm450, %v451, %v449
    %v453 = vclz %v452
    %v454 = vsub.s32 %v453, 2
    %vm455 = vcmp.gt.s32.totalorder 0, %v454
    %v456 = vsel %vm455, 0, %v454
    %v457 = vsub.s32 32, %v456
    %v458 = vshll.u32 %v449, %v456
    %v459 = vshrl.u32 %v441, %v457
    %v460 = vor.u32 %v458, %v459
    %v461 = vsub.s32 4294967266, %v456
    %v462 = vadd.s32 %v461, 127
    %v463 = vshll.u32 %v462, 23
    %v464 = vor.u32 4788187, %v463
    %v465 = vand.u32 2147483647, %v464
    %v467 = vcvt.s32.f32 %v460
    %v468 = vmul.f32 %v467, %v465
    %v469 = vxor.u32 %v468, 2147483648
    %v470 = vsel %vm349, %v469, %v468
    %v471 = vsub.s32 4, %v447
    %v472 = vsel %vm349, %v471, %v447
    %v473 = vsel %vm348, %v185, %v470
    %v474 = vsel %vm348, 0, %v472
    %v475 = vmul.f32 %v473, %v473
    %v476 = vmul.f32 %v475, -0.001358992
    %v477 = vadd.f32 %v476, 0.041655596
    %v478 = vmul.f32 %v475, %v477
    %v479 = vadd.f32 %v478, -0.4999988
    %v480 = vmul.f32 %v475, %v479
    %v481 = vadd.f32 1.0, %v480
    %v482 = vmul.f32 %v473, %v473
    %v483 = vmul.f32 %v482, -0.00019511016
    %v484 = vadd.f32 %v483, 0.008332121
    %v485 = vmul.f32 %v482, %v484
    %v486 = vadd.f32 %v485, -0.16666654
    %v487 = vmul.f32 %v482, %v486
    %v488 = vadd.f32 %v487, 1.0
    %v489 = vmul.f32 %v488, %v473
    %vm490 = vweird.f32 %v185
    %v491 = vadd.s32 %v474, 3
    %v492 = vand.u32 %v491, 3
    %vm493 = vcmp.lt.s32.totalorder %v492, 2
    %vm494 = vcmp.eq.s32.totalorder %v492, 0
    %v495 = vxor.u32 %v489, 2147483648
    %v496 = vsel %vm494, %v481, %v495
    %vm497 = vcmp.eq.s32.totalorder %v492, 2
    %v498 = vxor.u32 %v481, 2147483648
    %v499 = vsel %vm497, %v498, %v489
    %v500 = vsel %vm493, %v496, %v499
    %v501 = vsel %vm490, nan, %v500
    %v502 = vand.u32 2147483647, %v186
    %vm503 = vcmp.le.f32.partialorder %v502, 0.7853982
    %vm504 = vcmp.lt.s32.totalorder %v186, 0
    %v505 = vand.u32 %v186, 2139095040
    %v506 = vshrl.u32 %v505, 23
    %v507 = vsub.s32 %v506, 127
    %v508 = vand.u32 2147483647, %v186
    %v509 = vand.u32 %v508, 8388607
    %v510 = vor.u32 %v509, 8388608
    %v511 = vsub.s32 0, %v510
    %v512 = vadd.s32 %v507, 1
    %vm513 = vcmp.gt.s32.totalorder %v512, 0
    %v514 = vsel %vm513, %v512, 0
    %v515 = vshrl.u32 %v514, 5
    %v516 = vand.u32 %v514, 31
    %v517 = vsub.s32 32, %v516
    %v518 = vshrl.u32 683565275, %v517
    %v519 = vshll.u32 683565275, %v516
    %v520 = vshrl.u32 2475754826, %v517
    %v521 = vor.u32 %v519, %v520
    %v522 = vshll.u32 2475754826, %v516
    %v523 = vshrl.u32 2131351028, %v517
    %v524 = vor.u32 %v522, %v523
    %v525 = vshll.u32 2131351028, %v516
    %v526 = vshrl.u32 2102212464, %v517
    %v527 = vor.u32 %v525, %v526
    %v528 = vshll.u32 2102212464, %v516
    %v529 = vshrl.u32 920167782, %v517
    %v530 = vor.u32 %v528, %v529
    %v531 = vshll.u32 920167782, %v516
    %v532 = vshrl.u32 1326507024, %v517
    %v533 = vor.u32 %v531, %v532
    %vm534 = vcmp.lt.s32.totalorder %v515, 1
    %vm535 = vcmp.lt.s32.totalorder %v515, 2
    %vm536 = vcmp.lt.s32.totalorder %v515, 3
    %vm537 = vcmp.lt.s32.totalorder %v515, 4
    %v538 = vsel %vm534, %v518, %v521
    %v539 = vsel %vm537, %v527, 2102212464
    %v540 = vsel %vm536, %v524, %v539
    %v541 = vsel %vm535, %v538, %v540
    %v542 = vsel %vm534, %v521, %v524
    %v543 = vsel %vm537, %v530, 920167782
    %v544 = vsel %vm536, %v527, %v543
    %v545 = vsel %vm535, %v542, %v544
    %v546 = vsel %vm534, %v524, %v527
    %v547 = vsel %vm537, %v533, 1326507024
    %v548 = vsel %vm536, %v530, %v547
    %v549 = vsel %vm535, %v546, %v548
    %v550 = vshll.u32 %v510, 8
    %v551 = vand.u32 %v550, 65535
    %v552 = vshrl.u32 %v550, 16
    %v553 = vand.u32 %v549, 65535
    %v554 = vshrl.u32 %v549, 16
    %v555 = vmul.u32 %v551, %v553
    %v556 = vmul.u32 %v551, %v554
    %v557 = vmul.u32 %v552, %v553
    %v558 = vmul.u32 %v552, %v554
    %v559 = vshll.u32 %v556, 16
    %v560 = vshrl.u32 %v556, 16
    %v561 = vshll.u32 %v557, 16
    %v562 = vshrl.u32 %v557, 16
    %vm563 = vc.u32 %v555, %v559
    %v564 = vsel %vm563, 1, 0
    %v565 = vadd.s32 %v555, %v559
    %v566 = vadd.s32 %v558, %v564
    %vm567 = vc.u32 %v565, %v561
    %v568 = vsel %vm567, 1, 0
    %v569 = vadd.s32 %v565, %v561
    %v570 = vadd.s32 %v566, %v568
    %v571 = vadd.s32 %v570, %v560
    %v572 = vadd.s32 %v571, %v562
    %v573 = vand.u32 %v550, 65535
    %v574 = vshrl.u32 %v550, 16
    %v575 = vand.u32 %v545, 65535
    %v576 = vshrl.u32 %v545, 16
    %v577 = vmul.u32 %v573, %v575
    %v578 = vmul.u32 %v573, %v576
    %v579 = vmul.u32 %v574, %v575
    %v580 = vmul.u32 %v574, %v576
    %v581 = vshll.u32 %v578, 16
    %v582 = vshrl.u32 %v578, 16
    %v583 = vshll.u32 %v579, 16
    %v584 = vshrl.u32 %v579, 16
    %vm585 = vc.u32 %v577, %v581
    %v586 = vsel %vm585, 1, 0
    %v587 = vadd.s32 %v577, %v581
    %v588 = vadd.s32 %v580, %v586
    %vm589 = vc.u32 %v587, %v583
    %v590 = vsel %vm589, 1, 0
    %v591 = vadd.s32 %v587, %v583
    %v592 = vadd.s32 %v588, %v590
    %v593 = vadd.s32 %v592, %v582
    %v594 = vadd.s32 %v593, %v584
    %v595 = vmul.u32 %v550, %v541
    %v596 = vadd.s32 %v572, %v591
    %vm597 = vc.u32 %v572, %v591
    %v598 = vadd.s32 %v594, 1
    %v599 = vsel %vm597, %v598, %v594
    %v600 = vadd.s32 %v595, %v599
    %v601 = vadd.s32 %v600, 536870912
    %v602 = vshrl.u32 %v601, 30
    %v603 = vshll.u32 %v602, 30
    %v604 = vsub.s32 %v600, %v603
    %vm605 = vcmp.lt.s32.totalorder %v604, 0
    %v606 = vsub.s32 0, %v604
    %v607 = vsel %vm605, %v606, %v604
    %v608 = vclz %v607
    %v609 = vsub.s32 %v608, 2
    %vm610 = vcmp.gt.s32.totalorder 0, %v609
    %v611 = vsel %vm610, 0, %v609
    %v612 = vsub.s32 32, %v611
    %v613 = vshll.u32 %v604, %v611
    %v614 = vshrl.u32 %v596, %v612
    %v615 = vor.u32 %v613, %v614
    %v616 = vsub.s32 4294967266, %v611
    %v617 = vadd.s32 %v616, 127
    %v618 = vshll.u32 %v617, 23
    %v619 = vor.u32 4788187, %v618
    %v620 = vand.u32 2147483647, %v619
    %v622 = vcvt.s32.f32 %v615
    %v623 = vmul.f32 %v622, %v620
    %v624 = vxor.u32 %v623, 2147483648
    %v625 = vsel %vm504, %v624, %v623
    %v626 = vsub.s32 4, %v602
    %v627 = vsel %vm504, %v626, %v602
    %v628 = vsel %vm503, %v186, %v625
    %v629 = vsel %vm503, 0, %v627
    %v630 = vmul.f32 %v628, %v628
    %v631 = vmul.f32 %v630, -0.001358992
    %v632 = vadd.f32 %v631, 0.041655596
    %v633 = vmul.f32 %v630, %v632
    %v634 = vadd.f32 %v633, -0.4999988
    %v635 = vmul.f32 %v630, %v634
    %v636 = vadd.f32 1.0, %v635
    %v637 = vmul.f32 %v628, %v628
    %v638 = vmul.f32 %v637, -0.00019511016
    %v639 = vadd.f32 %v638, 0.008332121
    %v640 = vmul.f32 %v637, %v639
    %v641 = vadd.f32 %v640, -0.16666654
    %v642 = vmul.f32 %v637, %v641
    %v643 = vadd.f32 %v642, 1.0
    %v644 = vmul.f32 %v643, %v628
    %vm645 = vweird.f32 %v186
    %v646 = vadd.s32 %v629, 3
    %v647 = vand.u32 %v646, 3
    %vm648 = vcmp.lt.s32.totalorder %v647, 2
    %vm649 = vcmp.eq.s32.totalorder %v647, 0
    %v650 = vxor.u32 %v644, 2147483648
    %v651 = vsel %vm649, %v636, %v650
    %vm652 = vcmp.eq.s32.totalorder %v647, 2
    %v653 = vxor.u32 %v636, 2147483648
    %v654 = vsel %vm652, %v653, %v644
    %v655 = vsel %vm648, %v651, %v654
    %v656 = vsel %vm645, nan, %v655
    %v657 = vand.u32 2147483647, %v187
    %vm658 = vcmp.le.f32.partialorder %v657, 0.7853982
    %vm659 = vcmp.lt.s32.totalorder %v187, 0
    %v660 = vand.u32 %v187, 2139095040
    %v661 = vshrl.u32 %v660, 23
    %v662 = vsub.s32 %v661, 127
    %v663 = vand.u32 2147483647, %v187
    %v664 = vand.u32 %v663, 8388607
    %v665 = vor.u32 %v664, 8388608
    %v666 = vsub.s32 0, %v665
    %v667 = vadd.s32 %v662, 1
    %vm668 = vcmp.gt.s32.totalorder %v667, 0
    %v669 = vsel %vm668, %v667, 0
    %v670 = vshrl.u32 %v669, 5
    %v671 = vand.u32 %v669, 31
    %v672 = vsub.s32 32, %v671
    %v673 = vshrl.u32 683565275, %v672
    %v674 = vshll.u32 683565275, %v671
    %v675 = vshrl.u32 2475754826, %v672
    %v676 = vor.u32 %v674, %v675
    %v677 = vshll.u32 2475754826, %v671
    %v678 = vshrl.u32 2131351028, %v672
    %v679 = vor.u32 %v677, %v678
    %v680 = vshll.u32 2131351028, %v671
    %v681 = vshrl.u32 2102212464, %v672
    %v682 = vor.u32 %v680, %v681
    %v683 = vshll.u32 2102212464, %v671
    %v684 = vshrl.u32 920167782, %v672
    %v685 = vor.u32 %v683, %v684
    %v686 = vshll.u32 920167782, %v671
    %v687 = vshrl.u32 1326507024, %v672
    %v688 = vor.u32 %v686, %v687
    %vm689 = vcmp.lt.s32.totalorder %v670, 1
    %vm690 = vcmp.lt.s32.totalorder %v670, 2
    %vm691 = vcmp.lt.s32.totalorder %v670, 3
    %vm692 = vcmp.lt.s32.totalorder %v670, 4
    %v693 = vsel %vm689, %v673, %v676
    %v694 = vsel %vm692, %v682, 2102212464
    %v695 = vsel %vm691, %v679, %v694
    %v696 = vsel %vm690, %v693, %v695
    %v697 = vsel %vm689, %v676, %v679
    %v698 = vsel %vm692, %v685, 920167782
    %v699 = vsel %vm691, %v682, %v698
    %v700 = vsel %vm690, %v697, %v699
    %v701 = vsel %vm689, %v679, %v682
    %v702 = vsel %vm692, %v688, 1326507024
    %v703 = vsel %vm691, %v685, %v702
    %v704 = vsel %vm690, %v701, %v703
    %v705 = vshll.u32 %v665, 8
    %v706 = vand.u32 %v705, 65535
    %v707 = vshrl.u32 %v705, 16
    %v708 = vand.u32 %v704, 65535
    %v709 = vshrl.u32 %v704, 16
    %v710 = vmul.u32 %v706, %v708
    %v711 = vmul.u32 %v706, %v709
    %v712 = vmul.u32 %v707, %v708
    %v713 = vmul.u32 %v707, %v709
    %v714 = vshll.u32 %v711, 16
    %v715 = vshrl.u32 %v711, 16
    %v716 = vshll.u32 %v712, 16
    %v717 = vshrl.u32 %v712, 16
    %vm718 = vc.u32 %v710, %v714
    %v719 = vsel %vm718, 1, 0
    %v720 = vadd.s32 %v710, %v714
    %v721 = vadd.s32 %v713, %v719
    %vm722 = vc.u32 %v720, %v716
    %v723 = vsel %vm722, 1, 0
    %v724 = vadd.s32 %v720, %v716
    %v725 = vadd.s32 %v721, %v723
    %v726 = vadd.s32 %v725, %v715
    %v727 = vadd.s32 %v726, %v717
    %v728 = vand.u32 %v705, 65535
    %v729 = vshrl.u32 %v705, 16
    %v730 = vand.u32 %v700, 65535
    %v731 = vshrl.u32 %v700, 16
    %v732 = vmul.u32 %v728, %v730
    %v733 = vmul.u32 %v728, %v731
    %v734 = vmul.u32 %v729, %v730
    %v735 = vmul.u32 %v729, %v731
    %v736 = vshll.u32 %v733, 16
    %v737 = vshrl.u32 %v733, 16
    %v738 = vshll.u32 %v734, 16
    %v739 = vshrl.u32 %v734, 16
    %vm740 = vc.u32 %v732, %v736
    %v741 = vsel %vm740, 1, 0
    %v742 = vadd.s32 %v732, %v736
    %v743 = vadd.s32 %v735, %v741
    %vm744 = vc.u32 %v742, %v738
    %v745 = vsel %vm744, 1, 0
    %v746 = vadd.s32 %v742, %v738
    %v747 = vadd.s32 %v743, %v745
    %v748 = vadd.s32 %v747, %v737
    %v749 = vadd.s32 %v748, %v739
    %v750 = vmul.u32 %v705, %v696
    %v751 = vadd.s32 %v727, %v746
    %vm752 = vc.u32 %v727, %v746
    %v753 = vadd.s32 %v749, 1
    %v754 = vsel %vm752, %v753, %v749
    %v755 = vadd.s32 %v750, %v754
    %v756 = vadd.s32 %v755, 536870912
    %v757 = vshrl.u32 %v756, 30
    %v758 = vshll.u32 %v757, 30
    %v759 = vsub.s32 %v755, %v758
    %vm760 = vcmp.lt.s32.totalorder %v759, 0
    %v761 = vsub.s32 0, %v759
    %v762 = vsel %vm760, %v761, %v759
    %v763 = vclz %v762
    %v764 = vsub.s32 %v763, 2
    %vm765 = vcmp.gt.s32.totalorder 0, %v764
    %v766 = vsel %vm765, 0, %v764
    %v767 = vsub.s32 32, %v766
    %v768 = vshll.u32 %v759, %v766
    %v769 = vshrl.u32 %v751, %v767
    %v770 = vor.u32 %v768, %v769
    %v771 = vsub.s32 4294967266, %v766
    %v772 = vadd.s32 %v771, 127
    %v773 = vshll.u32 %v772, 23
    %v774 = vor.u32 4788187, %v773
    %v775 = vand.u32 2147483647, %v774
    %v777 = vcvt.s32.f32 %v770
    %v778 = vmul.f32 %v777, %v775
    %v779 = vxor.u32 %v778, 2147483648
    %v780 = vsel %vm659, %v779, %v778
    %v781 = vsub.s32 4, %v757
    %v782 = vsel %vm659, %v781, %v757
    %v783 = vsel %vm658, %v187, %v780
    %v784 = vsel %vm658, 0, %v782
    %v785 = vmul.f32 %v783, %v783
    %v786 = vmul.f32 %v785, -0.001358992
    %v787 = vadd.f32 %v786, 0.041655596
    %v788 = vmul.f32 %v785, %v787
    %v789 = vadd.f32 %v788, -0.4999988
    %v790 = vmul.f32 %v785, %v789
    %v791 = vadd.f32 1.0, %v790
    %v792 = vmul.f32 %v783, %v783
    %v793 = vmul.f32 %v792, -0.00019511016
    %v794 = vadd.f32 %v793, 0.008332121
    %v795 = vmul.f32 %v792, %v794
    %v796 = vadd.f32 %v795, -0.16666654
    %v797 = vmul.f32 %v792, %v796
    %v798 = vadd.f32 %v797, 1.0
    %v799 = vmul.f32 %v798, %v783
    %vm800 = vweird.f32 %v187
    %v801 = vadd.s32 %v784, 3
    %v802 = vand.u32 %v801, 3
    %vm803 = vcmp.lt.s32.totalorder %v802, 2
    %vm804 = vcmp.eq.s32.totalorder %v802, 0
    %v805 = vxor.u32 %v799, 2147483648
    %v806 = vsel %vm804, %v791, %v805
    %vm807 = vcmp.eq.s32.totalorder %v802, 2
    %v808 = vxor.u32 %v791, 2147483648
    %v809 = vsel %vm807, %v808, %v799
    %v810 = vsel %vm803, %v806, %v809
    %v811 = vsel %vm800, nan, %v810
    %v812 = vand.u32 2147483647, %v188
    %vm813 = vcmp.le.f32.partialorder %v812, 0.7853982
    %vm814 = vcmp.lt.s32.totalorder %v188, 0
    %v815 = vand.u32 %v188, 2139095040
    %v816 = vshrl.u32 %v815, 23
    %v817 = vsub.s32 %v816, 127
    %v818 = vand.u32 2147483647, %v188
    %v819 = vand.u32 %v818, 8388607
    %v820 = vor.u32 %v819, 8388608
    %v821 = vsub.s32 0, %v820
    %v822 = vadd.s32 %v817, 1
    %vm823 = vcmp.gt.s32.totalorder %v822, 0
    %v824 = vsel %vm823, %v822, 0
    %v825 = vshrl.u32 %v824, 5
    %v826 = vand.u32 %v824, 31
    %v827 = vsub.s32 32, %v826
    %v828 = vshrl.u32 683565275, %v827
    %v829 = vshll.u32 683565275, %v826
    %v830 = vshrl.u32 2475754826, %v827
    %v831 = vor.u32 %v829, %v830
    %v832 = vshll.u32 2475754826, %v826
    %v833 = vshrl.u32 2131351028, %v827
    %v834 = vor.u32 %v832, %v833
    %v835 = vshll.u32 2131351028, %v826
    %v836 = vshrl.u32 2102212464, %v827
    %v837 = vor.u32 %v835, %v836
    %v838 = vshll.u32 2102212464, %v826
    %v839 = vshrl.u32 920167782, %v827
    %v840 = vor.u32 %v838, %v839
    %v841 = vshll.u32 920167782, %v826
    %v842 = vshrl.u32 1326507024, %v827
    %v843 = vor.u32 %v841, %v842
    %vm844 = vcmp.lt.s32.totalorder %v825, 1
    %vm845 = vcmp.lt.s32.totalorder %v825, 2
    %vm846 = vcmp.lt.s32.totalorder %v825, 3
    %vm847 = vcmp.lt.s32.totalorder %v825, 4
    %v848 = vsel %vm844, %v828, %v831
    %v849 = vsel %vm847, %v837, 2102212464
    %v850 = vsel %vm846, %v834, %v849
    %v851 = vsel %vm845, %v848, %v850
    %v852 = vsel %vm844, %v831, %v834
    %v853 = vsel %vm847, %v840, 920167782
    %v854 = vsel %vm846, %v837, %v853
    %v855 = vsel %vm845, %v852, %v854
    %v856 = vsel %vm844, %v834, %v837
    %v857 = vsel %vm847, %v843, 1326507024
    %v858 = vsel %vm846, %v840, %v857
    %v859 = vsel %vm845, %v856, %v858
    %v860 = vshll.u32 %v820, 8
    %v861 = vand.u32 %v860, 65535
    %v862 = vshrl.u32 %v860, 16
    %v863 = vand.u32 %v859, 65535
    %v864 = vshrl.u32 %v859, 16
    %v865 = vmul.u32 %v861, %v863
    %v866 = vmul.u32 %v861, %v864
    %v867 = vmul.u32 %v862, %v863
    %v868 = vmul.u32 %v862, %v864
    %v869 = vshll.u32 %v866, 16
    %v870 = vshrl.u32 %v866, 16
    %v871 = vshll.u32 %v867, 16
    %v872 = vshrl.u32 %v867, 16
    %vm873 = vc.u32 %v865, %v869
    %v874 = vsel %vm873, 1, 0
    %v875 = vadd.s32 %v865, %v869
    %v876 = vadd.s32 %v868, %v874
    %vm877 = vc.u32 %v875, %v871
    %v878 = vsel %vm877, 1, 0
    %v879 = vadd.s32 %v875, %v871
    %v880 = vadd.s32 %v876, %v878
    %v881 = vadd.s32 %v880, %v870
    %v882 = vadd.s32 %v881, %v872
    %v883 = vand.u32 %v860, 65535
    %v884 = vshrl.u32 %v860, 16
    %v885 = vand.u32 %v855, 65535
    %v886 = vshrl.u32 %v855, 16
    %v887 = vmul.u32 %v883, %v885
    %v888 = vmul.u32 %v883, %v886
    %v889 = vmul.u32 %v884, %v885
    %v890 = vmul.u32 %v884, %v886
    %v891 = vshll.u32 %v888, 16
    %v892 = vshrl.u32 %v888, 16
    %v893 = vshll.u32 %v889, 16
    %v894 = vshrl.u32 %v889, 16
    %vm895 = vc.u32 %v887, %v891
    %v896 = vsel %vm895, 1, 0
    %v897 = vadd.s32 %v887, %v891
    %v898 = vadd.s32 %v890, %v896
    %vm899 = vc.u32 %v897, %v893
    %v900 = vsel %vm899, 1, 0
    %v901 = vadd.s32 %v897, %v893
    %v902 = vadd.s32 %v898, %v900
    %v903 = vadd.s32 %v902, %v892
    %v904 = vadd.s32 %v903, %v894
    %v905 = vmul.u32 %v860, %v851
    %v906 = vadd.s32 %v882, %v901
    %vm907 = vc.u32 %v882, %v901
    %v908 = vadd.s32 %v904, 1
    %v909 = vsel %vm907, %v908, %v904
    %v910 = vadd.s32 %v905, %v909
    %v911 = vadd.s32 %v910, 536870912
    %v912 = vshrl.u32 %v911, 30
    %v913 = vshll.u32 %v912, 30
    %v914 = vsub.s32 %v910, %v913
    %vm915 = vcmp.lt.s32.totalorder %v914, 0
    %v916 = vsub.s32 0, %v914
    %v917 = vsel %vm915, %v916, %v914
    %v918 = vclz %v917
    %v919 = vsub.s32 %v918, 2
    %vm920 = vcmp.gt.s32.totalorder 0, %v919
    %v921 = vsel %vm920, 0, %v919
    %v922 = vsub.s32 32, %v921
    %v923 = vshll.u32 %v914, %v921
    %v924 = vshrl.u32 %v906, %v922
    %v925 = vor.u32 %v923, %v924
    %v926 = vsub.s32 4294967266, %v921
    %v927 = vadd.s32 %v926, 127
    %v928 = vshll.u32 %v927, 23
    %v929 = vor.u32 4788187, %v928
    %v930 = vand.u32 2147483647, %v929
    %v932 = vcvt.s32.f32 %v925
    %v933 = vmul.f32 %v932, %v930
    %v934 = vxor.u32 %v933, 2147483648
    %v935 = vsel %vm814, %v934, %v933
    %v936 = vsub.s32 4, %v912
    %v937 = vsel %vm814, %v936, %v912
    %v938 = vsel %vm813, %v188, %v935
    %v939 = vsel %vm813, 0, %v937
    %v940 = vmul.f32 %v938, %v938
    %v941 = vmul.f32 %v940, -0.001358992
    %v942 = vadd.f32 %v941, 0.041655596
    %v943 = vmul.f32 %v940, %v942
    %v944 = vadd.f32 %v943, -0.4999988
    %v945 = vmul.f32 %v940, %v944
    %v946 = vadd.f32 1.0, %v945
    %v947 = vmul.f32 %v938, %v938
    %v948 = vmul.f32 %v947, -0.00019511016
    %v949 = vadd.f32 %v948, 0.008332121
    %v950 = vmul.f32 %v947, %v949
    %v951 = vadd.f32 %v950, -0.16666654
    %v952 = vmul.f32 %v947, %v951
    %v953 = vadd.f32 %v952, 1.0
    %v954 = vmul.f32 %v953, %v938
    %vm955 = vweird.f32 %v188
    %v956 = vadd.s32 %v939, 3
    %v957 = vand.u32 %v956, 3
    %vm958 = vcmp.lt.s32.totalorder %v957, 2
    %vm959 = vcmp.eq.s32.totalorder %v957, 0
    %v960 = vxor.u32 %v954, 2147483648
    %v961 = vsel %vm959, %v946, %v960
    %vm962 = vcmp.eq.s32.totalorder %v957, 2
    %v963 = vxor.u32 %v946, 2147483648
    %v964 = vsel %vm962, %v963, %v954
    %v965 = vsel %vm958, %v961, %v964
    %v966 = vsel %vm955, nan, %v965
    %v967 = vand.u32 2147483647, %v189
    %vm968 = vcmp.le.f32.partialorder %v967, 0.7853982
    %vm969 = vcmp.lt.s32.totalorder %v189, 0
    %v970 = vand.u32 %v189, 2139095040
    %v971 = vshrl.u32 %v970, 23
    %v972 = vsub.s32 %v971, 127
    %v973 = vand.u32 2147483647, %v189
    %v974 = vand.u32 %v973, 8388607
    %v975 = vor.u32 %v974, 8388608
    %v976 = vsub.s32 0, %v975
    %v977 = vadd.s32 %v972, 1
    %vm978 = vcmp.gt.s32.totalorder %v977, 0
    %v979 = vsel %vm978, %v977, 0
    %v980 = vshrl.u32 %v979, 5
    %v981 = vand.u32 %v979, 31
    %v982 = vsub.s32 32, %v981
    %v983 = vshrl.u32 683565275, %v982
    %v984 = vshll.u32 683565275, %v981
    %v985 = vshrl.u32 2475754826, %v982
    %v986 = vor.u32 %v984, %v985
    %v987 = vshll.u32 2475754826, %v981
    %v988 = vshrl.u32 2131351028, %v982
    %v989 = vor.u32 %v987, %v988
    %v990 = vshll.u32 2131351028, %v981
    %v991 = vshrl.u32 2102212464, %v982
    %v992 = vor.u32 %v990, %v991
    %v993 = vshll.u32 2102212464, %v981
    %v994 = vshrl.u32 920167782, %v982
    %v995 = vor.u32 %v993, %v994
    %v996 = vshll.u32 920167782, %v981
    %v997 = vshrl.u32 1326507024, %v982
    %v998 = vor.u32 %v996, %v997
    %vm999 = vcmp.lt.s32.totalorder %v980, 1
    %vm1000 = vcmp.lt.s32.totalorder %v980, 2
    %vm1001 = vcmp.lt.s32.totalorder %v980, 3
    %vm1002 = vcmp.lt.s32.totalorder %v980, 4
    %v1003 = vsel %vm999, %v983, %v986
    %v1004 = vsel %vm1002, %v992, 2102212464
    %v1005 = vsel %vm1001, %v989, %v1004
    %v1006 = vsel %vm1000, %v1003, %v1005
    %v1007 = vsel %vm999, %v986, %v989
    %v1008 = vsel %vm1002, %v995, 920167782
    %v1009 = vsel %vm1001, %v992, %v1008
    %v1010 = vsel %vm1000, %v1007, %v1009
    %v1011 = vsel %vm999, %v989, %v992
    %v1012 = vsel %vm1002, %v998, 1326507024
    %v1013 = vsel %vm1001, %v995, %v1012
    %v1014 = vsel %vm1000, %v1011, %v1013
    %v1015 = vshll.u32 %v975, 8
    %v1016 = vand.u32 %v1015, 65535
    %v1017 = vshrl.u32 %v1015, 16
    %v1018 = vand.u32 %v1014, 65535
    %v1019 = vshrl.u32 %v1014, 16
    %v1020 = vmul.u32 %v1016, %v1018
    %v1021 = vmul.u32 %v1016, %v1019
    %v1022 = vmul.u32 %v1017, %v1018
    %v1023 = vmul.u32 %v1017, %v1019
    %v1024 = vshll.u32 %v1021, 16
    %v1025 = vshrl.u32 %v1021, 16
    %v1026 = vshll.u32 %v1022, 16
    %v1027 = vshrl.u32 %v1022, 16
    %vm1028 = vc.u32 %v1020, %v1024
    %v1029 = vsel %vm1028, 1, 0
    %v1030 = vadd.s32 %v1020, %v1024
    %v1031 = vadd.s32 %v1023, %v1029
    %vm1032 = vc.u32 %v1030, %v1026
    %v1033 = vsel %vm1032, 1, 0
    %v1034 = vadd.s32 %v1030, %v1026
    %v1035 = vadd.s32 %v1031, %v1033
    %v1036 = vadd.s32 %v1035, %v1025
    %v1037 = vadd.s32 %v1036, %v1027
    %v1038 = vand.u32 %v1015, 65535
    %v1039 = vshrl.u32 %v1015, 16
    %v1040 = vand.u32 %v1010, 65535
    %v1041 = vshrl.u32 %v1010, 16
    %v1042 = vmul.u32 %v1038, %v1040
    %v1043 = vmul.u32 %v1038, %v1041
    %v1044 = vmul.u32 %v1039, %v1040
    %v1045 = vmul.u32 %v1039, %v1041
    %v1046 = vshll.u32 %v1043, 16
    %v1047 = vshrl.u32 %v1043, 16
    %v1048 = vshll.u32 %v1044, 16
    %v1049 = vshrl.u32 %v1044, 16
    %vm1050 = vc.u32 %v1042, %v1046
    %v1051 = vsel %vm1050, 1, 0
    %v1052 = vadd.s32 %v1042, %v1046
    %v1053 = vadd.s32 %v1045, %v1051
    %vm1054 = vc.u32 %v1052, %v1048
    %v1055 = vsel %vm1054, 1, 0
    %v1056 = vadd.s32 %v1052, %v1048
    %v1057 = vadd.s32 %v1053, %v1055
    %v1058 = vadd.s32 %v1057, %v1047
    %v1059 = vadd.s32 %v1058, %v1049
    %v1060 = vmul.u32 %v1015, %v1006
    %v1061 = vadd.s32 %v1037, %v1056
    %vm1062 = vc.u32 %v1037, %v1056
    %v1063 = vadd.s32 %v1059, 1
    %v1064 = vsel %vm1062, %v1063, %v1059
    %v1065 = vadd.s32 %v1060, %v1064
    %v1066 = vadd.s32 %v1065, 536870912
    %v1067 = vshrl.u32 %v1066, 30
    %v1068 = vshll.u32 %v1067, 30
    %v1069 = vsub.s32 %v1065, %v1068
    %vm1070 = vcmp.lt.s32.totalorder %v1069, 0
    %v1071 = vsub.s32 0, %v1069
    %v1072 = vsel %vm1070, %v1071, %v1069
    %v1073 = vclz %v1072
    %v1074 = vsub.s32 %v1073, 2
    %vm1075 = vcmp.gt.s32.totalorder 0, %v1074
    %v1076 = vsel %vm1075, 0, %v1074
    %v1077 = vsub.s32 32, %v1076
    %v1078 = vshll.u32 %v1069, %v1076
    %v1079 = vshrl.u32 %v1061, %v1077
    %v1080 = vor.u32 %v1078, %v1079
    %v1081 = vsub.s32 4294967266, %v1076
    %v1082 = vadd.s32 %v1081, 127
    %v1083 = vshll.u32 %v1082, 23
    %v1084 = vor.u32 4788187, %v1083
    %v1085 = vand.u32 2147483647, %v1084
    %v1087 = vcvt.s32.f32 %v1080
    %v1088 = vmul.f32 %v1087, %v1085
    %v1089 = vxor.u32 %v1088, 2147483648
    %v1090 = vsel %vm969, %v1089, %v1088
    %v1091 = vsub.s32 4, %v1067
    %v1092 = vsel %vm969, %v1091, %v1067
    %v1093 = vsel %vm968, %v189, %v1090
    %v1094 = vsel %vm968, 0, %v1092
    %v1095 = vmul.f32 %v1093, %v1093
    %v1096 = vmul.f32 %v1095, -0.001358992
    %v1097 = vadd.f32 %v1096, 0.041655596
    %v1098 = vmul.f32 %v1095, %v1097
    %v1099 = vadd.f32 %v1098, -0.4999988
    %v1100 = vmul.f32 %v1095, %v1099
    %v1101 = vadd.f32 1.0, %v1100
    %v1102 = vmul.f32 %v1093, %v1093
    %v1103 = vmul.f32 %v1102, -0.00019511016
    %v1104 = vadd.f32 %v1103, 0.008332121
    %v1105 = vmul.f32 %v1102, %v1104
    %v1106 = vadd.f32 %v1105, -0.16666654
    %v1107 = vmul.f32 %v1102, %v1106
    %v1108 = vadd.f32 %v1107, 1.0
    %v1109 = vmul.f32 %v1108, %v1093
    %vm1110 = vweird.f32 %v189
    %v1111 = vadd.s32 %v1094, 3
    %v1112 = vand.u32 %v1111, 3
    %vm1113 = vcmp.lt.s32.totalorder %v1112, 2
    %vm1114 = vcmp.eq.s32.totalorder %v1112, 0
    %v1115 = vxor.u32 %v1109, 2147483648
    %v1116 = vsel %vm1114, %v1101, %v1115
    %vm1117 = vcmp.eq.s32.totalorder %v1112, 2
    %v1118 = vxor.u32 %v1101, 2147483648
    %v1119 = vsel %vm1117, %v1118, %v1109
    %v1120 = vsel %vm1113, %v1116, %v1119
    %v1121 = vsel %vm1110, nan, %v1120
    %v1122 = vand.u32 2147483647, %v190
    %vm1123 = vcmp.le.f32.partialorder %v1122, 0.7853982
    %vm1124 = vcmp.lt.s32.totalorder %v190, 0
    %v1125 = vand.u32 %v190, 2139095040
    %v1126 = vshrl.u32 %v1125, 23
    %v1127 = vsub.s32 %v1126, 127
    %v1128 = vand.u32 2147483647, %v190
    %v1129 = vand.u32 %v1128, 8388607
    %v1130 = vor.u32 %v1129, 8388608
    %v1131 = vsub.s32 0, %v1130
    %v1132 = vadd.s32 %v1127, 1
    %vm1133 = vcmp.gt.s32.totalorder %v1132, 0
    %v1134 = vsel %vm1133, %v1132, 0
    %v1135 = vshrl.u32 %v1134, 5
    %v1136 = vand.u32 %v1134, 31
    %v1137 = vsub.s32 32, %v1136
    %v1138 = vshrl.u32 683565275, %v1137
    %v1139 = vshll.u32 683565275, %v1136
    %v1140 = vshrl.u32 2475754826, %v1137
    %v1141 = vor.u32 %v1139, %v1140
    %v1142 = vshll.u32 2475754826, %v1136
    %v1143 = vshrl.u32 2131351028, %v1137
    %v1144 = vor.u32 %v1142, %v1143
    %v1145 = vshll.u32 2131351028, %v1136
    %v1146 = vshrl.u32 2102212464, %v1137
    %v1147 = vor.u32 %v1145, %v1146
    %v1148 = vshll.u32 2102212464, %v1136
    %v1149 = vshrl.u32 920167782, %v1137
    %v1150 = vor.u32 %v1148, %v1149
    %v1151 = vshll.u32 920167782, %v1136
    %v1152 = vshrl.u32 1326507024, %v1137
    %v1153 = vor.u32 %v1151, %v1152
    %vm1154 = vcmp.lt.s32.totalorder %v1135, 1
    %vm1155 = vcmp.lt.s32.totalorder %v1135, 2
    %vm1156 = vcmp.lt.s32.totalorder %v1135, 3
    %vm1157 = vcmp.lt.s32.totalorder %v1135, 4
    %v1158 = vsel %vm1154, %v1138, %v1141
    %v1159 = vsel %vm1157, %v1147, 2102212464
    %v1160 = vsel %vm1156, %v1144, %v1159
    %v1161 = vsel %vm1155, %v1158, %v1160
    %v1162 = vsel %vm1154, %v1141, %v1144
    %v1163 = vsel %vm1157, %v1150, 920167782
    %v1164 = vsel %vm1156, %v1147, %v1163
    %v1165 = vsel %vm1155, %v1162, %v1164
    %v1166 = vsel %vm1154, %v1144, %v1147
    %v1167 = vsel %vm1157, %v1153, 1326507024
    %v1168 = vsel %vm1156, %v1150, %v1167
    %v1169 = vsel %vm1155, %v1166, %v1168
    %v1170 = vshll.u32 %v1130, 8
    %v1171 = vand.u32 %v1170, 65535
    %v1172 = vshrl.u32 %v1170, 16
    %v1173 = vand.u32 %v1169, 65535
    %v1174 = vshrl.u32 %v1169, 16
    %v1175 = vmul.u32 %v1171, %v1173
    %v1176 = vmul.u32 %v1171, %v1174
    %v1177 = vmul.u32 %v1172, %v1173
    %v1178 = vmul.u32 %v1172, %v1174
    %v1179 = vshll.u32 %v1176, 16
    %v1180 = vshrl.u32 %v1176, 16
    %v1181 = vshll.u32 %v1177, 16
    %v1182 = vshrl.u32 %v1177, 16
    %vm1183 = vc.u32 %v1175, %v1179
    %v1184 = vsel %vm1183, 1, 0
    %v1185 = vadd.s32 %v1175, %v1179
    %v1186 = vadd.s32 %v1178, %v1184
    %vm1187 = vc.u32 %v1185, %v1181
    %v1188 = vsel %vm1187, 1, 0
    %v1189 = vadd.s32 %v1185, %v1181
    %v1190 = vadd.s32 %v1186, %v1188
    %v1191 = vadd.s32 %v1190, %v1180
    %v1192 = vadd.s32 %v1191, %v1182
    %v1193 = vand.u32 %v1170, 65535
    %v1194 = vshrl.u32 %v1170, 16
    %v1195 = vand.u32 %v1165, 65535
    %v1196 = vshrl.u32 %v1165, 16
    %v1197 = vmul.u32 %v1193, %v1195
    %v1198 = vmul.u32 %v1193, %v1196
    %v1199 = vmul.u32 %v1194, %v1195
    %v1200 = vmul.u32 %v1194, %v1196
    %v1201 = vshll.u32 %v1198, 16
    %v1202 = vshrl.u32 %v1198, 16
    %v1203 = vshll.u32 %v1199, 16
    %v1204 = vshrl.u32 %v1199, 16
    %vm1205 = vc.u32 %v1197, %v1201
    %v1206 = vsel %vm1205, 1, 0
    %v1207 = vadd.s32 %v1197, %v1201
    %v1208 = vadd.s32 %v1200, %v1206
    %vm1209 = vc.u32 %v1207, %v1203
    %v1210 = vsel %vm1209, 1, 0
    %v1211 = vadd.s32 %v1207, %v1203
    %v1212 = vadd.s32 %v1208, %v1210
    %v1213 = vadd.s32 %v1212, %v1202
    %v1214 = vadd.s32 %v1213, %v1204
    %v1215 = vmul.u32 %v1170, %v1161
    %v1216 = vadd.s32 %v1192, %v1211
    %vm1217 = vc.u32 %v1192, %v1211
    %v1218 = vadd.s32 %v1214, 1
    %v1219 = vsel %vm1217, %v1218, %v1214
    %v1220 = vadd.s32 %v1215, %v1219
    %v1221 = vadd.s32 %v1220, 536870912
    %v1222 = vshrl.u32 %v1221, 30
    %v1223 = vshll.u32 %v1222, 30
    %v1224 = vsub.s32 %v1220, %v1223
    %vm1225 = vcmp.lt.s32.totalorder %v1224, 0
    %v1226 = vsub.s32 0, %v1224
    %v1227 = vsel %vm1225, %v1226, %v1224
    %v1228 = vclz %v1227
    %v1229 = vsub.s32 %v1228, 2
    %vm1230 = vcmp.gt.s32.totalorder 0, %v1229
    %v1231 = vsel %vm1230, 0, %v1229
    %v1232 = vsub.s32 32, %v1231
    %v1233 = vshll.u32 %v1224, %v1231
    %v1234 = vshrl.u32 %v1216, %v1232
    %v1235 = vor.u32 %v1233, %v1234
    %v1236 = vsub.s32 4294967266, %v1231
    %v1237 = vadd.s32 %v1236, 127
    %v1238 = vshll.u32 %v1237, 23
    %v1239 = vor.u32 4788187, %v1238
    %v1240 = vand.u32 2147483647, %v1239
    %v1242 = vcvt.s32.f32 %v1235
    %v1243 = vmul.f32 %v1242, %v1240
    %v1244 = vxor.u32 %v1243, 2147483648
    %v1245 = vsel %vm1124, %v1244, %v1243
    %v1246 = vsub.s32 4, %v1222
    %v1247 = vsel %vm1124, %v1246, %v1222
    %v1248 = vsel %vm1123, %v190, %v1245
    %v1249 = vsel %vm1123, 0, %v1247
    %v1250 = vmul.f32 %v1248, %v1248
    %v1251 = vmul.f32 %v1250, -0.001358992
    %v1252 = vadd.f32 %v1251, 0.041655596
    %v1253 = vmul.f32 %v1250, %v1252
    %v1254 = vadd.f32 %v1253, -0.4999988
    %v1255 = vmul.f32 %v1250, %v1254
    %v1256 = vadd.f32 1.0, %v1255
    %v1257 = vmul.f32 %v1248, %v1248
    %v1258 = vmul.f32 %v1257, -0.00019511016
    %v1259 = vadd.f32 %v1258, 0.008332121
    %v1260 = vmul.f32 %v1257, %v1259
    %v1261 = vadd.f32 %v1260, -0.16666654
    %v1262 = vmul.f32 %v1257, %v1261
    %v1263 = vadd.f32 %v1262, 1.0
    %v1264 = vmul.f32 %v1263, %v1248
    %vm1265 = vweird.f32 %v190
    %v1266 = vadd.s32 %v1249, 3
    %v1267 = vand.u32 %v1266, 3
    %vm1268 = vcmp.lt.s32.totalorder %v1267, 2
    %vm1269 = vcmp.eq.s32.totalorder %v1267, 0
    %v1270 = vxor.u32 %v1264, 2147483648
    %v1271 = vsel %vm1269, %v1256, %v1270
    %vm1272 = vcmp.eq.s32.totalorder %v1267, 2
    %v1273 = vxor.u32 %v1256, 2147483648
    %v1274 = vsel %vm1272, %v1273, %v1264
    %v1275 = vsel %vm1268, %v1271, %v1274
    %v1276 = vsel %vm1265, nan, %v1275
    %v1277 = vand.u32 2147483647, %v191
    %vm1278 = vcmp.le.f32.partialorder %v1277, 0.7853982
    %vm1279 = vcmp.lt.s32.totalorder %v191, 0
    %v1280 = vand.u32 %v191, 2139095040
    %v1281 = vshrl.u32 %v1280, 23
    %v1282 = vsub.s32 %v1281, 127
    %v1283 = vand.u32 2147483647, %v191
    %v1284 = vand.u32 %v1283, 8388607
    %v1285 = vor.u32 %v1284, 8388608
    %v1286 = vsub.s32 0, %v1285
    %v1287 = vadd.s32 %v1282, 1
    %vm1288 = vcmp.gt.s32.totalorder %v1287, 0
    %v1289 = vsel %vm1288, %v1287, 0
    %v1290 = vshrl.u32 %v1289, 5
    %v1291 = vand.u32 %v1289, 31
    %v1292 = vsub.s32 32, %v1291
    %v1293 = vshrl.u32 683565275, %v1292
    %v1294 = vshll.u32 683565275, %v1291
    %v1295 = vshrl.u32 2475754826, %v1292
    %v1296 = vor.u32 %v1294, %v1295
    %v1297 = vshll.u32 2475754826, %v1291
    %v1298 = vshrl.u32 2131351028, %v1292
    %v1299 = vor.u32 %v1297, %v1298
    %v1300 = vshll.u32 2131351028, %v1291
    %v1301 = vshrl.u32 2102212464, %v1292
    %v1302 = vor.u32 %v1300, %v1301
    %v1303 = vshll.u32 2102212464, %v1291
    %v1304 = vshrl.u32 920167782, %v1292
    %v1305 = vor.u32 %v1303, %v1304
    %v1306 = vshll.u32 920167782, %v1291
    %v1307 = vshrl.u32 1326507024, %v1292
    %v1308 = vor.u32 %v1306, %v1307
    %vm1309 = vcmp.lt.s32.totalorder %v1290, 1
    %vm1310 = vcmp.lt.s32.totalorder %v1290, 2
    %vm1311 = vcmp.lt.s32.totalorder %v1290, 3
    %vm1312 = vcmp.lt.s32.totalorder %v1290, 4
    %v1313 = vsel %vm1309, %v1293, %v1296
    %v1314 = vsel %vm1312, %v1302, 2102212464
    %v1315 = vsel %vm1311, %v1299, %v1314
    %v1316 = vsel %vm1310, %v1313, %v1315
    %v1317 = vsel %vm1309, %v1296, %v1299
    %v1318 = vsel %vm1312, %v1305, 920167782
    %v1319 = vsel %vm1311, %v1302, %v1318
    %v1320 = vsel %vm1310, %v1317, %v1319
    %v1321 = vsel %vm1309, %v1299, %v1302
    %v1322 = vsel %vm1312, %v1308, 1326507024
    %v1323 = vsel %vm1311, %v1305, %v1322
    %v1324 = vsel %vm1310, %v1321, %v1323
    %v1325 = vshll.u32 %v1285, 8
    %v1326 = vand.u32 %v1325, 65535
    %v1327 = vshrl.u32 %v1325, 16
    %v1328 = vand.u32 %v1324, 65535
    %v1329 = vshrl.u32 %v1324, 16
    %v1330 = vmul.u32 %v1326, %v1328
    %v1331 = vmul.u32 %v1326, %v1329
    %v1332 = vmul.u32 %v1327, %v1328
    %v1333 = vmul.u32 %v1327, %v1329
    %v1334 = vshll.u32 %v1331, 16
    %v1335 = vshrl.u32 %v1331, 16
    %v1336 = vshll.u32 %v1332, 16
    %v1337 = vshrl.u32 %v1332, 16
    %vm1338 = vc.u32 %v1330, %v1334
    %v1339 = vsel %vm1338, 1, 0
    %v1340 = vadd.s32 %v1330, %v1334
    %v1341 = vadd.s32 %v1333, %v1339
    %vm1342 = vc.u32 %v1340, %v1336
    %v1343 = vsel %vm1342, 1, 0
    %v1344 = vadd.s32 %v1340, %v1336
    %v1345 = vadd.s32 %v1341, %v1343
    %v1346 = vadd.s32 %v1345, %v1335
    %v1347 = vadd.s32 %v1346, %v1337
    %v1348 = vand.u32 %v1325, 65535
    %v1349 = vshrl.u32 %v1325, 16
    %v1350 = vand.u32 %v1320, 65535
    %v1351 = vshrl.u32 %v1320, 16
    %v1352 = vmul.u32 %v1348, %v1350
    %v1353 = vmul.u32 %v1348, %v1351
    %v1354 = vmul.u32 %v1349, %v1350
    %v1355 = vmul.u32 %v1349, %v1351
    %v1356 = vshll.u32 %v1353, 16
    %v1357 = vshrl.u32 %v1353, 16
    %v1358 = vshll.u32 %v1354, 16
    %v1359 = vshrl.u32 %v1354, 16
    %vm1360 = vc.u32 %v1352, %v1356
    %v1361 = vsel %vm1360, 1, 0
    %v1362 = vadd.s32 %v1352, %v1356
    %v1363 = vadd.s32 %v1355, %v1361
    %vm1364 = vc.u32 %v1362, %v1358
    %v1365 = vsel %vm1364, 1, 0
    %v1366 = vadd.s32 %v1362, %v1358
    %v1367 = vadd.s32 %v1363, %v1365
    %v1368 = vadd.s32 %v1367, %v1357
    %v1369 = vadd.s32 %v1368, %v1359
    %v1370 = vmul.u32 %v1325, %v1316
    %v1371 = vadd.s32 %v1347, %v1366
    %vm1372 = vc.u32 %v1347, %v1366
    %v1373 = vadd.s32 %v1369, 1
    %v1374 = vsel %vm1372, %v1373, %v1369
    %v1375 = vadd.s32 %v1370, %v1374
    %v1376 = vadd.s32 %v1375, 536870912
    %v1377 = vshrl.u32 %v1376, 30
    %v1378 = vshll.u32 %v1377, 30
    %v1379 = vsub.s32 %v1375, %v1378
    %vm1380 = vcmp.lt.s32.totalorder %v1379, 0
    %v1381 = vsub.s32 0, %v1379
    %v1382 = vsel %vm1380, %v1381, %v1379
    %v1383 = vclz %v1382
    %v1384 = vsub.s32 %v1383, 2
    %vm1385 = vcmp.gt.s32.totalorder 0, %v1384
    %v1386 = vsel %vm1385, 0, %v1384
    %v1387 = vsub.s32 32, %v1386
    %v1388 = vshll.u32 %v1379, %v1386
    %v1389 = vshrl.u32 %v1371, %v1387
    %v1390 = vor.u32 %v1388, %v1389
    %v1391 = vsub.s32 4294967266, %v1386
    %v1392 = vadd.s32 %v1391, 127
    %v1393 = vshll.u32 %v1392, 23
    %v1394 = vor.u32 4788187, %v1393
    %v1395 = vand.u32 2147483647, %v1394
    %v1397 = vcvt.s32.f32 %v1390
    %v1398 = vmul.f32 %v1397, %v1395
    %v1399 = vxor.u32 %v1398, 2147483648
    %v1400 = vsel %vm1279, %v1399, %v1398
    %v1401 = vsub.s32 4, %v1377
    %v1402 = vsel %vm1279, %v1401, %v1377
    %v1403 = vsel %vm1278, %v191, %v1400
    %v1404 = vsel %vm1278, 0, %v1402
    %v1405 = vmul.f32 %v1403, %v1403
    %v1406 = vmul.f32 %v1405, -0.001358992
    %v1407 = vadd.f32 %v1406, 0.041655596
    %v1408 = vmul.f32 %v1405, %v1407
    %v1409 = vadd.f32 %v1408, -0.4999988
    %v1410 = vmul.f32 %v1405, %v1409
    %v1411 = vadd.f32 1.0, %v1410
    %v1412 = vmul.f32 %v1403, %v1403
    %v1413 = vmul.f32 %v1412, -0.00019511016
    %v1414 = vadd.f32 %v1413, 0.008332121
    %v1415 = vmul.f32 %v1412, %v1414
    %v1416 = vadd.f32 %v1415, -0.16666654
    %v1417 = vmul.f32 %v1412, %v1416
    %v1418 = vadd.f32 %v1417, 1.0
    %v1419 = vmul.f32 %v1418, %v1403
    %vm1420 = vweird.f32 %v191
    %v1421 = vadd.s32 %v1404, 3
    %v1422 = vand.u32 %v1421, 3
    %vm1423 = vcmp.lt.s32.totalorder %v1422, 2
    %vm1424 = vcmp.eq.s32.totalorder %v1422, 0
    %v1425 = vxor.u32 %v1419, 2147483648
    %v1426 = vsel %vm1424, %v1411, %v1425
    %vm1427 = vcmp.eq.s32.totalorder %v1422, 2
    %v1428 = vxor.u32 %v1411, 2147483648
    %v1429 = vsel %vm1427, %v1428, %v1419
    %v1430 = vsel %vm1423, %v1426, %v1429
    %v1431 = vsel %vm1420, nan, %v1430
    %v1432 = vld [vmem:[%s4] sm:$0xff]
    %v1433 = vld [vmem:[%s4 + $0x8] sm:$0xff]
    %v1434 = vld [vmem:[%s5] sm:$0xff]
    %v1435 = vld [vmem:[%s5 + $0x8] sm:$0xff]
    %1437 = vset.pattern.permute.xlu0 0
    %1438 = vperm.xlu0 %1437, %v1434
    %v1439 = vpop.permute.xlu0 %1438
    %1442 = vset.pattern.permute.xlu0 0
    %1443 = vperm.xlu0 %1442, %v1435
    %v1444 = vpop.permute.xlu0 %1443
    %vm1446 = vcmask 130048
    %v1448 = vsel %vm1446, %v1432, 0
    %v1451 = vsel %vm1446, %v1433, 0
    %1453 = vmatpush.msra.mxu0 0.0
    %1454 = vmatpush.msra.mxu0 0.0
    %1455 = vmatpush.msra.mxu0 0.0
    %1456 = vmatpush.msra.mxu0 0.0
    %1457 = vmatpush.msra.mxu0 0.0
    %1458 = vmatpush.msra.mxu0 0.0
    %1459 = vmatpush.msra.mxu0 0.0
    %1460 = vmatpush.msra.mxu0 0.0
    %1461 = vmatpush.msra.mxu0 0.0
    %1462 = vmatpush.msra.mxu0 0.0
    %1463 = vmatpush.msra.mxu0 0.0
    %1464 = vmatpush.msra.mxu0 0.0
    %1465 = vmatpush.msra.mxu0 0.0
    %1466 = vmatpush.msra.mxu0 0.0
    %1467 = vmatpush.msra.mxu0 %v966
    %1468 = vmatpush.msra.mxu0 %v346
    %1469 = vmatmul.f32.gmra.mxu0 %v1448
    %v1470 = vpop.f32.mrf.mxu0
    %v1471 = vadd.f32 %v1439, %v1470
    %1472 = vmatmul.f32.gmra.mxu0 %v1451
    %v1473 = vpop.f32.mrf.mxu0
    %v1474 = vadd.f32 %v1444, %v1473
    %1475 = vdwg.mxu0
    %1476 = vmatpush.msra.mxu0 0.0
    %1477 = vmatpush.msra.mxu0 0.0
    %1478 = vmatpush.msra.mxu0 0.0
    %1479 = vmatpush.msra.mxu0 0.0
    %1480 = vmatpush.msra.mxu0 0.0
    %1481 = vmatpush.msra.mxu0 0.0
    %1482 = vmatpush.msra.mxu0 0.0
    %1483 = vmatpush.msra.mxu0 0.0
    %1484 = vmatpush.msra.mxu0 0.0
    %1485 = vmatpush.msra.mxu0 0.0
    %1486 = vmatpush.msra.mxu0 0.0
    %1487 = vmatpush.msra.mxu0 0.0
    %1488 = vmatpush.msra.mxu0 0.0
    %1489 = vmatpush.msra.mxu0 0.0
    %1490 = vmatpush.msra.mxu0 %v1121
    %1491 = vmatpush.msra.mxu0 %v501
    %1492 = vmatmul.f32.gmra.mxu0 %v1448
    %v1493 = vpop.f32.mrf.mxu0
    %v1494 = vadd.f32 %v1439, %v1493
    %1495 = vmatmul.f32.gmra.mxu0 %v1451
    %v1496 = vpop.f32.mrf.mxu0
    %v1497 = vadd.f32 %v1444, %v1496
    %1498 = vdwg.mxu0
    %1499 = vmatpush.msra.mxu0 0.0
    %1500 = vmatpush.msra.mxu0 0.0
    %1501 = vmatpush.msra.mxu0 0.0
    %1502 = vmatpush.msra.mxu0 0.0
    %1503 = vmatpush.msra.mxu0 0.0
    %1504 = vmatpush.msra.mxu0 0.0
    %1505 = vmatpush.msra.mxu0 0.0
    %1506 = vmatpush.msra.mxu0 0.0
    %1507 = vmatpush.msra.mxu0 0.0
    %1508 = vmatpush.msra.mxu0 0.0
    %1509 = vmatpush.msra.mxu0 0.0
    %1510 = vmatpush.msra.mxu0 0.0
    %1511 = vmatpush.msra.mxu0 0.0
    %1512 = vmatpush.msra.mxu0 0.0
    %1513 = vmatpush.msra.mxu0 %v1276
    %1514 = vmatpush.msra.mxu0 %v656
    %1515 = vmatmul.f32.gmra.mxu0 %v1448
    %v1516 = vpop.f32.mrf.mxu0
    %v1517 = vadd.f32 %v1439, %v1516
    %1518 = vmatmul.f32.gmra.mxu0 %v1451
    %v1519 = vpop.f32.mrf.mxu0
    %v1520 = vadd.f32 %v1444, %v1519
    %1521 = vdwg.mxu0
    %1522 = vmatpush.msra.mxu0 0.0
    %1523 = vmatpush.msra.mxu0 0.0
    %1524 = vmatpush.msra.mxu0 0.0
    %1525 = vmatpush.msra.mxu0 0.0
    %1526 = vmatpush.msra.mxu0 0.0
    %1527 = vmatpush.msra.mxu0 0.0
    %1528 = vmatpush.msra.mxu0 0.0
    %1529 = vmatpush.msra.mxu0 0.0
    %1530 = vmatpush.msra.mxu0 0.0
    %1531 = vmatpush.msra.mxu0 0.0
    %1532 = vmatpush.msra.mxu0 0.0
    %1533 = vmatpush.msra.mxu0 0.0
    %1534 = vmatpush.msra.mxu0 0.0
    %1535 = vmatpush.msra.mxu0 0.0
    %1536 = vmatpush.msra.mxu0 %v1431
    %1537 = vmatpush.msra.mxu0 %v811
    %1538 = vmatmul.f32.gmra.mxu0 %v1448
    %v1539 = vpop.f32.mrf.mxu0
    %v1540 = vadd.f32 %v1439, %v1539
    %1541 = vmatmul.f32.gmra.mxu0 %v1451
    %v1542 = vpop.f32.mrf.mxu0
    %v1543 = vadd.f32 %v1444, %v1542
    %1544 = vdwg.mxu0
    %v1545 = vmul.f32 %v177, %v1471
    %v1546 = vmul.f32 %v177, %v1494
    %v1547 = vmul.f32 %v177, %v1517
    %v1548 = vmul.f32 %v177, %v1540
    %v1549 = vmul.f32 %v182, %v1474
    %v1550 = vmul.f32 %v182, %v1497
    %v1551 = vmul.f32 %v182, %v1520
    %v1552 = vmul.f32 %v182, %v1543
    %v1553 = vand.u32 2147483647, %v1545
    %vm1554 = vcmp.le.f32.partialorder %v1553, 0.7853982
    %vm1555 = vcmp.lt.s32.totalorder %v1545, 0
    %v1556 = vand.u32 %v1545, 2139095040
    %v1557 = vshrl.u32 %v1556, 23
    %v1558 = vsub.s32 %v1557, 127
    %v1559 = vand.u32 2147483647, %v1545
    %v1560 = vand.u32 %v1559, 8388607
    %v1561 = vor.u32 %v1560, 8388608
    %v1562 = vsub.s32 0, %v1561
    %v1563 = vadd.s32 %v1558, 1
    %vm1564 = vcmp.gt.s32.totalorder %v1563, 0
    %v1565 = vsel %vm1564, %v1563, 0
    %v1566 = vshrl.u32 %v1565, 5
    %v1567 = vand.u32 %v1565, 31
    %v1568 = vsub.s32 32, %v1567
    %v1569 = vshrl.u32 683565275, %v1568
    %v1570 = vshll.u32 683565275, %v1567
    %v1571 = vshrl.u32 2475754826, %v1568
    %v1572 = vor.u32 %v1570, %v1571
    %v1573 = vshll.u32 2475754826, %v1567
    %v1574 = vshrl.u32 2131351028, %v1568
    %v1575 = vor.u32 %v1573, %v1574
    %v1576 = vshll.u32 2131351028, %v1567
    %v1577 = vshrl.u32 2102212464, %v1568
    %v1578 = vor.u32 %v1576, %v1577
    %v1579 = vshll.u32 2102212464, %v1567
    %v1580 = vshrl.u32 920167782, %v1568
    %v1581 = vor.u32 %v1579, %v1580
    %v1582 = vshll.u32 920167782, %v1567
    %v1583 = vshrl.u32 1326507024, %v1568
    %v1584 = vor.u32 %v1582, %v1583
    %vm1585 = vcmp.lt.s32.totalorder %v1566, 1
    %vm1586 = vcmp.lt.s32.totalorder %v1566, 2
    %vm1587 = vcmp.lt.s32.totalorder %v1566, 3
    %vm1588 = vcmp.lt.s32.totalorder %v1566, 4
    %v1589 = vsel %vm1585, %v1569, %v1572
    %v1590 = vsel %vm1588, %v1578, 2102212464
    %v1591 = vsel %vm1587, %v1575, %v1590
    %v1592 = vsel %vm1586, %v1589, %v1591
    %v1593 = vsel %vm1585, %v1572, %v1575
    %v1594 = vsel %vm1588, %v1581, 920167782
    %v1595 = vsel %vm1587, %v1578, %v1594
    %v1596 = vsel %vm1586, %v1593, %v1595
    %v1597 = vsel %vm1585, %v1575, %v1578
    %v1598 = vsel %vm1588, %v1584, 1326507024
    %v1599 = vsel %vm1587, %v1581, %v1598
    %v1600 = vsel %vm1586, %v1597, %v1599
    %v1601 = vshll.u32 %v1561, 8
    %v1602 = vand.u32 %v1601, 65535
    %v1603 = vshrl.u32 %v1601, 16
    %v1604 = vand.u32 %v1600, 65535
    %v1605 = vshrl.u32 %v1600, 16
    %v1606 = vmul.u32 %v1602, %v1604
    %v1607 = vmul.u32 %v1602, %v1605
    %v1608 = vmul.u32 %v1603, %v1604
    %v1609 = vmul.u32 %v1603, %v1605
    %v1610 = vshll.u32 %v1607, 16
    %v1611 = vshrl.u32 %v1607, 16
    %v1612 = vshll.u32 %v1608, 16
    %v1613 = vshrl.u32 %v1608, 16
    %vm1614 = vc.u32 %v1606, %v1610
    %v1615 = vsel %vm1614, 1, 0
    %v1616 = vadd.s32 %v1606, %v1610
    %v1617 = vadd.s32 %v1609, %v1615
    %vm1618 = vc.u32 %v1616, %v1612
    %v1619 = vsel %vm1618, 1, 0
    %v1620 = vadd.s32 %v1616, %v1612
    %v1621 = vadd.s32 %v1617, %v1619
    %v1622 = vadd.s32 %v1621, %v1611
    %v1623 = vadd.s32 %v1622, %v1613
    %v1624 = vand.u32 %v1601, 65535
    %v1625 = vshrl.u32 %v1601, 16
    %v1626 = vand.u32 %v1596, 65535
    %v1627 = vshrl.u32 %v1596, 16
    %v1628 = vmul.u32 %v1624, %v1626
    %v1629 = vmul.u32 %v1624, %v1627
    %v1630 = vmul.u32 %v1625, %v1626
    %v1631 = vmul.u32 %v1625, %v1627
    %v1632 = vshll.u32 %v1629, 16
    %v1633 = vshrl.u32 %v1629, 16
    %v1634 = vshll.u32 %v1630, 16
    %v1635 = vshrl.u32 %v1630, 16
    %vm1636 = vc.u32 %v1628, %v1632
    %v1637 = vsel %vm1636, 1, 0
    %v1638 = vadd.s32 %v1628, %v1632
    %v1639 = vadd.s32 %v1631, %v1637
    %vm1640 = vc.u32 %v1638, %v1634
    %v1641 = vsel %vm1640, 1, 0
    %v1642 = vadd.s32 %v1638, %v1634
    %v1643 = vadd.s32 %v1639, %v1641
    %v1644 = vadd.s32 %v1643, %v1633
    %v1645 = vadd.s32 %v1644, %v1635
    %v1646 = vmul.u32 %v1601, %v1592
    %v1647 = vadd.s32 %v1623, %v1642
    %vm1648 = vc.u32 %v1623, %v1642
    %v1649 = vadd.s32 %v1645, 1
    %v1650 = vsel %vm1648, %v1649, %v1645
    %v1651 = vadd.s32 %v1646, %v1650
    %v1652 = vadd.s32 %v1651, 536870912
    %v1653 = vshrl.u32 %v1652, 30
    %v1654 = vshll.u32 %v1653, 30
    %v1655 = vsub.s32 %v1651, %v1654
    %vm1656 = vcmp.lt.s32.totalorder %v1655, 0
    %v1657 = vsub.s32 0, %v1655
    %v1658 = vsel %vm1656, %v1657, %v1655
    %v1659 = vclz %v1658
    %v1660 = vsub.s32 %v1659, 2
    %vm1661 = vcmp.gt.s32.totalorder 0, %v1660
    %v1662 = vsel %vm1661, 0, %v1660
    %v1663 = vsub.s32 32, %v1662
    %v1664 = vshll.u32 %v1655, %v1662
    %v1665 = vshrl.u32 %v1647, %v1663
    %v1666 = vor.u32 %v1664, %v1665
    %v1667 = vsub.s32 4294967266, %v1662
    %v1668 = vadd.s32 %v1667, 127
    %v1669 = vshll.u32 %v1668, 23
    %v1670 = vor.u32 4788187, %v1669
    %v1671 = vand.u32 2147483647, %v1670
    %v1673 = vcvt.s32.f32 %v1666
    %v1674 = vmul.f32 %v1673, %v1671
    %v1675 = vxor.u32 %v1674, 2147483648
    %v1676 = vsel %vm1555, %v1675, %v1674
    %v1677 = vsub.s32 4, %v1653
    %v1678 = vsel %vm1555, %v1677, %v1653
    %v1679 = vsel %vm1554, %v1545, %v1676
    %v1680 = vsel %vm1554, 0, %v1678
    %v1681 = vmul.f32 %v1679, %v1679
    %v1682 = vmul.f32 %v1681, -0.001358992
    %v1683 = vadd.f32 %v1682, 0.041655596
    %v1684 = vmul.f32 %v1681, %v1683
    %v1685 = vadd.f32 %v1684, -0.4999988
    %v1686 = vmul.f32 %v1681, %v1685
    %v1687 = vadd.f32 1.0, %v1686
    %v1688 = vmul.f32 %v1679, %v1679
    %v1689 = vmul.f32 %v1688, -0.00019511016
    %v1690 = vadd.f32 %v1689, 0.008332121
    %v1691 = vmul.f32 %v1688, %v1690
    %v1692 = vadd.f32 %v1691, -0.16666654
    %v1693 = vmul.f32 %v1688, %v1692
    %v1694 = vadd.f32 %v1693, 1.0
    %v1695 = vmul.f32 %v1694, %v1679
    %vm1696 = vweird.f32 %v1545
    %v1697 = vadd.s32 %v1680, 3
    %v1698 = vand.u32 %v1697, 3
    %vm1699 = vcmp.lt.s32.totalorder %v1698, 2
    %vm1700 = vcmp.eq.s32.totalorder %v1698, 0
    %v1701 = vxor.u32 %v1695, 2147483648
    %v1702 = vsel %vm1700, %v1687, %v1701
    %vm1703 = vcmp.eq.s32.totalorder %v1698, 2
    %v1704 = vxor.u32 %v1687, 2147483648
    %v1705 = vsel %vm1703, %v1704, %v1695
    %v1706 = vsel %vm1699, %v1702, %v1705
    %v1707 = vsel %vm1696, nan, %v1706
    %v1708 = vand.u32 2147483647, %v1546
    %vm1709 = vcmp.le.f32.partialorder %v1708, 0.7853982
    %vm1710 = vcmp.lt.s32.totalorder %v1546, 0
    %v1711 = vand.u32 %v1546, 2139095040
    %v1712 = vshrl.u32 %v1711, 23
    %v1713 = vsub.s32 %v1712, 127
    %v1714 = vand.u32 2147483647, %v1546
    %v1715 = vand.u32 %v1714, 8388607
    %v1716 = vor.u32 %v1715, 8388608
    %v1717 = vsub.s32 0, %v1716
    %v1718 = vadd.s32 %v1713, 1
    %vm1719 = vcmp.gt.s32.totalorder %v1718, 0
    %v1720 = vsel %vm1719, %v1718, 0
    %v1721 = vshrl.u32 %v1720, 5
    %v1722 = vand.u32 %v1720, 31
    %v1723 = vsub.s32 32, %v1722
    %v1724 = vshrl.u32 683565275, %v1723
    %v1725 = vshll.u32 683565275, %v1722
    %v1726 = vshrl.u32 2475754826, %v1723
    %v1727 = vor.u32 %v1725, %v1726
    %v1728 = vshll.u32 2475754826, %v1722
    %v1729 = vshrl.u32 2131351028, %v1723
    %v1730 = vor.u32 %v1728, %v1729
    %v1731 = vshll.u32 2131351028, %v1722
    %v1732 = vshrl.u32 2102212464, %v1723
    %v1733 = vor.u32 %v1731, %v1732
    %v1734 = vshll.u32 2102212464, %v1722
    %v1735 = vshrl.u32 920167782, %v1723
    %v1736 = vor.u32 %v1734, %v1735
    %v1737 = vshll.u32 920167782, %v1722
    %v1738 = vshrl.u32 1326507024, %v1723
    %v1739 = vor.u32 %v1737, %v1738
    %vm1740 = vcmp.lt.s32.totalorder %v1721, 1
    %vm1741 = vcmp.lt.s32.totalorder %v1721, 2
    %vm1742 = vcmp.lt.s32.totalorder %v1721, 3
    %vm1743 = vcmp.lt.s32.totalorder %v1721, 4
    %v1744 = vsel %vm1740, %v1724, %v1727
    %v1745 = vsel %vm1743, %v1733, 2102212464
    %v1746 = vsel %vm1742, %v1730, %v1745
    %v1747 = vsel %vm1741, %v1744, %v1746
    %v1748 = vsel %vm1740, %v1727, %v1730
    %v1749 = vsel %vm1743, %v1736, 920167782
    %v1750 = vsel %vm1742, %v1733, %v1749
    %v1751 = vsel %vm1741, %v1748, %v1750
    %v1752 = vsel %vm1740, %v1730, %v1733
    %v1753 = vsel %vm1743, %v1739, 1326507024
    %v1754 = vsel %vm1742, %v1736, %v1753
    %v1755 = vsel %vm1741, %v1752, %v1754
    %v1756 = vshll.u32 %v1716, 8
    %v1757 = vand.u32 %v1756, 65535
    %v1758 = vshrl.u32 %v1756, 16
    %v1759 = vand.u32 %v1755, 65535
    %v1760 = vshrl.u32 %v1755, 16
    %v1761 = vmul.u32 %v1757, %v1759
    %v1762 = vmul.u32 %v1757, %v1760
    %v1763 = vmul.u32 %v1758, %v1759
    %v1764 = vmul.u32 %v1758, %v1760
    %v1765 = vshll.u32 %v1762, 16
    %v1766 = vshrl.u32 %v1762, 16
    %v1767 = vshll.u32 %v1763, 16
    %v1768 = vshrl.u32 %v1763, 16
    %vm1769 = vc.u32 %v1761, %v1765
    %v1770 = vsel %vm1769, 1, 0
    %v1771 = vadd.s32 %v1761, %v1765
    %v1772 = vadd.s32 %v1764, %v1770
    %vm1773 = vc.u32 %v1771, %v1767
    %v1774 = vsel %vm1773, 1, 0
    %v1775 = vadd.s32 %v1771, %v1767
    %v1776 = vadd.s32 %v1772, %v1774
    %v1777 = vadd.s32 %v1776, %v1766
    %v1778 = vadd.s32 %v1777, %v1768
    %v1779 = vand.u32 %v1756, 65535
    %v1780 = vshrl.u32 %v1756, 16
    %v1781 = vand.u32 %v1751, 65535
    %v1782 = vshrl.u32 %v1751, 16
    %v1783 = vmul.u32 %v1779, %v1781
    %v1784 = vmul.u32 %v1779, %v1782
    %v1785 = vmul.u32 %v1780, %v1781
    %v1786 = vmul.u32 %v1780, %v1782
    %v1787 = vshll.u32 %v1784, 16
    %v1788 = vshrl.u32 %v1784, 16
    %v1789 = vshll.u32 %v1785, 16
    %v1790 = vshrl.u32 %v1785, 16
    %vm1791 = vc.u32 %v1783, %v1787
    %v1792 = vsel %vm1791, 1, 0
    %v1793 = vadd.s32 %v1783, %v1787
    %v1794 = vadd.s32 %v1786, %v1792
    %vm1795 = vc.u32 %v1793, %v1789
    %v1796 = vsel %vm1795, 1, 0
    %v1797 = vadd.s32 %v1793, %v1789
    %v1798 = vadd.s32 %v1794, %v1796
    %v1799 = vadd.s32 %v1798, %v1788
    %v1800 = vadd.s32 %v1799, %v1790
    %v1801 = vmul.u32 %v1756, %v1747
    %v1802 = vadd.s32 %v1778, %v1797
    %vm1803 = vc.u32 %v1778, %v1797
    %v1804 = vadd.s32 %v1800, 1
    %v1805 = vsel %vm1803, %v1804, %v1800
    %v1806 = vadd.s32 %v1801, %v1805
    %v1807 = vadd.s32 %v1806, 536870912
    %v1808 = vshrl.u32 %v1807, 30
    %v1809 = vshll.u32 %v1808, 30
    %v1810 = vsub.s32 %v1806, %v1809
    %vm1811 = vcmp.lt.s32.totalorder %v1810, 0
    %v1812 = vsub.s32 0, %v1810
    %v1813 = vsel %vm1811, %v1812, %v1810
    %v1814 = vclz %v1813
    %v1815 = vsub.s32 %v1814, 2
    %vm1816 = vcmp.gt.s32.totalorder 0, %v1815
    %v1817 = vsel %vm1816, 0, %v1815
    %v1818 = vsub.s32 32, %v1817
    %v1819 = vshll.u32 %v1810, %v1817
    %v1820 = vshrl.u32 %v1802, %v1818
    %v1821 = vor.u32 %v1819, %v1820
    %v1822 = vsub.s32 4294967266, %v1817
    %v1823 = vadd.s32 %v1822, 127
    %v1824 = vshll.u32 %v1823, 23
    %v1825 = vor.u32 4788187, %v1824
    %v1826 = vand.u32 2147483647, %v1825
    %v1828 = vcvt.s32.f32 %v1821
    %v1829 = vmul.f32 %v1828, %v1826
    %v1830 = vxor.u32 %v1829, 2147483648
    %v1831 = vsel %vm1710, %v1830, %v1829
    %v1832 = vsub.s32 4, %v1808
    %v1833 = vsel %vm1710, %v1832, %v1808
    %v1834 = vsel %vm1709, %v1546, %v1831
    %v1835 = vsel %vm1709, 0, %v1833
    %v1836 = vmul.f32 %v1834, %v1834
    %v1837 = vmul.f32 %v1836, -0.001358992
    %v1838 = vadd.f32 %v1837, 0.041655596
    %v1839 = vmul.f32 %v1836, %v1838
    %v1840 = vadd.f32 %v1839, -0.4999988
    %v1841 = vmul.f32 %v1836, %v1840
    %v1842 = vadd.f32 1.0, %v1841
    %v1843 = vmul.f32 %v1834, %v1834
    %v1844 = vmul.f32 %v1843, -0.00019511016
    %v1845 = vadd.f32 %v1844, 0.008332121
    %v1846 = vmul.f32 %v1843, %v1845
    %v1847 = vadd.f32 %v1846, -0.16666654
    %v1848 = vmul.f32 %v1843, %v1847
    %v1849 = vadd.f32 %v1848, 1.0
    %v1850 = vmul.f32 %v1849, %v1834
    %vm1851 = vweird.f32 %v1546
    %v1852 = vadd.s32 %v1835, 3
    %v1853 = vand.u32 %v1852, 3
    %vm1854 = vcmp.lt.s32.totalorder %v1853, 2
    %vm1855 = vcmp.eq.s32.totalorder %v1853, 0
    %v1856 = vxor.u32 %v1850, 2147483648
    %v1857 = vsel %vm1855, %v1842, %v1856
    %vm1858 = vcmp.eq.s32.totalorder %v1853, 2
    %v1859 = vxor.u32 %v1842, 2147483648
    %v1860 = vsel %vm1858, %v1859, %v1850
    %v1861 = vsel %vm1854, %v1857, %v1860
    %v1862 = vsel %vm1851, nan, %v1861
    %v1863 = vand.u32 2147483647, %v1547
    %vm1864 = vcmp.le.f32.partialorder %v1863, 0.7853982
    %vm1865 = vcmp.lt.s32.totalorder %v1547, 0
    %v1866 = vand.u32 %v1547, 2139095040
    %v1867 = vshrl.u32 %v1866, 23
    %v1868 = vsub.s32 %v1867, 127
    %v1869 = vand.u32 2147483647, %v1547
    %v1870 = vand.u32 %v1869, 8388607
    %v1871 = vor.u32 %v1870, 8388608
    %v1872 = vsub.s32 0, %v1871
    %v1873 = vadd.s32 %v1868, 1
    %vm1874 = vcmp.gt.s32.totalorder %v1873, 0
    %v1875 = vsel %vm1874, %v1873, 0
    %v1876 = vshrl.u32 %v1875, 5
    %v1877 = vand.u32 %v1875, 31
    %v1878 = vsub.s32 32, %v1877
    %v1879 = vshrl.u32 683565275, %v1878
    %v1880 = vshll.u32 683565275, %v1877
    %v1881 = vshrl.u32 2475754826, %v1878
    %v1882 = vor.u32 %v1880, %v1881
    %v1883 = vshll.u32 2475754826, %v1877
    %v1884 = vshrl.u32 2131351028, %v1878
    %v1885 = vor.u32 %v1883, %v1884
    %v1886 = vshll.u32 2131351028, %v1877
    %v1887 = vshrl.u32 2102212464, %v1878
    %v1888 = vor.u32 %v1886, %v1887
    %v1889 = vshll.u32 2102212464, %v1877
    %v1890 = vshrl.u32 920167782, %v1878
    %v1891 = vor.u32 %v1889, %v1890
    %v1892 = vshll.u32 920167782, %v1877
    %v1893 = vshrl.u32 1326507024, %v1878
    %v1894 = vor.u32 %v1892, %v1893
    %vm1895 = vcmp.lt.s32.totalorder %v1876, 1
    %vm1896 = vcmp.lt.s32.totalorder %v1876, 2
    %vm1897 = vcmp.lt.s32.totalorder %v1876, 3
    %vm1898 = vcmp.lt.s32.totalorder %v1876, 4
    %v1899 = vsel %vm1895, %v1879, %v1882
    %v1900 = vsel %vm1898, %v1888, 2102212464
    %v1901 = vsel %vm1897, %v1885, %v1900
    %v1902 = vsel %vm1896, %v1899, %v1901
    %v1903 = vsel %vm1895, %v1882, %v1885
    %v1904 = vsel %vm1898, %v1891, 920167782
    %v1905 = vsel %vm1897, %v1888, %v1904
    %v1906 = vsel %vm1896, %v1903, %v1905
    %v1907 = vsel %vm1895, %v1885, %v1888
    %v1908 = vsel %vm1898, %v1894, 1326507024
    %v1909 = vsel %vm1897, %v1891, %v1908
    %v1910 = vsel %vm1896, %v1907, %v1909
    %v1911 = vshll.u32 %v1871, 8
    %v1912 = vand.u32 %v1911, 65535
    %v1913 = vshrl.u32 %v1911, 16
    %v1914 = vand.u32 %v1910, 65535
    %v1915 = vshrl.u32 %v1910, 16
    %v1916 = vmul.u32 %v1912, %v1914
    %v1917 = vmul.u32 %v1912, %v1915
    %v1918 = vmul.u32 %v1913, %v1914
    %v1919 = vmul.u32 %v1913, %v1915
    %v1920 = vshll.u32 %v1917, 16
    %v1921 = vshrl.u32 %v1917, 16
    %v1922 = vshll.u32 %v1918, 16
    %v1923 = vshrl.u32 %v1918, 16
    %vm1924 = vc.u32 %v1916, %v1920
    %v1925 = vsel %vm1924, 1, 0
    %v1926 = vadd.s32 %v1916, %v1920
    %v1927 = vadd.s32 %v1919, %v1925
    %vm1928 = vc.u32 %v1926, %v1922
    %v1929 = vsel %vm1928, 1, 0
    %v1930 = vadd.s32 %v1926, %v1922
    %v1931 = vadd.s32 %v1927, %v1929
    %v1932 = vadd.s32 %v1931, %v1921
    %v1933 = vadd.s32 %v1932, %v1923
    %v1934 = vand.u32 %v1911, 65535
    %v1935 = vshrl.u32 %v1911, 16
    %v1936 = vand.u32 %v1906, 65535
    %v1937 = vshrl.u32 %v1906, 16
    %v1938 = vmul.u32 %v1934, %v1936
    %v1939 = vmul.u32 %v1934, %v1937
    %v1940 = vmul.u32 %v1935, %v1936
    %v1941 = vmul.u32 %v1935, %v1937
    %v1942 = vshll.u32 %v1939, 16
    %v1943 = vshrl.u32 %v1939, 16
    %v1944 = vshll.u32 %v1940, 16
    %v1945 = vshrl.u32 %v1940, 16
    %vm1946 = vc.u32 %v1938, %v1942
    %v1947 = vsel %vm1946, 1, 0
    %v1948 = vadd.s32 %v1938, %v1942
    %v1949 = vadd.s32 %v1941, %v1947
    %vm1950 = vc.u32 %v1948, %v1944
    %v1951 = vsel %vm1950, 1, 0
    %v1952 = vadd.s32 %v1948, %v1944
    %v1953 = vadd.s32 %v1949, %v1951
    %v1954 = vadd.s32 %v1953, %v1943
    %v1955 = vadd.s32 %v1954, %v1945
    %v1956 = vmul.u32 %v1911, %v1902
    %v1957 = vadd.s32 %v1933, %v1952
    %vm1958 = vc.u32 %v1933, %v1952
    %v1959 = vadd.s32 %v1955, 1
    %v1960 = vsel %vm1958, %v1959, %v1955
    %v1961 = vadd.s32 %v1956, %v1960
    %v1962 = vadd.s32 %v1961, 536870912
    %v1963 = vshrl.u32 %v1962, 30
    %v1964 = vshll.u32 %v1963, 30
    %v1965 = vsub.s32 %v1961, %v1964
    %vm1966 = vcmp.lt.s32.totalorder %v1965, 0
    %v1967 = vsub.s32 0, %v1965
    %v1968 = vsel %vm1966, %v1967, %v1965
    %v1969 = vclz %v1968
    %v1970 = vsub.s32 %v1969, 2
    %vm1971 = vcmp.gt.s32.totalorder 0, %v1970
    %v1972 = vsel %vm1971, 0, %v1970
    %v1973 = vsub.s32 32, %v1972
    %v1974 = vshll.u32 %v1965, %v1972
    %v1975 = vshrl.u32 %v1957, %v1973
    %v1976 = vor.u32 %v1974, %v1975
    %v1977 = vsub.s32 4294967266, %v1972
    %v1978 = vadd.s32 %v1977, 127
    %v1979 = vshll.u32 %v1978, 23
    %v1980 = vor.u32 4788187, %v1979
    %v1981 = vand.u32 2147483647, %v1980
    %v1983 = vcvt.s32.f32 %v1976
    %v1984 = vmul.f32 %v1983, %v1981
    %v1985 = vxor.u32 %v1984, 2147483648
    %v1986 = vsel %vm1865, %v1985, %v1984
    %v1987 = vsub.s32 4, %v1963
    %v1988 = vsel %vm1865, %v1987, %v1963
    %v1989 = vsel %vm1864, %v1547, %v1986
    %v1990 = vsel %vm1864, 0, %v1988
    %v1991 = vmul.f32 %v1989, %v1989
    %v1992 = vmul.f32 %v1991, -0.001358992
    %v1993 = vadd.f32 %v1992, 0.041655596
    %v1994 = vmul.f32 %v1991, %v1993
    %v1995 = vadd.f32 %v1994, -0.4999988
    %v1996 = vmul.f32 %v1991, %v1995
    %v1997 = vadd.f32 1.0, %v1996
    %v1998 = vmul.f32 %v1989, %v1989
    %v1999 = vmul.f32 %v1998, -0.00019511016
    %v2000 = vadd.f32 %v1999, 0.008332121
    %v2001 = vmul.f32 %v1998, %v2000
    %v2002 = vadd.f32 %v2001, -0.16666654
    %v2003 = vmul.f32 %v1998, %v2002
    %v2004 = vadd.f32 %v2003, 1.0
    %v2005 = vmul.f32 %v2004, %v1989
    %vm2006 = vweird.f32 %v1547
    %v2007 = vadd.s32 %v1990, 3
    %v2008 = vand.u32 %v2007, 3
    %vm2009 = vcmp.lt.s32.totalorder %v2008, 2
    %vm2010 = vcmp.eq.s32.totalorder %v2008, 0
    %v2011 = vxor.u32 %v2005, 2147483648
    %v2012 = vsel %vm2010, %v1997, %v2011
    %vm2013 = vcmp.eq.s32.totalorder %v2008, 2
    %v2014 = vxor.u32 %v1997, 2147483648
    %v2015 = vsel %vm2013, %v2014, %v2005
    %v2016 = vsel %vm2009, %v2012, %v2015
    %v2017 = vsel %vm2006, nan, %v2016
    %v2018 = vand.u32 2147483647, %v1548
    %vm2019 = vcmp.le.f32.partialorder %v2018, 0.7853982
    %vm2020 = vcmp.lt.s32.totalorder %v1548, 0
    %v2021 = vand.u32 %v1548, 2139095040
    %v2022 = vshrl.u32 %v2021, 23
    %v2023 = vsub.s32 %v2022, 127
    %v2024 = vand.u32 2147483647, %v1548
    %v2025 = vand.u32 %v2024, 8388607
    %v2026 = vor.u32 %v2025, 8388608
    %v2027 = vsub.s32 0, %v2026
    %v2028 = vadd.s32 %v2023, 1
    %vm2029 = vcmp.gt.s32.totalorder %v2028, 0
    %v2030 = vsel %vm2029, %v2028, 0
    %v2031 = vshrl.u32 %v2030, 5
    %v2032 = vand.u32 %v2030, 31
    %v2033 = vsub.s32 32, %v2032
    %v2034 = vshrl.u32 683565275, %v2033
    %v2035 = vshll.u32 683565275, %v2032
    %v2036 = vshrl.u32 2475754826, %v2033
    %v2037 = vor.u32 %v2035, %v2036
    %v2038 = vshll.u32 2475754826, %v2032
    %v2039 = vshrl.u32 2131351028, %v2033
    %v2040 = vor.u32 %v2038, %v2039
    %v2041 = vshll.u32 2131351028, %v2032
    %v2042 = vshrl.u32 2102212464, %v2033
    %v2043 = vor.u32 %v2041, %v2042
    %v2044 = vshll.u32 2102212464, %v2032
    %v2045 = vshrl.u32 920167782, %v2033
    %v2046 = vor.u32 %v2044, %v2045
    %v2047 = vshll.u32 920167782, %v2032
    %v2048 = vshrl.u32 1326507024, %v2033
    %v2049 = vor.u32 %v2047, %v2048
    %vm2050 = vcmp.lt.s32.totalorder %v2031, 1
    %vm2051 = vcmp.lt.s32.totalorder %v2031, 2
    %vm2052 = vcmp.lt.s32.totalorder %v2031, 3
    %vm2053 = vcmp.lt.s32.totalorder %v2031, 4
    %v2054 = vsel %vm2050, %v2034, %v2037
    %v2055 = vsel %vm2053, %v2043, 2102212464
    %v2056 = vsel %vm2052, %v2040, %v2055
    %v2057 = vsel %vm2051, %v2054, %v2056
    %v2058 = vsel %vm2050, %v2037, %v2040
    %v2059 = vsel %vm2053, %v2046, 920167782
    %v2060 = vsel %vm2052, %v2043, %v2059
    %v2061 = vsel %vm2051, %v2058, %v2060
    %v2062 = vsel %vm2050, %v2040, %v2043
    %v2063 = vsel %vm2053, %v2049, 1326507024
    %v2064 = vsel %vm2052, %v2046, %v2063
    %v2065 = vsel %vm2051, %v2062, %v2064
    %v2066 = vshll.u32 %v2026, 8
    %v2067 = vand.u32 %v2066, 65535
    %v2068 = vshrl.u32 %v2066, 16
    %v2069 = vand.u32 %v2065, 65535
    %v2070 = vshrl.u32 %v2065, 16
    %v2071 = vmul.u32 %v2067, %v2069
    %v2072 = vmul.u32 %v2067, %v2070
    %v2073 = vmul.u32 %v2068, %v2069
    %v2074 = vmul.u32 %v2068, %v2070
    %v2075 = vshll.u32 %v2072, 16
    %v2076 = vshrl.u32 %v2072, 16
    %v2077 = vshll.u32 %v2073, 16
    %v2078 = vshrl.u32 %v2073, 16
    %vm2079 = vc.u32 %v2071, %v2075
    %v2080 = vsel %vm2079, 1, 0
    %v2081 = vadd.s32 %v2071, %v2075
    %v2082 = vadd.s32 %v2074, %v2080
    %vm2083 = vc.u32 %v2081, %v2077
    %v2084 = vsel %vm2083, 1, 0
    %v2085 = vadd.s32 %v2081, %v2077
    %v2086 = vadd.s32 %v2082, %v2084
    %v2087 = vadd.s32 %v2086, %v2076
    %v2088 = vadd.s32 %v2087, %v2078
    %v2089 = vand.u32 %v2066, 65535
    %v2090 = vshrl.u32 %v2066, 16
    %v2091 = vand.u32 %v2061, 65535
    %v2092 = vshrl.u32 %v2061, 16
    %v2093 = vmul.u32 %v2089, %v2091
    %v2094 = vmul.u32 %v2089, %v2092
    %v2095 = vmul.u32 %v2090, %v2091
    %v2096 = vmul.u32 %v2090, %v2092
    %v2097 = vshll.u32 %v2094, 16
    %v2098 = vshrl.u32 %v2094, 16
    %v2099 = vshll.u32 %v2095, 16
    %v2100 = vshrl.u32 %v2095, 16
    %vm2101 = vc.u32 %v2093, %v2097
    %v2102 = vsel %vm2101, 1, 0
    %v2103 = vadd.s32 %v2093, %v2097
    %v2104 = vadd.s32 %v2096, %v2102
    %vm2105 = vc.u32 %v2103, %v2099
    %v2106 = vsel %vm2105, 1, 0
    %v2107 = vadd.s32 %v2103, %v2099
    %v2108 = vadd.s32 %v2104, %v2106
    %v2109 = vadd.s32 %v2108, %v2098
    %v2110 = vadd.s32 %v2109, %v2100
    %v2111 = vmul.u32 %v2066, %v2057
    %v2112 = vadd.s32 %v2088, %v2107
    %vm2113 = vc.u32 %v2088, %v2107
    %v2114 = vadd.s32 %v2110, 1
    %v2115 = vsel %vm2113, %v2114, %v2110
    %v2116 = vadd.s32 %v2111, %v2115
    %v2117 = vadd.s32 %v2116, 536870912
    %v2118 = vshrl.u32 %v2117, 30
    %v2119 = vshll.u32 %v2118, 30
    %v2120 = vsub.s32 %v2116, %v2119
    %vm2121 = vcmp.lt.s32.totalorder %v2120, 0
    %v2122 = vsub.s32 0, %v2120
    %v2123 = vsel %vm2121, %v2122, %v2120
    %v2124 = vclz %v2123
    %v2125 = vsub.s32 %v2124, 2
    %vm2126 = vcmp.gt.s32.totalorder 0, %v2125
    %v2127 = vsel %vm2126, 0, %v2125
    %v2128 = vsub.s32 32, %v2127
    %v2129 = vshll.u32 %v2120, %v2127
    %v2130 = vshrl.u32 %v2112, %v2128
    %v2131 = vor.u32 %v2129, %v2130
    %v2132 = vsub.s32 4294967266, %v2127
    %v2133 = vadd.s32 %v2132, 127
    %v2134 = vshll.u32 %v2133, 23
    %v2135 = vor.u32 4788187, %v2134
    %v2136 = vand.u32 2147483647, %v2135
    %v2138 = vcvt.s32.f32 %v2131
    %v2139 = vmul.f32 %v2138, %v2136
    %v2140 = vxor.u32 %v2139, 2147483648
    %v2141 = vsel %vm2020, %v2140, %v2139
    %v2142 = vsub.s32 4, %v2118
    %v2143 = vsel %vm2020, %v2142, %v2118
    %v2144 = vsel %vm2019, %v1548, %v2141
    %v2145 = vsel %vm2019, 0, %v2143
    %v2146 = vmul.f32 %v2144, %v2144
    %v2147 = vmul.f32 %v2146, -0.001358992
    %v2148 = vadd.f32 %v2147, 0.041655596
    %v2149 = vmul.f32 %v2146, %v2148
    %v2150 = vadd.f32 %v2149, -0.4999988
    %v2151 = vmul.f32 %v2146, %v2150
    %v2152 = vadd.f32 1.0, %v2151
    %v2153 = vmul.f32 %v2144, %v2144
    %v2154 = vmul.f32 %v2153, -0.00019511016
    %v2155 = vadd.f32 %v2154, 0.008332121
    %v2156 = vmul.f32 %v2153, %v2155
    %v2157 = vadd.f32 %v2156, -0.16666654
    %v2158 = vmul.f32 %v2153, %v2157
    %v2159 = vadd.f32 %v2158, 1.0
    %v2160 = vmul.f32 %v2159, %v2144
    %vm2161 = vweird.f32 %v1548
    %v2162 = vadd.s32 %v2145, 3
    %v2163 = vand.u32 %v2162, 3
    %vm2164 = vcmp.lt.s32.totalorder %v2163, 2
    %vm2165 = vcmp.eq.s32.totalorder %v2163, 0
    %v2166 = vxor.u32 %v2160, 2147483648
    %v2167 = vsel %vm2165, %v2152, %v2166
    %vm2168 = vcmp.eq.s32.totalorder %v2163, 2
    %v2169 = vxor.u32 %v2152, 2147483648
    %v2170 = vsel %vm2168, %v2169, %v2160
    %v2171 = vsel %vm2164, %v2167, %v2170
    %v2172 = vsel %vm2161, nan, %v2171
    %v2173 = vand.u32 2147483647, %v1549
    %vm2174 = vcmp.le.f32.partialorder %v2173, 0.7853982
    %vm2175 = vcmp.lt.s32.totalorder %v1549, 0
    %v2176 = vand.u32 %v1549, 2139095040
    %v2177 = vshrl.u32 %v2176, 23
    %v2178 = vsub.s32 %v2177, 127
    %v2179 = vand.u32 2147483647, %v1549
    %v2180 = vand.u32 %v2179, 8388607
    %v2181 = vor.u32 %v2180, 8388608
    %v2182 = vsub.s32 0, %v2181
    %v2183 = vadd.s32 %v2178, 1
    %vm2184 = vcmp.gt.s32.totalorder %v2183, 0
    %v2185 = vsel %vm2184, %v2183, 0
    %v2186 = vshrl.u32 %v2185, 5
    %v2187 = vand.u32 %v2185, 31
    %v2188 = vsub.s32 32, %v2187
    %v2189 = vshrl.u32 683565275, %v2188
    %v2190 = vshll.u32 683565275, %v2187
    %v2191 = vshrl.u32 2475754826, %v2188
    %v2192 = vor.u32 %v2190, %v2191
    %v2193 = vshll.u32 2475754826, %v2187
    %v2194 = vshrl.u32 2131351028, %v2188
    %v2195 = vor.u32 %v2193, %v2194
    %v2196 = vshll.u32 2131351028, %v2187
    %v2197 = vshrl.u32 2102212464, %v2188
    %v2198 = vor.u32 %v2196, %v2197
    %v2199 = vshll.u32 2102212464, %v2187
    %v2200 = vshrl.u32 920167782, %v2188
    %v2201 = vor.u32 %v2199, %v2200
    %v2202 = vshll.u32 920167782, %v2187
    %v2203 = vshrl.u32 1326507024, %v2188
    %v2204 = vor.u32 %v2202, %v2203
    %vm2205 = vcmp.lt.s32.totalorder %v2186, 1
    %vm2206 = vcmp.lt.s32.totalorder %v2186, 2
    %vm2207 = vcmp.lt.s32.totalorder %v2186, 3
    %vm2208 = vcmp.lt.s32.totalorder %v2186, 4
    %v2209 = vsel %vm2205, %v2189, %v2192
    %v2210 = vsel %vm2208, %v2198, 2102212464
    %v2211 = vsel %vm2207, %v2195, %v2210
    %v2212 = vsel %vm2206, %v2209, %v2211
    %v2213 = vsel %vm2205, %v2192, %v2195
    %v2214 = vsel %vm2208, %v2201, 920167782
    %v2215 = vsel %vm2207, %v2198, %v2214
    %v2216 = vsel %vm2206, %v2213, %v2215
    %v2217 = vsel %vm2205, %v2195, %v2198
    %v2218 = vsel %vm2208, %v2204, 1326507024
    %v2219 = vsel %vm2207, %v2201, %v2218
    %v2220 = vsel %vm2206, %v2217, %v2219
    %v2221 = vshll.u32 %v2181, 8
    %v2222 = vand.u32 %v2221, 65535
    %v2223 = vshrl.u32 %v2221, 16
    %v2224 = vand.u32 %v2220, 65535
    %v2225 = vshrl.u32 %v2220, 16
    %v2226 = vmul.u32 %v2222, %v2224
    %v2227 = vmul.u32 %v2222, %v2225
    %v2228 = vmul.u32 %v2223, %v2224
    %v2229 = vmul.u32 %v2223, %v2225
    %v2230 = vshll.u32 %v2227, 16
    %v2231 = vshrl.u32 %v2227, 16
    %v2232 = vshll.u32 %v2228, 16
    %v2233 = vshrl.u32 %v2228, 16
    %vm2234 = vc.u32 %v2226, %v2230
    %v2235 = vsel %vm2234, 1, 0
    %v2236 = vadd.s32 %v2226, %v2230
    %v2237 = vadd.s32 %v2229, %v2235
    %vm2238 = vc.u32 %v2236, %v2232
    %v2239 = vsel %vm2238, 1, 0
    %v2240 = vadd.s32 %v2236, %v2232
    %v2241 = vadd.s32 %v2237, %v2239
    %v2242 = vadd.s32 %v2241, %v2231
    %v2243 = vadd.s32 %v2242, %v2233
    %v2244 = vand.u32 %v2221, 65535
    %v2245 = vshrl.u32 %v2221, 16
    %v2246 = vand.u32 %v2216, 65535
    %v2247 = vshrl.u32 %v2216, 16
    %v2248 = vmul.u32 %v2244, %v2246
    %v2249 = vmul.u32 %v2244, %v2247
    %v2250 = vmul.u32 %v2245, %v2246
    %v2251 = vmul.u32 %v2245, %v2247
    %v2252 = vshll.u32 %v2249, 16
    %v2253 = vshrl.u32 %v2249, 16
    %v2254 = vshll.u32 %v2250, 16
    %v2255 = vshrl.u32 %v2250, 16
    %vm2256 = vc.u32 %v2248, %v2252
    %v2257 = vsel %vm2256, 1, 0
    %v2258 = vadd.s32 %v2248, %v2252
    %v2259 = vadd.s32 %v2251, %v2257
    %vm2260 = vc.u32 %v2258, %v2254
    %v2261 = vsel %vm2260, 1, 0
    %v2262 = vadd.s32 %v2258, %v2254
    %v2263 = vadd.s32 %v2259, %v2261
    %v2264 = vadd.s32 %v2263, %v2253
    %v2265 = vadd.s32 %v2264, %v2255
    %v2266 = vmul.u32 %v2221, %v2212
    %v2267 = vadd.s32 %v2243, %v2262
    %vm2268 = vc.u32 %v2243, %v2262
    %v2269 = vadd.s32 %v2265, 1
    %v2270 = vsel %vm2268, %v2269, %v2265
    %v2271 = vadd.s32 %v2266, %v2270
    %v2272 = vadd.s32 %v2271, 536870912
    %v2273 = vshrl.u32 %v2272, 30
    %v2274 = vshll.u32 %v2273, 30
    %v2275 = vsub.s32 %v2271, %v2274
    %vm2276 = vcmp.lt.s32.totalorder %v2275, 0
    %v2277 = vsub.s32 0, %v2275
    %v2278 = vsel %vm2276, %v2277, %v2275
    %v2279 = vclz %v2278
    %v2280 = vsub.s32 %v2279, 2
    %vm2281 = vcmp.gt.s32.totalorder 0, %v2280
    %v2282 = vsel %vm2281, 0, %v2280
    %v2283 = vsub.s32 32, %v2282
    %v2284 = vshll.u32 %v2275, %v2282
    %v2285 = vshrl.u32 %v2267, %v2283
    %v2286 = vor.u32 %v2284, %v2285
    %v2287 = vsub.s32 4294967266, %v2282
    %v2288 = vadd.s32 %v2287, 127
    %v2289 = vshll.u32 %v2288, 23
    %v2290 = vor.u32 4788187, %v2289
    %v2291 = vand.u32 2147483647, %v2290
    %v2293 = vcvt.s32.f32 %v2286
    %v2294 = vmul.f32 %v2293, %v2291
    %v2295 = vxor.u32 %v2294, 2147483648
    %v2296 = vsel %vm2175, %v2295, %v2294
    %v2297 = vsub.s32 4, %v2273
    %v2298 = vsel %vm2175, %v2297, %v2273
    %v2299 = vsel %vm2174, %v1549, %v2296
    %v2300 = vsel %vm2174, 0, %v2298
    %v2301 = vmul.f32 %v2299, %v2299
    %v2302 = vmul.f32 %v2301, -0.001358992
    %v2303 = vadd.f32 %v2302, 0.041655596
    %v2304 = vmul.f32 %v2301, %v2303
    %v2305 = vadd.f32 %v2304, -0.4999988
    %v2306 = vmul.f32 %v2301, %v2305
    %v2307 = vadd.f32 1.0, %v2306
    %v2308 = vmul.f32 %v2299, %v2299
    %v2309 = vmul.f32 %v2308, -0.00019511016
    %v2310 = vadd.f32 %v2309, 0.008332121
    %v2311 = vmul.f32 %v2308, %v2310
    %v2312 = vadd.f32 %v2311, -0.16666654
    %v2313 = vmul.f32 %v2308, %v2312
    %v2314 = vadd.f32 %v2313, 1.0
    %v2315 = vmul.f32 %v2314, %v2299
    %vm2316 = vweird.f32 %v1549
    %v2317 = vadd.s32 %v2300, 3
    %v2318 = vand.u32 %v2317, 3
    %vm2319 = vcmp.lt.s32.totalorder %v2318, 2
    %vm2320 = vcmp.eq.s32.totalorder %v2318, 0
    %v2321 = vxor.u32 %v2315, 2147483648
    %v2322 = vsel %vm2320, %v2307, %v2321
    %vm2323 = vcmp.eq.s32.totalorder %v2318, 2
    %v2324 = vxor.u32 %v2307, 2147483648
    %v2325 = vsel %vm2323, %v2324, %v2315
    %v2326 = vsel %vm2319, %v2322, %v2325
    %v2327 = vsel %vm2316, nan, %v2326
    %v2328 = vand.u32 2147483647, %v1550
    %vm2329 = vcmp.le.f32.partialorder %v2328, 0.7853982
    %vm2330 = vcmp.lt.s32.totalorder %v1550, 0
    %v2331 = vand.u32 %v1550, 2139095040
    %v2332 = vshrl.u32 %v2331, 23
    %v2333 = vsub.s32 %v2332, 127
    %v2334 = vand.u32 2147483647, %v1550
    %v2335 = vand.u32 %v2334, 8388607
    %v2336 = vor.u32 %v2335, 8388608
    %v2337 = vsub.s32 0, %v2336
    %v2338 = vadd.s32 %v2333, 1
    %vm2339 = vcmp.gt.s32.totalorder %v2338, 0
    %v2340 = vsel %vm2339, %v2338, 0
    %v2341 = vshrl.u32 %v2340, 5
    %v2342 = vand.u32 %v2340, 31
    %v2343 = vsub.s32 32, %v2342
    %v2344 = vshrl.u32 683565275, %v2343
    %v2345 = vshll.u32 683565275, %v2342
    %v2346 = vshrl.u32 2475754826, %v2343
    %v2347 = vor.u32 %v2345, %v2346
    %v2348 = vshll.u32 2475754826, %v2342
    %v2349 = vshrl.u32 2131351028, %v2343
    %v2350 = vor.u32 %v2348, %v2349
    %v2351 = vshll.u32 2131351028, %v2342
    %v2352 = vshrl.u32 2102212464, %v2343
    %v2353 = vor.u32 %v2351, %v2352
    %v2354 = vshll.u32 2102212464, %v2342
    %v2355 = vshrl.u32 920167782, %v2343
    %v2356 = vor.u32 %v2354, %v2355
    %v2357 = vshll.u32 920167782, %v2342
    %v2358 = vshrl.u32 1326507024, %v2343
    %v2359 = vor.u32 %v2357, %v2358
    %vm2360 = vcmp.lt.s32.totalorder %v2341, 1
    %vm2361 = vcmp.lt.s32.totalorder %v2341, 2
    %vm2362 = vcmp.lt.s32.totalorder %v2341, 3
    %vm2363 = vcmp.lt.s32.totalorder %v2341, 4
    %v2364 = vsel %vm2360, %v2344, %v2347
    %v2365 = vsel %vm2363, %v2353, 2102212464
    %v2366 = vsel %vm2362, %v2350, %v2365
    %v2367 = vsel %vm2361, %v2364, %v2366
    %v2368 = vsel %vm2360, %v2347, %v2350
    %v2369 = vsel %vm2363, %v2356, 920167782
    %v2370 = vsel %vm2362, %v2353, %v2369
    %v2371 = vsel %vm2361, %v2368, %v2370
    %v2372 = vsel %vm2360, %v2350, %v2353
    %v2373 = vsel %vm2363, %v2359, 1326507024
    %v2374 = vsel %vm2362, %v2356, %v2373
    %v2375 = vsel %vm2361, %v2372, %v2374
    %v2376 = vshll.u32 %v2336, 8
    %v2377 = vand.u32 %v2376, 65535
    %v2378 = vshrl.u32 %v2376, 16
    %v2379 = vand.u32 %v2375, 65535
    %v2380 = vshrl.u32 %v2375, 16
    %v2381 = vmul.u32 %v2377, %v2379
    %v2382 = vmul.u32 %v2377, %v2380
    %v2383 = vmul.u32 %v2378, %v2379
    %v2384 = vmul.u32 %v2378, %v2380
    %v2385 = vshll.u32 %v2382, 16
    %v2386 = vshrl.u32 %v2382, 16
    %v2387 = vshll.u32 %v2383, 16
    %v2388 = vshrl.u32 %v2383, 16
    %vm2389 = vc.u32 %v2381, %v2385
    %v2390 = vsel %vm2389, 1, 0
    %v2391 = vadd.s32 %v2381, %v2385
    %v2392 = vadd.s32 %v2384, %v2390
    %vm2393 = vc.u32 %v2391, %v2387
    %v2394 = vsel %vm2393, 1, 0
    %v2395 = vadd.s32 %v2391, %v2387
    %v2396 = vadd.s32 %v2392, %v2394
    %v2397 = vadd.s32 %v2396, %v2386
    %v2398 = vadd.s32 %v2397, %v2388
    %v2399 = vand.u32 %v2376, 65535
    %v2400 = vshrl.u32 %v2376, 16
    %v2401 = vand.u32 %v2371, 65535
    %v2402 = vshrl.u32 %v2371, 16
    %v2403 = vmul.u32 %v2399, %v2401
    %v2404 = vmul.u32 %v2399, %v2402
    %v2405 = vmul.u32 %v2400, %v2401
    %v2406 = vmul.u32 %v2400, %v2402
    %v2407 = vshll.u32 %v2404, 16
    %v2408 = vshrl.u32 %v2404, 16
    %v2409 = vshll.u32 %v2405, 16
    %v2410 = vshrl.u32 %v2405, 16
    %vm2411 = vc.u32 %v2403, %v2407
    %v2412 = vsel %vm2411, 1, 0
    %v2413 = vadd.s32 %v2403, %v2407
    %v2414 = vadd.s32 %v2406, %v2412
    %vm2415 = vc.u32 %v2413, %v2409
    %v2416 = vsel %vm2415, 1, 0
    %v2417 = vadd.s32 %v2413, %v2409
    %v2418 = vadd.s32 %v2414, %v2416
    %v2419 = vadd.s32 %v2418, %v2408
    %v2420 = vadd.s32 %v2419, %v2410
    %v2421 = vmul.u32 %v2376, %v2367
    %v2422 = vadd.s32 %v2398, %v2417
    %vm2423 = vc.u32 %v2398, %v2417
    %v2424 = vadd.s32 %v2420, 1
    %v2425 = vsel %vm2423, %v2424, %v2420
    %v2426 = vadd.s32 %v2421, %v2425
    %v2427 = vadd.s32 %v2426, 536870912
    %v2428 = vshrl.u32 %v2427, 30
    %v2429 = vshll.u32 %v2428, 30
    %v2430 = vsub.s32 %v2426, %v2429
    %vm2431 = vcmp.lt.s32.totalorder %v2430, 0
    %v2432 = vsub.s32 0, %v2430
    %v2433 = vsel %vm2431, %v2432, %v2430
    %v2434 = vclz %v2433
    %v2435 = vsub.s32 %v2434, 2
    %vm2436 = vcmp.gt.s32.totalorder 0, %v2435
    %v2437 = vsel %vm2436, 0, %v2435
    %v2438 = vsub.s32 32, %v2437
    %v2439 = vshll.u32 %v2430, %v2437
    %v2440 = vshrl.u32 %v2422, %v2438
    %v2441 = vor.u32 %v2439, %v2440
    %v2442 = vsub.s32 4294967266, %v2437
    %v2443 = vadd.s32 %v2442, 127
    %v2444 = vshll.u32 %v2443, 23
    %v2445 = vor.u32 4788187, %v2444
    %v2446 = vand.u32 2147483647, %v2445
    %v2448 = vcvt.s32.f32 %v2441
    %v2449 = vmul.f32 %v2448, %v2446
    %v2450 = vxor.u32 %v2449, 2147483648
    %v2451 = vsel %vm2330, %v2450, %v2449
    %v2452 = vsub.s32 4, %v2428
    %v2453 = vsel %vm2330, %v2452, %v2428
    %v2454 = vsel %vm2329, %v1550, %v2451
    %v2455 = vsel %vm2329, 0, %v2453
    %v2456 = vmul.f32 %v2454, %v2454
    %v2457 = vmul.f32 %v2456, -0.001358992
    %v2458 = vadd.f32 %v2457, 0.041655596
    %v2459 = vmul.f32 %v2456, %v2458
    %v2460 = vadd.f32 %v2459, -0.4999988
    %v2461 = vmul.f32 %v2456, %v2460
    %v2462 = vadd.f32 1.0, %v2461
    %v2463 = vmul.f32 %v2454, %v2454
    %v2464 = vmul.f32 %v2463, -0.00019511016
    %v2465 = vadd.f32 %v2464, 0.008332121
    %v2466 = vmul.f32 %v2463, %v2465
    %v2467 = vadd.f32 %v2466, -0.16666654
    %v2468 = vmul.f32 %v2463, %v2467
    %v2469 = vadd.f32 %v2468, 1.0
    %v2470 = vmul.f32 %v2469, %v2454
    %vm2471 = vweird.f32 %v1550
    %v2472 = vadd.s32 %v2455, 3
    %v2473 = vand.u32 %v2472, 3
    %vm2474 = vcmp.lt.s32.totalorder %v2473, 2
    %vm2475 = vcmp.eq.s32.totalorder %v2473, 0
    %v2476 = vxor.u32 %v2470, 2147483648
    %v2477 = vsel %vm2475, %v2462, %v2476
    %vm2478 = vcmp.eq.s32.totalorder %v2473, 2
    %v2479 = vxor.u32 %v2462, 2147483648
    %v2480 = vsel %vm2478, %v2479, %v2470
    %v2481 = vsel %vm2474, %v2477, %v2480
    %v2482 = vsel %vm2471, nan, %v2481
    %v2483 = vand.u32 2147483647, %v1551
    %vm2484 = vcmp.le.f32.partialorder %v2483, 0.7853982
    %vm2485 = vcmp.lt.s32.totalorder %v1551, 0
    %v2486 = vand.u32 %v1551, 2139095040
    %v2487 = vshrl.u32 %v2486, 23
    %v2488 = vsub.s32 %v2487, 127
    %v2489 = vand.u32 2147483647, %v1551
    %v2490 = vand.u32 %v2489, 8388607
    %v2491 = vor.u32 %v2490, 8388608
    %v2492 = vsub.s32 0, %v2491
    %v2493 = vadd.s32 %v2488, 1
    %vm2494 = vcmp.gt.s32.totalorder %v2493, 0
    %v2495 = vsel %vm2494, %v2493, 0
    %v2496 = vshrl.u32 %v2495, 5
    %v2497 = vand.u32 %v2495, 31
    %v2498 = vsub.s32 32, %v2497
    %v2499 = vshrl.u32 683565275, %v2498
    %v2500 = vshll.u32 683565275, %v2497
    %v2501 = vshrl.u32 2475754826, %v2498
    %v2502 = vor.u32 %v2500, %v2501
    %v2503 = vshll.u32 2475754826, %v2497
    %v2504 = vshrl.u32 2131351028, %v2498
    %v2505 = vor.u32 %v2503, %v2504
    %v2506 = vshll.u32 2131351028, %v2497
    %v2507 = vshrl.u32 2102212464, %v2498
    %v2508 = vor.u32 %v2506, %v2507
    %v2509 = vshll.u32 2102212464, %v2497
    %v2510 = vshrl.u32 920167782, %v2498
    %v2511 = vor.u32 %v2509, %v2510
    %v2512 = vshll.u32 920167782, %v2497
    %v2513 = vshrl.u32 1326507024, %v2498
    %v2514 = vor.u32 %v2512, %v2513
    %vm2515 = vcmp.lt.s32.totalorder %v2496, 1
    %vm2516 = vcmp.lt.s32.totalorder %v2496, 2
    %vm2517 = vcmp.lt.s32.totalorder %v2496, 3
    %vm2518 = vcmp.lt.s32.totalorder %v2496, 4
    %v2519 = vsel %vm2515, %v2499, %v2502
    %v2520 = vsel %vm2518, %v2508, 2102212464
    %v2521 = vsel %vm2517, %v2505, %v2520
    %v2522 = vsel %vm2516, %v2519, %v2521
    %v2523 = vsel %vm2515, %v2502, %v2505
    %v2524 = vsel %vm2518, %v2511, 920167782
    %v2525 = vsel %vm2517, %v2508, %v2524
    %v2526 = vsel %vm2516, %v2523, %v2525
    %v2527 = vsel %vm2515, %v2505, %v2508
    %v2528 = vsel %vm2518, %v2514, 1326507024
    %v2529 = vsel %vm2517, %v2511, %v2528
    %v2530 = vsel %vm2516, %v2527, %v2529
    %v2531 = vshll.u32 %v2491, 8
    %v2532 = vand.u32 %v2531, 65535
    %v2533 = vshrl.u32 %v2531, 16
    %v2534 = vand.u32 %v2530, 65535
    %v2535 = vshrl.u32 %v2530, 16
    %v2536 = vmul.u32 %v2532, %v2534
    %v2537 = vmul.u32 %v2532, %v2535
    %v2538 = vmul.u32 %v2533, %v2534
    %v2539 = vmul.u32 %v2533, %v2535
    %v2540 = vshll.u32 %v2537, 16
    %v2541 = vshrl.u32 %v2537, 16
    %v2542 = vshll.u32 %v2538, 16
    %v2543 = vshrl.u32 %v2538, 16
    %vm2544 = vc.u32 %v2536, %v2540
    %v2545 = vsel %vm2544, 1, 0
    %v2546 = vadd.s32 %v2536, %v2540
    %v2547 = vadd.s32 %v2539, %v2545
    %vm2548 = vc.u32 %v2546, %v2542
    %v2549 = vsel %vm2548, 1, 0
    %v2550 = vadd.s32 %v2546, %v2542
    %v2551 = vadd.s32 %v2547, %v2549
    %v2552 = vadd.s32 %v2551, %v2541
    %v2553 = vadd.s32 %v2552, %v2543
    %v2554 = vand.u32 %v2531, 65535
    %v2555 = vshrl.u32 %v2531, 16
    %v2556 = vand.u32 %v2526, 65535
    %v2557 = vshrl.u32 %v2526, 16
    %v2558 = vmul.u32 %v2554, %v2556
    %v2559 = vmul.u32 %v2554, %v2557
    %v2560 = vmul.u32 %v2555, %v2556
    %v2561 = vmul.u32 %v2555, %v2557
    %v2562 = vshll.u32 %v2559, 16
    %v2563 = vshrl.u32 %v2559, 16
    %v2564 = vshll.u32 %v2560, 16
    %v2565 = vshrl.u32 %v2560, 16
    %vm2566 = vc.u32 %v2558, %v2562
    %v2567 = vsel %vm2566, 1, 0
    %v2568 = vadd.s32 %v2558, %v2562
    %v2569 = vadd.s32 %v2561, %v2567
    %vm2570 = vc.u32 %v2568, %v2564
    %v2571 = vsel %vm2570, 1, 0
    %v2572 = vadd.s32 %v2568, %v2564
    %v2573 = vadd.s32 %v2569, %v2571
    %v2574 = vadd.s32 %v2573, %v2563
    %v2575 = vadd.s32 %v2574, %v2565
    %v2576 = vmul.u32 %v2531, %v2522
    %v2577 = vadd.s32 %v2553, %v2572
    %vm2578 = vc.u32 %v2553, %v2572
    %v2579 = vadd.s32 %v2575, 1
    %v2580 = vsel %vm2578, %v2579, %v2575
    %v2581 = vadd.s32 %v2576, %v2580
    %v2582 = vadd.s32 %v2581, 536870912
    %v2583 = vshrl.u32 %v2582, 30
    %v2584 = vshll.u32 %v2583, 30
    %v2585 = vsub.s32 %v2581, %v2584
    %vm2586 = vcmp.lt.s32.totalorder %v2585, 0
    %v2587 = vsub.s32 0, %v2585
    %v2588 = vsel %vm2586, %v2587, %v2585
    %v2589 = vclz %v2588
    %v2590 = vsub.s32 %v2589, 2
    %vm2591 = vcmp.gt.s32.totalorder 0, %v2590
    %v2592 = vsel %vm2591, 0, %v2590
    %v2593 = vsub.s32 32, %v2592
    %v2594 = vshll.u32 %v2585, %v2592
    %v2595 = vshrl.u32 %v2577, %v2593
    %v2596 = vor.u32 %v2594, %v2595
    %v2597 = vsub.s32 4294967266, %v2592
    %v2598 = vadd.s32 %v2597, 127
    %v2599 = vshll.u32 %v2598, 23
    %v2600 = vor.u32 4788187, %v2599
    %v2601 = vand.u32 2147483647, %v2600
    %v2603 = vcvt.s32.f32 %v2596
    %v2604 = vmul.f32 %v2603, %v2601
    %v2605 = vxor.u32 %v2604, 2147483648
    %v2606 = vsel %vm2485, %v2605, %v2604
    %v2607 = vsub.s32 4, %v2583
    %v2608 = vsel %vm2485, %v2607, %v2583
    %v2609 = vsel %vm2484, %v1551, %v2606
    %v2610 = vsel %vm2484, 0, %v2608
    %v2611 = vmul.f32 %v2609, %v2609
    %v2612 = vmul.f32 %v2611, -0.001358992
    %v2613 = vadd.f32 %v2612, 0.041655596
    %v2614 = vmul.f32 %v2611, %v2613
    %v2615 = vadd.f32 %v2614, -0.4999988
    %v2616 = vmul.f32 %v2611, %v2615
    %v2617 = vadd.f32 1.0, %v2616
    %v2618 = vmul.f32 %v2609, %v2609
    %v2619 = vmul.f32 %v2618, -0.00019511016
    %v2620 = vadd.f32 %v2619, 0.008332121
    %v2621 = vmul.f32 %v2618, %v2620
    %v2622 = vadd.f32 %v2621, -0.16666654
    %v2623 = vmul.f32 %v2618, %v2622
    %v2624 = vadd.f32 %v2623, 1.0
    %v2625 = vmul.f32 %v2624, %v2609
    %vm2626 = vweird.f32 %v1551
    %v2627 = vadd.s32 %v2610, 3
    %v2628 = vand.u32 %v2627, 3
    %vm2629 = vcmp.lt.s32.totalorder %v2628, 2
    %vm2630 = vcmp.eq.s32.totalorder %v2628, 0
    %v2631 = vxor.u32 %v2625, 2147483648
    %v2632 = vsel %vm2630, %v2617, %v2631
    %vm2633 = vcmp.eq.s32.totalorder %v2628, 2
    %v2634 = vxor.u32 %v2617, 2147483648
    %v2635 = vsel %vm2633, %v2634, %v2625
    %v2636 = vsel %vm2629, %v2632, %v2635
    %v2637 = vsel %vm2626, nan, %v2636
    %v2638 = vand.u32 2147483647, %v1552
    %vm2639 = vcmp.le.f32.partialorder %v2638, 0.7853982
    %vm2640 = vcmp.lt.s32.totalorder %v1552, 0
    %v2641 = vand.u32 %v1552, 2139095040
    %v2642 = vshrl.u32 %v2641, 23
    %v2643 = vsub.s32 %v2642, 127
    %v2644 = vand.u32 2147483647, %v1552
    %v2645 = vand.u32 %v2644, 8388607
    %v2646 = vor.u32 %v2645, 8388608
    %v2647 = vsub.s32 0, %v2646
    %v2648 = vadd.s32 %v2643, 1
    %vm2649 = vcmp.gt.s32.totalorder %v2648, 0
    %v2650 = vsel %vm2649, %v2648, 0
    %v2651 = vshrl.u32 %v2650, 5
    %v2652 = vand.u32 %v2650, 31
    %v2653 = vsub.s32 32, %v2652
    %v2654 = vshrl.u32 683565275, %v2653
    %v2655 = vshll.u32 683565275, %v2652
    %v2656 = vshrl.u32 2475754826, %v2653
    %v2657 = vor.u32 %v2655, %v2656
    %v2658 = vshll.u32 2475754826, %v2652
    %v2659 = vshrl.u32 2131351028, %v2653
    %v2660 = vor.u32 %v2658, %v2659
    %v2661 = vshll.u32 2131351028, %v2652
    %v2662 = vshrl.u32 2102212464, %v2653
    %v2663 = vor.u32 %v2661, %v2662
    %v2664 = vshll.u32 2102212464, %v2652
    %v2665 = vshrl.u32 920167782, %v2653
    %v2666 = vor.u32 %v2664, %v2665
    %v2667 = vshll.u32 920167782, %v2652
    %v2668 = vshrl.u32 1326507024, %v2653
    %v2669 = vor.u32 %v2667, %v2668
    %vm2670 = vcmp.lt.s32.totalorder %v2651, 1
    %vm2671 = vcmp.lt.s32.totalorder %v2651, 2
    %vm2672 = vcmp.lt.s32.totalorder %v2651, 3
    %vm2673 = vcmp.lt.s32.totalorder %v2651, 4
    %v2674 = vsel %vm2670, %v2654, %v2657
    %v2675 = vsel %vm2673, %v2663, 2102212464
    %v2676 = vsel %vm2672, %v2660, %v2675
    %v2677 = vsel %vm2671, %v2674, %v2676
    %v2678 = vsel %vm2670, %v2657, %v2660
    %v2679 = vsel %vm2673, %v2666, 920167782
    %v2680 = vsel %vm2672, %v2663, %v2679
    %v2681 = vsel %vm2671, %v2678, %v2680
    %v2682 = vsel %vm2670, %v2660, %v2663
    %v2683 = vsel %vm2673, %v2669, 1326507024
    %v2684 = vsel %vm2672, %v2666, %v2683
    %v2685 = vsel %vm2671, %v2682, %v2684
    %v2686 = vshll.u32 %v2646, 8
    %v2687 = vand.u32 %v2686, 65535
    %v2688 = vshrl.u32 %v2686, 16
    %v2689 = vand.u32 %v2685, 65535
    %v2690 = vshrl.u32 %v2685, 16
    %v2691 = vmul.u32 %v2687, %v2689
    %v2692 = vmul.u32 %v2687, %v2690
    %v2693 = vmul.u32 %v2688, %v2689
    %v2694 = vmul.u32 %v2688, %v2690
    %v2695 = vshll.u32 %v2692, 16
    %v2696 = vshrl.u32 %v2692, 16
    %v2697 = vshll.u32 %v2693, 16
    %v2698 = vshrl.u32 %v2693, 16
    %vm2699 = vc.u32 %v2691, %v2695
    %v2700 = vsel %vm2699, 1, 0
    %v2701 = vadd.s32 %v2691, %v2695
    %v2702 = vadd.s32 %v2694, %v2700
    %vm2703 = vc.u32 %v2701, %v2697
    %v2704 = vsel %vm2703, 1, 0
    %v2705 = vadd.s32 %v2701, %v2697
    %v2706 = vadd.s32 %v2702, %v2704
    %v2707 = vadd.s32 %v2706, %v2696
    %v2708 = vadd.s32 %v2707, %v2698
    %v2709 = vand.u32 %v2686, 65535
    %v2710 = vshrl.u32 %v2686, 16
    %v2711 = vand.u32 %v2681, 65535
    %v2712 = vshrl.u32 %v2681, 16
    %v2713 = vmul.u32 %v2709, %v2711
    %v2714 = vmul.u32 %v2709, %v2712
    %v2715 = vmul.u32 %v2710, %v2711
    %v2716 = vmul.u32 %v2710, %v2712
    %v2717 = vshll.u32 %v2714, 16
    %v2718 = vshrl.u32 %v2714, 16
    %v2719 = vshll.u32 %v2715, 16
    %v2720 = vshrl.u32 %v2715, 16
    %vm2721 = vc.u32 %v2713, %v2717
    %v2722 = vsel %vm2721, 1, 0
    %v2723 = vadd.s32 %v2713, %v2717
    %v2724 = vadd.s32 %v2716, %v2722
    %vm2725 = vc.u32 %v2723, %v2719
    %v2726 = vsel %vm2725, 1, 0
    %v2727 = vadd.s32 %v2723, %v2719
    %v2728 = vadd.s32 %v2724, %v2726
    %v2729 = vadd.s32 %v2728, %v2718
    %v2730 = vadd.s32 %v2729, %v2720
    %v2731 = vmul.u32 %v2686, %v2677
    %v2732 = vadd.s32 %v2708, %v2727
    %vm2733 = vc.u32 %v2708, %v2727
    %v2734 = vadd.s32 %v2730, 1
    %v2735 = vsel %vm2733, %v2734, %v2730
    %v2736 = vadd.s32 %v2731, %v2735
    %v2737 = vadd.s32 %v2736, 536870912
    %v2738 = vshrl.u32 %v2737, 30
    %v2739 = vshll.u32 %v2738, 30
    %v2740 = vsub.s32 %v2736, %v2739
    %vm2741 = vcmp.lt.s32.totalorder %v2740, 0
    %v2742 = vsub.s32 0, %v2740
    %v2743 = vsel %vm2741, %v2742, %v2740
    %v2744 = vclz %v2743
    %v2745 = vsub.s32 %v2744, 2
    %vm2746 = vcmp.gt.s32.totalorder 0, %v2745
    %v2747 = vsel %vm2746, 0, %v2745
    %v2748 = vsub.s32 32, %v2747
    %v2749 = vshll.u32 %v2740, %v2747
    %v2750 = vshrl.u32 %v2732, %v2748
    %v2751 = vor.u32 %v2749, %v2750
    %v2752 = vsub.s32 4294967266, %v2747
    %v2753 = vadd.s32 %v2752, 127
    %v2754 = vshll.u32 %v2753, 23
    %v2755 = vor.u32 4788187, %v2754
    %v2756 = vand.u32 2147483647, %v2755
    %v2758 = vcvt.s32.f32 %v2751
    %v2759 = vmul.f32 %v2758, %v2756
    %v2760 = vxor.u32 %v2759, 2147483648
    %v2761 = vsel %vm2640, %v2760, %v2759
    %v2762 = vsub.s32 4, %v2738
    %v2763 = vsel %vm2640, %v2762, %v2738
    %v2764 = vsel %vm2639, %v1552, %v2761
    %v2765 = vsel %vm2639, 0, %v2763
    %v2766 = vmul.f32 %v2764, %v2764
    %v2767 = vmul.f32 %v2766, -0.001358992
    %v2768 = vadd.f32 %v2767, 0.041655596
    %v2769 = vmul.f32 %v2766, %v2768
    %v2770 = vadd.f32 %v2769, -0.4999988
    %v2771 = vmul.f32 %v2766, %v2770
    %v2772 = vadd.f32 1.0, %v2771
    %v2773 = vmul.f32 %v2764, %v2764
    %v2774 = vmul.f32 %v2773, -0.00019511016
    %v2775 = vadd.f32 %v2774, 0.008332121
    %v2776 = vmul.f32 %v2773, %v2775
    %v2777 = vadd.f32 %v2776, -0.16666654
    %v2778 = vmul.f32 %v2773, %v2777
    %v2779 = vadd.f32 %v2778, 1.0
    %v2780 = vmul.f32 %v2779, %v2764
    %vm2781 = vweird.f32 %v1552
    %v2782 = vadd.s32 %v2765, 3
    %v2783 = vand.u32 %v2782, 3
    %vm2784 = vcmp.lt.s32.totalorder %v2783, 2
    %vm2785 = vcmp.eq.s32.totalorder %v2783, 0
    %v2786 = vxor.u32 %v2780, 2147483648
    %v2787 = vsel %vm2785, %v2772, %v2786
    %vm2788 = vcmp.eq.s32.totalorder %v2783, 2
    %v2789 = vxor.u32 %v2772, 2147483648
    %v2790 = vsel %vm2788, %v2789, %v2780
    %v2791 = vsel %vm2784, %v2787, %v2790
    %v2792 = vsel %vm2781, nan, %v2791
    %v2793 = vld [vmem:[%s6] sm:$0xff]
    %v2794 = vld [vmem:[%s6 + $0x8] sm:$0xff]
    %v2795 = vld [vmem:[%s7] sm:$0xff]
    %v2796 = vld [vmem:[%s7 + $0x8] sm:$0xff]
    %2798 = vset.pattern.permute.xlu0 0
    %2799 = vperm.xlu0 %2798, %v2795
    %v2800 = vpop.permute.xlu0 %2799
    %2803 = vset.pattern.permute.xlu0 0
    %2804 = vperm.xlu0 %2803, %v2796
    %v2805 = vpop.permute.xlu0 %2804
    %v2808 = vsel %vm1446, %v2793, 0
    %v2811 = vsel %vm1446, %v2794, 0
    %2813 = vmatpush.msra.mxu0 0.0
    %2814 = vmatpush.msra.mxu0 0.0
    %2815 = vmatpush.msra.mxu0 0.0
    %2816 = vmatpush.msra.mxu0 0.0
    %2817 = vmatpush.msra.mxu0 0.0
    %2818 = vmatpush.msra.mxu0 0.0
    %2819 = vmatpush.msra.mxu0 0.0
    %2820 = vmatpush.msra.mxu0 0.0
    %2821 = vmatpush.msra.mxu0 0.0
    %2822 = vmatpush.msra.mxu0 0.0
    %2823 = vmatpush.msra.mxu0 0.0
    %2824 = vmatpush.msra.mxu0 0.0
    %2825 = vmatpush.msra.mxu0 0.0
    %2826 = vmatpush.msra.mxu0 0.0
    %2827 = vmatpush.msra.mxu0 %v2327
    %2828 = vmatpush.msra.mxu0 %v1707
    %2829 = vmatmul.f32.gmra.mxu0 %v2808
    %v2830 = vpop.f32.mrf.mxu0
    %v2831 = vadd.f32 %v2800, %v2830
    %2832 = vmatmul.f32.gmra.mxu0 %v2811
    %v2833 = vpop.f32.mrf.mxu0
    %v2834 = vadd.f32 %v2805, %v2833
    %2835 = vdwg.mxu0
    %2836 = vmatpush.msra.mxu0 0.0
    %2837 = vmatpush.msra.mxu0 0.0
    %2838 = vmatpush.msra.mxu0 0.0
    %2839 = vmatpush.msra.mxu0 0.0
    %2840 = vmatpush.msra.mxu0 0.0
    %2841 = vmatpush.msra.mxu0 0.0
    %2842 = vmatpush.msra.mxu0 0.0
    %2843 = vmatpush.msra.mxu0 0.0
    %2844 = vmatpush.msra.mxu0 0.0
    %2845 = vmatpush.msra.mxu0 0.0
    %2846 = vmatpush.msra.mxu0 0.0
    %2847 = vmatpush.msra.mxu0 0.0
    %2848 = vmatpush.msra.mxu0 0.0
    %2849 = vmatpush.msra.mxu0 0.0
    %2850 = vmatpush.msra.mxu0 %v2482
    %2851 = vmatpush.msra.mxu0 %v1862
    %2852 = vmatmul.f32.gmra.mxu0 %v2808
    %v2853 = vpop.f32.mrf.mxu0
    %v2854 = vadd.f32 %v2800, %v2853
    %2855 = vmatmul.f32.gmra.mxu0 %v2811
    %v2856 = vpop.f32.mrf.mxu0
    %v2857 = vadd.f32 %v2805, %v2856
    %2858 = vdwg.mxu0
    %2859 = vmatpush.msra.mxu0 0.0
    %2860 = vmatpush.msra.mxu0 0.0
    %2861 = vmatpush.msra.mxu0 0.0
    %2862 = vmatpush.msra.mxu0 0.0
    %2863 = vmatpush.msra.mxu0 0.0
    %2864 = vmatpush.msra.mxu0 0.0
    %2865 = vmatpush.msra.mxu0 0.0
    %2866 = vmatpush.msra.mxu0 0.0
    %2867 = vmatpush.msra.mxu0 0.0
    %2868 = vmatpush.msra.mxu0 0.0
    %2869 = vmatpush.msra.mxu0 0.0
    %2870 = vmatpush.msra.mxu0 0.0
    %2871 = vmatpush.msra.mxu0 0.0
    %2872 = vmatpush.msra.mxu0 0.0
    %2873 = vmatpush.msra.mxu0 %v2637
    %2874 = vmatpush.msra.mxu0 %v2017
    %2875 = vmatmul.f32.gmra.mxu0 %v2808
    %v2876 = vpop.f32.mrf.mxu0
    %v2877 = vadd.f32 %v2800, %v2876
    %2878 = vmatmul.f32.gmra.mxu0 %v2811
    %v2879 = vpop.f32.mrf.mxu0
    %v2880 = vadd.f32 %v2805, %v2879
    %2881 = vdwg.mxu0
    %2882 = vmatpush.msra.mxu0 0.0
    %2883 = vmatpush.msra.mxu0 0.0
    %2884 = vmatpush.msra.mxu0 0.0
    %2885 = vmatpush.msra.mxu0 0.0
    %2886 = vmatpush.msra.mxu0 0.0
    %2887 = vmatpush.msra.mxu0 0.0
    %2888 = vmatpush.msra.mxu0 0.0
    %2889 = vmatpush.msra.mxu0 0.0
    %2890 = vmatpush.msra.mxu0 0.0
    %2891 = vmatpush.msra.mxu0 0.0
    %2892 = vmatpush.msra.mxu0 0.0
    %2893 = vmatpush.msra.mxu0 0.0
    %2894 = vmatpush.msra.mxu0 0.0
    %2895 = vmatpush.msra.mxu0 0.0
    %2896 = vmatpush.msra.mxu0 %v2792
    %2897 = vmatpush.msra.mxu0 %v2172
    %2898 = vmatmul.f32.gmra.mxu0 %v2808
    %v2899 = vpop.f32.mrf.mxu0
    %v2900 = vadd.f32 %v2800, %v2899
    %2901 = vmatmul.f32.gmra.mxu0 %v2811
    %v2902 = vpop.f32.mrf.mxu0
    %v2903 = vadd.f32 %v2805, %v2902
    %2904 = vdwg.mxu0
    %v2905 = vmul.f32 %v177, %v2831
    %v2906 = vmul.f32 %v177, %v2854
    %v2907 = vmul.f32 %v177, %v2877
    %v2908 = vmul.f32 %v177, %v2900
    %v2909 = vmul.f32 %v182, %v2834
    %v2910 = vmul.f32 %v182, %v2857
    %v2911 = vmul.f32 %v182, %v2880
    %v2912 = vmul.f32 %v182, %v2903
    %v2913 = vand.u32 2147483647, %v2905
    %vm2914 = vcmp.le.f32.partialorder %v2913, 0.7853982
    %vm2915 = vcmp.lt.s32.totalorder %v2905, 0
    %v2916 = vand.u32 %v2905, 2139095040
    %v2917 = vshrl.u32 %v2916, 23
    %v2918 = vsub.s32 %v2917, 127
    %v2919 = vand.u32 2147483647, %v2905
    %v2920 = vand.u32 %v2919, 8388607
    %v2921 = vor.u32 %v2920, 8388608
    %v2922 = vsub.s32 0, %v2921
    %v2923 = vadd.s32 %v2918, 1
    %vm2924 = vcmp.gt.s32.totalorder %v2923, 0
    %v2925 = vsel %vm2924, %v2923, 0
    %v2926 = vshrl.u32 %v2925, 5
    %v2927 = vand.u32 %v2925, 31
    %v2928 = vsub.s32 32, %v2927
    %v2929 = vshrl.u32 683565275, %v2928
    %v2930 = vshll.u32 683565275, %v2927
    %v2931 = vshrl.u32 2475754826, %v2928
    %v2932 = vor.u32 %v2930, %v2931
    %v2933 = vshll.u32 2475754826, %v2927
    %v2934 = vshrl.u32 2131351028, %v2928
    %v2935 = vor.u32 %v2933, %v2934
    %v2936 = vshll.u32 2131351028, %v2927
    %v2937 = vshrl.u32 2102212464, %v2928
    %v2938 = vor.u32 %v2936, %v2937
    %v2939 = vshll.u32 2102212464, %v2927
    %v2940 = vshrl.u32 920167782, %v2928
    %v2941 = vor.u32 %v2939, %v2940
    %v2942 = vshll.u32 920167782, %v2927
    %v2943 = vshrl.u32 1326507024, %v2928
    %v2944 = vor.u32 %v2942, %v2943
    %vm2945 = vcmp.lt.s32.totalorder %v2926, 1
    %vm2946 = vcmp.lt.s32.totalorder %v2926, 2
    %vm2947 = vcmp.lt.s32.totalorder %v2926, 3
    %vm2948 = vcmp.lt.s32.totalorder %v2926, 4
    %v2949 = vsel %vm2945, %v2929, %v2932
    %v2950 = vsel %vm2948, %v2938, 2102212464
    %v2951 = vsel %vm2947, %v2935, %v2950
    %v2952 = vsel %vm2946, %v2949, %v2951
    %v2953 = vsel %vm2945, %v2932, %v2935
    %v2954 = vsel %vm2948, %v2941, 920167782
    %v2955 = vsel %vm2947, %v2938, %v2954
    %v2956 = vsel %vm2946, %v2953, %v2955
    %v2957 = vsel %vm2945, %v2935, %v2938
    %v2958 = vsel %vm2948, %v2944, 1326507024
    %v2959 = vsel %vm2947, %v2941, %v2958
    %v2960 = vsel %vm2946, %v2957, %v2959
    %v2961 = vshll.u32 %v2921, 8
    %v2962 = vand.u32 %v2961, 65535
    %v2963 = vshrl.u32 %v2961, 16
    %v2964 = vand.u32 %v2960, 65535
    %v2965 = vshrl.u32 %v2960, 16
    %v2966 = vmul.u32 %v2962, %v2964
    %v2967 = vmul.u32 %v2962, %v2965
    %v2968 = vmul.u32 %v2963, %v2964
    %v2969 = vmul.u32 %v2963, %v2965
    %v2970 = vshll.u32 %v2967, 16
    %v2971 = vshrl.u32 %v2967, 16
    %v2972 = vshll.u32 %v2968, 16
    %v2973 = vshrl.u32 %v2968, 16
    %vm2974 = vc.u32 %v2966, %v2970
    %v2975 = vsel %vm2974, 1, 0
    %v2976 = vadd.s32 %v2966, %v2970
    %v2977 = vadd.s32 %v2969, %v2975
    %vm2978 = vc.u32 %v2976, %v2972
    %v2979 = vsel %vm2978, 1, 0
    %v2980 = vadd.s32 %v2976, %v2972
    %v2981 = vadd.s32 %v2977, %v2979
    %v2982 = vadd.s32 %v2981, %v2971
    %v2983 = vadd.s32 %v2982, %v2973
    %v2984 = vand.u32 %v2961, 65535
    %v2985 = vshrl.u32 %v2961, 16
    %v2986 = vand.u32 %v2956, 65535
    %v2987 = vshrl.u32 %v2956, 16
    %v2988 = vmul.u32 %v2984, %v2986
    %v2989 = vmul.u32 %v2984, %v2987
    %v2990 = vmul.u32 %v2985, %v2986
    %v2991 = vmul.u32 %v2985, %v2987
    %v2992 = vshll.u32 %v2989, 16
    %v2993 = vshrl.u32 %v2989, 16
    %v2994 = vshll.u32 %v2990, 16
    %v2995 = vshrl.u32 %v2990, 16
    %vm2996 = vc.u32 %v2988, %v2992
    %v2997 = vsel %vm2996, 1, 0
    %v2998 = vadd.s32 %v2988, %v2992
    %v2999 = vadd.s32 %v2991, %v2997
    %vm3000 = vc.u32 %v2998, %v2994
    %v3001 = vsel %vm3000, 1, 0
    %v3002 = vadd.s32 %v2998, %v2994
    %v3003 = vadd.s32 %v2999, %v3001
    %v3004 = vadd.s32 %v3003, %v2993
    %v3005 = vadd.s32 %v3004, %v2995
    %v3006 = vmul.u32 %v2961, %v2952
    %v3007 = vadd.s32 %v2983, %v3002
    %vm3008 = vc.u32 %v2983, %v3002
    %v3009 = vadd.s32 %v3005, 1
    %v3010 = vsel %vm3008, %v3009, %v3005
    %v3011 = vadd.s32 %v3006, %v3010
    %v3012 = vadd.s32 %v3011, 536870912
    %v3013 = vshrl.u32 %v3012, 30
    %v3014 = vshll.u32 %v3013, 30
    %v3015 = vsub.s32 %v3011, %v3014
    %vm3016 = vcmp.lt.s32.totalorder %v3015, 0
    %v3017 = vsub.s32 0, %v3015
    %v3018 = vsel %vm3016, %v3017, %v3015
    %v3019 = vclz %v3018
    %v3020 = vsub.s32 %v3019, 2
    %vm3021 = vcmp.gt.s32.totalorder 0, %v3020
    %v3022 = vsel %vm3021, 0, %v3020
    %v3023 = vsub.s32 32, %v3022
    %v3024 = vshll.u32 %v3015, %v3022
    %v3025 = vshrl.u32 %v3007, %v3023
    %v3026 = vor.u32 %v3024, %v3025
    %v3027 = vsub.s32 4294967266, %v3022
    %v3028 = vadd.s32 %v3027, 127
    %v3029 = vshll.u32 %v3028, 23
    %v3030 = vor.u32 4788187, %v3029
    %v3031 = vand.u32 2147483647, %v3030
    %v3033 = vcvt.s32.f32 %v3026
    %v3034 = vmul.f32 %v3033, %v3031
    %v3035 = vxor.u32 %v3034, 2147483648
    %v3036 = vsel %vm2915, %v3035, %v3034
    %v3037 = vsub.s32 4, %v3013
    %v3038 = vsel %vm2915, %v3037, %v3013
    %v3039 = vsel %vm2914, %v2905, %v3036
    %v3040 = vsel %vm2914, 0, %v3038
    %v3041 = vmul.f32 %v3039, %v3039
    %v3042 = vmul.f32 %v3041, -0.001358992
    %v3043 = vadd.f32 %v3042, 0.041655596
    %v3044 = vmul.f32 %v3041, %v3043
    %v3045 = vadd.f32 %v3044, -0.4999988
    %v3046 = vmul.f32 %v3041, %v3045
    %v3047 = vadd.f32 1.0, %v3046
    %v3048 = vmul.f32 %v3039, %v3039
    %v3049 = vmul.f32 %v3048, -0.00019511016
    %v3050 = vadd.f32 %v3049, 0.008332121
    %v3051 = vmul.f32 %v3048, %v3050
    %v3052 = vadd.f32 %v3051, -0.16666654
    %v3053 = vmul.f32 %v3048, %v3052
    %v3054 = vadd.f32 %v3053, 1.0
    %v3055 = vmul.f32 %v3054, %v3039
    %vm3056 = vweird.f32 %v2905
    %v3057 = vadd.s32 %v3040, 3
    %v3058 = vand.u32 %v3057, 3
    %vm3059 = vcmp.lt.s32.totalorder %v3058, 2
    %vm3060 = vcmp.eq.s32.totalorder %v3058, 0
    %v3061 = vxor.u32 %v3055, 2147483648
    %v3062 = vsel %vm3060, %v3047, %v3061
    %vm3063 = vcmp.eq.s32.totalorder %v3058, 2
    %v3064 = vxor.u32 %v3047, 2147483648
    %v3065 = vsel %vm3063, %v3064, %v3055
    %v3066 = vsel %vm3059, %v3062, %v3065
    %v3067 = vsel %vm3056, nan, %v3066
    %v3068 = vand.u32 2147483647, %v2906
    %vm3069 = vcmp.le.f32.partialorder %v3068, 0.7853982
    %vm3070 = vcmp.lt.s32.totalorder %v2906, 0
    %v3071 = vand.u32 %v2906, 2139095040
    %v3072 = vshrl.u32 %v3071, 23
    %v3073 = vsub.s32 %v3072, 127
    %v3074 = vand.u32 2147483647, %v2906
    %v3075 = vand.u32 %v3074, 8388607
    %v3076 = vor.u32 %v3075, 8388608
    %v3077 = vsub.s32 0, %v3076
    %v3078 = vadd.s32 %v3073, 1
    %vm3079 = vcmp.gt.s32.totalorder %v3078, 0
    %v3080 = vsel %vm3079, %v3078, 0
    %v3081 = vshrl.u32 %v3080, 5
    %v3082 = vand.u32 %v3080, 31
    %v3083 = vsub.s32 32, %v3082
    %v3084 = vshrl.u32 683565275, %v3083
    %v3085 = vshll.u32 683565275, %v3082
    %v3086 = vshrl.u32 2475754826, %v3083
    %v3087 = vor.u32 %v3085, %v3086
    %v3088 = vshll.u32 2475754826, %v3082
    %v3089 = vshrl.u32 2131351028, %v3083
    %v3090 = vor.u32 %v3088, %v3089
    %v3091 = vshll.u32 2131351028, %v3082
    %v3092 = vshrl.u32 2102212464, %v3083
    %v3093 = vor.u32 %v3091, %v3092
    %v3094 = vshll.u32 2102212464, %v3082
    %v3095 = vshrl.u32 920167782, %v3083
    %v3096 = vor.u32 %v3094, %v3095
    %v3097 = vshll.u32 920167782, %v3082
    %v3098 = vshrl.u32 1326507024, %v3083
    %v3099 = vor.u32 %v3097, %v3098
    %vm3100 = vcmp.lt.s32.totalorder %v3081, 1
    %vm3101 = vcmp.lt.s32.totalorder %v3081, 2
    %vm3102 = vcmp.lt.s32.totalorder %v3081, 3
    %vm3103 = vcmp.lt.s32.totalorder %v3081, 4
    %v3104 = vsel %vm3100, %v3084, %v3087
    %v3105 = vsel %vm3103, %v3093, 2102212464
    %v3106 = vsel %vm3102, %v3090, %v3105
    %v3107 = vsel %vm3101, %v3104, %v3106
    %v3108 = vsel %vm3100, %v3087, %v3090
    %v3109 = vsel %vm3103, %v3096, 920167782
    %v3110 = vsel %vm3102, %v3093, %v3109
    %v3111 = vsel %vm3101, %v3108, %v3110
    %v3112 = vsel %vm3100, %v3090, %v3093
    %v3113 = vsel %vm3103, %v3099, 1326507024
    %v3114 = vsel %vm3102, %v3096, %v3113
    %v3115 = vsel %vm3101, %v3112, %v3114
    %v3116 = vshll.u32 %v3076, 8
    %v3117 = vand.u32 %v3116, 65535
    %v3118 = vshrl.u32 %v3116, 16
    %v3119 = vand.u32 %v3115, 65535
    %v3120 = vshrl.u32 %v3115, 16
    %v3121 = vmul.u32 %v3117, %v3119
    %v3122 = vmul.u32 %v3117, %v3120
    %v3123 = vmul.u32 %v3118, %v3119
    %v3124 = vmul.u32 %v3118, %v3120
    %v3125 = vshll.u32 %v3122, 16
    %v3126 = vshrl.u32 %v3122, 16
    %v3127 = vshll.u32 %v3123, 16
    %v3128 = vshrl.u32 %v3123, 16
    %vm3129 = vc.u32 %v3121, %v3125
    %v3130 = vsel %vm3129, 1, 0
    %v3131 = vadd.s32 %v3121, %v3125
    %v3132 = vadd.s32 %v3124, %v3130
    %vm3133 = vc.u32 %v3131, %v3127
    %v3134 = vsel %vm3133, 1, 0
    %v3135 = vadd.s32 %v3131, %v3127
    %v3136 = vadd.s32 %v3132, %v3134
    %v3137 = vadd.s32 %v3136, %v3126
    %v3138 = vadd.s32 %v3137, %v3128
    %v3139 = vand.u32 %v3116, 65535
    %v3140 = vshrl.u32 %v3116, 16
    %v3141 = vand.u32 %v3111, 65535
    %v3142 = vshrl.u32 %v3111, 16
    %v3143 = vmul.u32 %v3139, %v3141
    %v3144 = vmul.u32 %v3139, %v3142
    %v3145 = vmul.u32 %v3140, %v3141
    %v3146 = vmul.u32 %v3140, %v3142
    %v3147 = vshll.u32 %v3144, 16
    %v3148 = vshrl.u32 %v3144, 16
    %v3149 = vshll.u32 %v3145, 16
    %v3150 = vshrl.u32 %v3145, 16
    %vm3151 = vc.u32 %v3143, %v3147
    %v3152 = vsel %vm3151, 1, 0
    %v3153 = vadd.s32 %v3143, %v3147
    %v3154 = vadd.s32 %v3146, %v3152
    %vm3155 = vc.u32 %v3153, %v3149
    %v3156 = vsel %vm3155, 1, 0
    %v3157 = vadd.s32 %v3153, %v3149
    %v3158 = vadd.s32 %v3154, %v3156
    %v3159 = vadd.s32 %v3158, %v3148
    %v3160 = vadd.s32 %v3159, %v3150
    %v3161 = vmul.u32 %v3116, %v3107
    %v3162 = vadd.s32 %v3138, %v3157
    %vm3163 = vc.u32 %v3138, %v3157
    %v3164 = vadd.s32 %v3160, 1
    %v3165 = vsel %vm3163, %v3164, %v3160
    %v3166 = vadd.s32 %v3161, %v3165
    %v3167 = vadd.s32 %v3166, 536870912
    %v3168 = vshrl.u32 %v3167, 30
    %v3169 = vshll.u32 %v3168, 30
    %v3170 = vsub.s32 %v3166, %v3169
    %vm3171 = vcmp.lt.s32.totalorder %v3170, 0
    %v3172 = vsub.s32 0, %v3170
    %v3173 = vsel %vm3171, %v3172, %v3170
    %v3174 = vclz %v3173
    %v3175 = vsub.s32 %v3174, 2
    %vm3176 = vcmp.gt.s32.totalorder 0, %v3175
    %v3177 = vsel %vm3176, 0, %v3175
    %v3178 = vsub.s32 32, %v3177
    %v3179 = vshll.u32 %v3170, %v3177
    %v3180 = vshrl.u32 %v3162, %v3178
    %v3181 = vor.u32 %v3179, %v3180
    %v3182 = vsub.s32 4294967266, %v3177
    %v3183 = vadd.s32 %v3182, 127
    %v3184 = vshll.u32 %v3183, 23
    %v3185 = vor.u32 4788187, %v3184
    %v3186 = vand.u32 2147483647, %v3185
    %v3188 = vcvt.s32.f32 %v3181
    %v3189 = vmul.f32 %v3188, %v3186
    %v3190 = vxor.u32 %v3189, 2147483648
    %v3191 = vsel %vm3070, %v3190, %v3189
    %v3192 = vsub.s32 4, %v3168
    %v3193 = vsel %vm3070, %v3192, %v3168
    %v3194 = vsel %vm3069, %v2906, %v3191
    %v3195 = vsel %vm3069, 0, %v3193
    %v3196 = vmul.f32 %v3194, %v3194
    %v3197 = vmul.f32 %v3196, -0.001358992
    %v3198 = vadd.f32 %v3197, 0.041655596
    %v3199 = vmul.f32 %v3196, %v3198
    %v3200 = vadd.f32 %v3199, -0.4999988
    %v3201 = vmul.f32 %v3196, %v3200
    %v3202 = vadd.f32 1.0, %v3201
    %v3203 = vmul.f32 %v3194, %v3194
    %v3204 = vmul.f32 %v3203, -0.00019511016
    %v3205 = vadd.f32 %v3204, 0.008332121
    %v3206 = vmul.f32 %v3203, %v3205
    %v3207 = vadd.f32 %v3206, -0.16666654
    %v3208 = vmul.f32 %v3203, %v3207
    %v3209 = vadd.f32 %v3208, 1.0
    %v3210 = vmul.f32 %v3209, %v3194
    %vm3211 = vweird.f32 %v2906
    %v3212 = vadd.s32 %v3195, 3
    %v3213 = vand.u32 %v3212, 3
    %vm3214 = vcmp.lt.s32.totalorder %v3213, 2
    %vm3215 = vcmp.eq.s32.totalorder %v3213, 0
    %v3216 = vxor.u32 %v3210, 2147483648
    %v3217 = vsel %vm3215, %v3202, %v3216
    %vm3218 = vcmp.eq.s32.totalorder %v3213, 2
    %v3219 = vxor.u32 %v3202, 2147483648
    %v3220 = vsel %vm3218, %v3219, %v3210
    %v3221 = vsel %vm3214, %v3217, %v3220
    %v3222 = vsel %vm3211, nan, %v3221
    %v3223 = vand.u32 2147483647, %v2907
    %vm3224 = vcmp.le.f32.partialorder %v3223, 0.7853982
    %vm3225 = vcmp.lt.s32.totalorder %v2907, 0
    %v3226 = vand.u32 %v2907, 2139095040
    %v3227 = vshrl.u32 %v3226, 23
    %v3228 = vsub.s32 %v3227, 127
    %v3229 = vand.u32 2147483647, %v2907
    %v3230 = vand.u32 %v3229, 8388607
    %v3231 = vor.u32 %v3230, 8388608
    %v3232 = vsub.s32 0, %v3231
    %v3233 = vadd.s32 %v3228, 1
    %vm3234 = vcmp.gt.s32.totalorder %v3233, 0
    %v3235 = vsel %vm3234, %v3233, 0
    %v3236 = vshrl.u32 %v3235, 5
    %v3237 = vand.u32 %v3235, 31
    %v3238 = vsub.s32 32, %v3237
    %v3239 = vshrl.u32 683565275, %v3238
    %v3240 = vshll.u32 683565275, %v3237
    %v3241 = vshrl.u32 2475754826, %v3238
    %v3242 = vor.u32 %v3240, %v3241
    %v3243 = vshll.u32 2475754826, %v3237
    %v3244 = vshrl.u32 2131351028, %v3238
    %v3245 = vor.u32 %v3243, %v3244
    %v3246 = vshll.u32 2131351028, %v3237
    %v3247 = vshrl.u32 2102212464, %v3238
    %v3248 = vor.u32 %v3246, %v3247
    %v3249 = vshll.u32 2102212464, %v3237
    %v3250 = vshrl.u32 920167782, %v3238
    %v3251 = vor.u32 %v3249, %v3250
    %v3252 = vshll.u32 920167782, %v3237
    %v3253 = vshrl.u32 1326507024, %v3238
    %v3254 = vor.u32 %v3252, %v3253
    %vm3255 = vcmp.lt.s32.totalorder %v3236, 1
    %vm3256 = vcmp.lt.s32.totalorder %v3236, 2
    %vm3257 = vcmp.lt.s32.totalorder %v3236, 3
    %vm3258 = vcmp.lt.s32.totalorder %v3236, 4
    %v3259 = vsel %vm3255, %v3239, %v3242
    %v3260 = vsel %vm3258, %v3248, 2102212464
    %v3261 = vsel %vm3257, %v3245, %v3260
    %v3262 = vsel %vm3256, %v3259, %v3261
    %v3263 = vsel %vm3255, %v3242, %v3245
    %v3264 = vsel %vm3258, %v3251, 920167782
    %v3265 = vsel %vm3257, %v3248, %v3264
    %v3266 = vsel %vm3256, %v3263, %v3265
    %v3267 = vsel %vm3255, %v3245, %v3248
    %v3268 = vsel %vm3258, %v3254, 1326507024
    %v3269 = vsel %vm3257, %v3251, %v3268
    %v3270 = vsel %vm3256, %v3267, %v3269
    %v3271 = vshll.u32 %v3231, 8
    %v3272 = vand.u32 %v3271, 65535
    %v3273 = vshrl.u32 %v3271, 16
    %v3274 = vand.u32 %v3270, 65535
    %v3275 = vshrl.u32 %v3270, 16
    %v3276 = vmul.u32 %v3272, %v3274
    %v3277 = vmul.u32 %v3272, %v3275
    %v3278 = vmul.u32 %v3273, %v3274
    %v3279 = vmul.u32 %v3273, %v3275
    %v3280 = vshll.u32 %v3277, 16
    %v3281 = vshrl.u32 %v3277, 16
    %v3282 = vshll.u32 %v3278, 16
    %v3283 = vshrl.u32 %v3278, 16
    %vm3284 = vc.u32 %v3276, %v3280
    %v3285 = vsel %vm3284, 1, 0
    %v3286 = vadd.s32 %v3276, %v3280
    %v3287 = vadd.s32 %v3279, %v3285
    %vm3288 = vc.u32 %v3286, %v3282
    %v3289 = vsel %vm3288, 1, 0
    %v3290 = vadd.s32 %v3286, %v3282
    %v3291 = vadd.s32 %v3287, %v3289
    %v3292 = vadd.s32 %v3291, %v3281
    %v3293 = vadd.s32 %v3292, %v3283
    %v3294 = vand.u32 %v3271, 65535
    %v3295 = vshrl.u32 %v3271, 16
    %v3296 = vand.u32 %v3266, 65535
    %v3297 = vshrl.u32 %v3266, 16
    %v3298 = vmul.u32 %v3294, %v3296
    %v3299 = vmul.u32 %v3294, %v3297
    %v3300 = vmul.u32 %v3295, %v3296
    %v3301 = vmul.u32 %v3295, %v3297
    %v3302 = vshll.u32 %v3299, 16
    %v3303 = vshrl.u32 %v3299, 16
    %v3304 = vshll.u32 %v3300, 16
    %v3305 = vshrl.u32 %v3300, 16
    %vm3306 = vc.u32 %v3298, %v3302
    %v3307 = vsel %vm3306, 1, 0
    %v3308 = vadd.s32 %v3298, %v3302
    %v3309 = vadd.s32 %v3301, %v3307
    %vm3310 = vc.u32 %v3308, %v3304
    %v3311 = vsel %vm3310, 1, 0
    %v3312 = vadd.s32 %v3308, %v3304
    %v3313 = vadd.s32 %v3309, %v3311
    %v3314 = vadd.s32 %v3313, %v3303
    %v3315 = vadd.s32 %v3314, %v3305
    %v3316 = vmul.u32 %v3271, %v3262
    %v3317 = vadd.s32 %v3293, %v3312
    %vm3318 = vc.u32 %v3293, %v3312
    %v3319 = vadd.s32 %v3315, 1
    %v3320 = vsel %vm3318, %v3319, %v3315
    %v3321 = vadd.s32 %v3316, %v3320
    %v3322 = vadd.s32 %v3321, 536870912
    %v3323 = vshrl.u32 %v3322, 30
    %v3324 = vshll.u32 %v3323, 30
    %v3325 = vsub.s32 %v3321, %v3324
    %vm3326 = vcmp.lt.s32.totalorder %v3325, 0
    %v3327 = vsub.s32 0, %v3325
    %v3328 = vsel %vm3326, %v3327, %v3325
    %v3329 = vclz %v3328
    %v3330 = vsub.s32 %v3329, 2
    %vm3331 = vcmp.gt.s32.totalorder 0, %v3330
    %v3332 = vsel %vm3331, 0, %v3330
    %v3333 = vsub.s32 32, %v3332
    %v3334 = vshll.u32 %v3325, %v3332
    %v3335 = vshrl.u32 %v3317, %v3333
    %v3336 = vor.u32 %v3334, %v3335
    %v3337 = vsub.s32 4294967266, %v3332
    %v3338 = vadd.s32 %v3337, 127
    %v3339 = vshll.u32 %v3338, 23
    %v3340 = vor.u32 4788187, %v3339
    %v3341 = vand.u32 2147483647, %v3340
    %v3343 = vcvt.s32.f32 %v3336
    %v3344 = vmul.f32 %v3343, %v3341
    %v3345 = vxor.u32 %v3344, 2147483648
    %v3346 = vsel %vm3225, %v3345, %v3344
    %v3347 = vsub.s32 4, %v3323
    %v3348 = vsel %vm3225, %v3347, %v3323
    %v3349 = vsel %vm3224, %v2907, %v3346
    %v3350 = vsel %vm3224, 0, %v3348
    %v3351 = vmul.f32 %v3349, %v3349
    %v3352 = vmul.f32 %v3351, -0.001358992
    %v3353 = vadd.f32 %v3352, 0.041655596
    %v3354 = vmul.f32 %v3351, %v3353
    %v3355 = vadd.f32 %v3354, -0.4999988
    %v3356 = vmul.f32 %v3351, %v3355
    %v3357 = vadd.f32 1.0, %v3356
    %v3358 = vmul.f32 %v3349, %v3349
    %v3359 = vmul.f32 %v3358, -0.00019511016
    %v3360 = vadd.f32 %v3359, 0.008332121
    %v3361 = vmul.f32 %v3358, %v3360
    %v3362 = vadd.f32 %v3361, -0.16666654
    %v3363 = vmul.f32 %v3358, %v3362
    %v3364 = vadd.f32 %v3363, 1.0
    %v3365 = vmul.f32 %v3364, %v3349
    %vm3366 = vweird.f32 %v2907
    %v3367 = vadd.s32 %v3350, 3
    %v3368 = vand.u32 %v3367, 3
    %vm3369 = vcmp.lt.s32.totalorder %v3368, 2
    %vm3370 = vcmp.eq.s32.totalorder %v3368, 0
    %v3371 = vxor.u32 %v3365, 2147483648
    %v3372 = vsel %vm3370, %v3357, %v3371
    %vm3373 = vcmp.eq.s32.totalorder %v3368, 2
    %v3374 = vxor.u32 %v3357, 2147483648
    %v3375 = vsel %vm3373, %v3374, %v3365
    %v3376 = vsel %vm3369, %v3372, %v3375
    %v3377 = vsel %vm3366, nan, %v3376
    %v3378 = vand.u32 2147483647, %v2908
    %vm3379 = vcmp.le.f32.partialorder %v3378, 0.7853982
    %vm3380 = vcmp.lt.s32.totalorder %v2908, 0
    %v3381 = vand.u32 %v2908, 2139095040
    %v3382 = vshrl.u32 %v3381, 23
    %v3383 = vsub.s32 %v3382, 127
    %v3384 = vand.u32 2147483647, %v2908
    %v3385 = vand.u32 %v3384, 8388607
    %v3386 = vor.u32 %v3385, 8388608
    %v3387 = vsub.s32 0, %v3386
    %v3388 = vadd.s32 %v3383, 1
    %vm3389 = vcmp.gt.s32.totalorder %v3388, 0
    %v3390 = vsel %vm3389, %v3388, 0
    %v3391 = vshrl.u32 %v3390, 5
    %v3392 = vand.u32 %v3390, 31
    %v3393 = vsub.s32 32, %v3392
    %v3394 = vshrl.u32 683565275, %v3393
    %v3395 = vshll.u32 683565275, %v3392
    %v3396 = vshrl.u32 2475754826, %v3393
    %v3397 = vor.u32 %v3395, %v3396
    %v3398 = vshll.u32 2475754826, %v3392
    %v3399 = vshrl.u32 2131351028, %v3393
    %v3400 = vor.u32 %v3398, %v3399
    %v3401 = vshll.u32 2131351028, %v3392
    %v3402 = vshrl.u32 2102212464, %v3393
    %v3403 = vor.u32 %v3401, %v3402
    %v3404 = vshll.u32 2102212464, %v3392
    %v3405 = vshrl.u32 920167782, %v3393
    %v3406 = vor.u32 %v3404, %v3405
    %v3407 = vshll.u32 920167782, %v3392
    %v3408 = vshrl.u32 1326507024, %v3393
    %v3409 = vor.u32 %v3407, %v3408
    %vm3410 = vcmp.lt.s32.totalorder %v3391, 1
    %vm3411 = vcmp.lt.s32.totalorder %v3391, 2
    %vm3412 = vcmp.lt.s32.totalorder %v3391, 3
    %vm3413 = vcmp.lt.s32.totalorder %v3391, 4
    %v3414 = vsel %vm3410, %v3394, %v3397
    %v3415 = vsel %vm3413, %v3403, 2102212464
    %v3416 = vsel %vm3412, %v3400, %v3415
    %v3417 = vsel %vm3411, %v3414, %v3416
    %v3418 = vsel %vm3410, %v3397, %v3400
    %v3419 = vsel %vm3413, %v3406, 920167782
    %v3420 = vsel %vm3412, %v3403, %v3419
    %v3421 = vsel %vm3411, %v3418, %v3420
    %v3422 = vsel %vm3410, %v3400, %v3403
    %v3423 = vsel %vm3413, %v3409, 1326507024
    %v3424 = vsel %vm3412, %v3406, %v3423
    %v3425 = vsel %vm3411, %v3422, %v3424
    %v3426 = vshll.u32 %v3386, 8
    %v3427 = vand.u32 %v3426, 65535
    %v3428 = vshrl.u32 %v3426, 16
    %v3429 = vand.u32 %v3425, 65535
    %v3430 = vshrl.u32 %v3425, 16
    %v3431 = vmul.u32 %v3427, %v3429
    %v3432 = vmul.u32 %v3427, %v3430
    %v3433 = vmul.u32 %v3428, %v3429
    %v3434 = vmul.u32 %v3428, %v3430
    %v3435 = vshll.u32 %v3432, 16
    %v3436 = vshrl.u32 %v3432, 16
    %v3437 = vshll.u32 %v3433, 16
    %v3438 = vshrl.u32 %v3433, 16
    %vm3439 = vc.u32 %v3431, %v3435
    %v3440 = vsel %vm3439, 1, 0
    %v3441 = vadd.s32 %v3431, %v3435
    %v3442 = vadd.s32 %v3434, %v3440
    %vm3443 = vc.u32 %v3441, %v3437
    %v3444 = vsel %vm3443, 1, 0
    %v3445 = vadd.s32 %v3441, %v3437
    %v3446 = vadd.s32 %v3442, %v3444
    %v3447 = vadd.s32 %v3446, %v3436
    %v3448 = vadd.s32 %v3447, %v3438
    %v3449 = vand.u32 %v3426, 65535
    %v3450 = vshrl.u32 %v3426, 16
    %v3451 = vand.u32 %v3421, 65535
    %v3452 = vshrl.u32 %v3421, 16
    %v3453 = vmul.u32 %v3449, %v3451
    %v3454 = vmul.u32 %v3449, %v3452
    %v3455 = vmul.u32 %v3450, %v3451
    %v3456 = vmul.u32 %v3450, %v3452
    %v3457 = vshll.u32 %v3454, 16
    %v3458 = vshrl.u32 %v3454, 16
    %v3459 = vshll.u32 %v3455, 16
    %v3460 = vshrl.u32 %v3455, 16
    %vm3461 = vc.u32 %v3453, %v3457
    %v3462 = vsel %vm3461, 1, 0
    %v3463 = vadd.s32 %v3453, %v3457
    %v3464 = vadd.s32 %v3456, %v3462
    %vm3465 = vc.u32 %v3463, %v3459
    %v3466 = vsel %vm3465, 1, 0
    %v3467 = vadd.s32 %v3463, %v3459
    %v3468 = vadd.s32 %v3464, %v3466
    %v3469 = vadd.s32 %v3468, %v3458
    %v3470 = vadd.s32 %v3469, %v3460
    %v3471 = vmul.u32 %v3426, %v3417
    %v3472 = vadd.s32 %v3448, %v3467
    %vm3473 = vc.u32 %v3448, %v3467
    %v3474 = vadd.s32 %v3470, 1
    %v3475 = vsel %vm3473, %v3474, %v3470
    %v3476 = vadd.s32 %v3471, %v3475
    %v3477 = vadd.s32 %v3476, 536870912
    %v3478 = vshrl.u32 %v3477, 30
    %v3479 = vshll.u32 %v3478, 30
    %v3480 = vsub.s32 %v3476, %v3479
    %vm3481 = vcmp.lt.s32.totalorder %v3480, 0
    %v3482 = vsub.s32 0, %v3480
    %v3483 = vsel %vm3481, %v3482, %v3480
    %v3484 = vclz %v3483
    %v3485 = vsub.s32 %v3484, 2
    %vm3486 = vcmp.gt.s32.totalorder 0, %v3485
    %v3487 = vsel %vm3486, 0, %v3485
    %v3488 = vsub.s32 32, %v3487
    %v3489 = vshll.u32 %v3480, %v3487
    %v3490 = vshrl.u32 %v3472, %v3488
    %v3491 = vor.u32 %v3489, %v3490
    %v3492 = vsub.s32 4294967266, %v3487
    %v3493 = vadd.s32 %v3492, 127
    %v3494 = vshll.u32 %v3493, 23
    %v3495 = vor.u32 4788187, %v3494
    %v3496 = vand.u32 2147483647, %v3495
    %v3498 = vcvt.s32.f32 %v3491
    %v3499 = vmul.f32 %v3498, %v3496
    %v3500 = vxor.u32 %v3499, 2147483648
    %v3501 = vsel %vm3380, %v3500, %v3499
    %v3502 = vsub.s32 4, %v3478
    %v3503 = vsel %vm3380, %v3502, %v3478
    %v3504 = vsel %vm3379, %v2908, %v3501
    %v3505 = vsel %vm3379, 0, %v3503
    %v3506 = vmul.f32 %v3504, %v3504
    %v3507 = vmul.f32 %v3506, -0.001358992
    %v3508 = vadd.f32 %v3507, 0.041655596
    %v3509 = vmul.f32 %v3506, %v3508
    %v3510 = vadd.f32 %v3509, -0.4999988
    %v3511 = vmul.f32 %v3506, %v3510
    %v3512 = vadd.f32 1.0, %v3511
    %v3513 = vmul.f32 %v3504, %v3504
    %v3514 = vmul.f32 %v3513, -0.00019511016
    %v3515 = vadd.f32 %v3514, 0.008332121
    %v3516 = vmul.f32 %v3513, %v3515
    %v3517 = vadd.f32 %v3516, -0.16666654
    %v3518 = vmul.f32 %v3513, %v3517
    %v3519 = vadd.f32 %v3518, 1.0
    %v3520 = vmul.f32 %v3519, %v3504
    %vm3521 = vweird.f32 %v2908
    %v3522 = vadd.s32 %v3505, 3
    %v3523 = vand.u32 %v3522, 3
    %vm3524 = vcmp.lt.s32.totalorder %v3523, 2
    %vm3525 = vcmp.eq.s32.totalorder %v3523, 0
    %v3526 = vxor.u32 %v3520, 2147483648
    %v3527 = vsel %vm3525, %v3512, %v3526
    %vm3528 = vcmp.eq.s32.totalorder %v3523, 2
    %v3529 = vxor.u32 %v3512, 2147483648
    %v3530 = vsel %vm3528, %v3529, %v3520
    %v3531 = vsel %vm3524, %v3527, %v3530
    %v3532 = vsel %vm3521, nan, %v3531
    %v3533 = vand.u32 2147483647, %v2909
    %vm3534 = vcmp.le.f32.partialorder %v3533, 0.7853982
    %vm3535 = vcmp.lt.s32.totalorder %v2909, 0
    %v3536 = vand.u32 %v2909, 2139095040
    %v3537 = vshrl.u32 %v3536, 23
    %v3538 = vsub.s32 %v3537, 127
    %v3539 = vand.u32 2147483647, %v2909
    %v3540 = vand.u32 %v3539, 8388607
    %v3541 = vor.u32 %v3540, 8388608
    %v3542 = vsub.s32 0, %v3541
    %v3543 = vadd.s32 %v3538, 1
    %vm3544 = vcmp.gt.s32.totalorder %v3543, 0
    %v3545 = vsel %vm3544, %v3543, 0
    %v3546 = vshrl.u32 %v3545, 5
    %v3547 = vand.u32 %v3545, 31
    %v3548 = vsub.s32 32, %v3547
    %v3549 = vshrl.u32 683565275, %v3548
    %v3550 = vshll.u32 683565275, %v3547
    %v3551 = vshrl.u32 2475754826, %v3548
    %v3552 = vor.u32 %v3550, %v3551
    %v3553 = vshll.u32 2475754826, %v3547
    %v3554 = vshrl.u32 2131351028, %v3548
    %v3555 = vor.u32 %v3553, %v3554
    %v3556 = vshll.u32 2131351028, %v3547
    %v3557 = vshrl.u32 2102212464, %v3548
    %v3558 = vor.u32 %v3556, %v3557
    %v3559 = vshll.u32 2102212464, %v3547
    %v3560 = vshrl.u32 920167782, %v3548
    %v3561 = vor.u32 %v3559, %v3560
    %v3562 = vshll.u32 920167782, %v3547
    %v3563 = vshrl.u32 1326507024, %v3548
    %v3564 = vor.u32 %v3562, %v3563
    %vm3565 = vcmp.lt.s32.totalorder %v3546, 1
    %vm3566 = vcmp.lt.s32.totalorder %v3546, 2
    %vm3567 = vcmp.lt.s32.totalorder %v3546, 3
    %vm3568 = vcmp.lt.s32.totalorder %v3546, 4
    %v3569 = vsel %vm3565, %v3549, %v3552
    %v3570 = vsel %vm3568, %v3558, 2102212464
    %v3571 = vsel %vm3567, %v3555, %v3570
    %v3572 = vsel %vm3566, %v3569, %v3571
    %v3573 = vsel %vm3565, %v3552, %v3555
    %v3574 = vsel %vm3568, %v3561, 920167782
    %v3575 = vsel %vm3567, %v3558, %v3574
    %v3576 = vsel %vm3566, %v3573, %v3575
    %v3577 = vsel %vm3565, %v3555, %v3558
    %v3578 = vsel %vm3568, %v3564, 1326507024
    %v3579 = vsel %vm3567, %v3561, %v3578
    %v3580 = vsel %vm3566, %v3577, %v3579
    %v3581 = vshll.u32 %v3541, 8
    %v3582 = vand.u32 %v3581, 65535
    %v3583 = vshrl.u32 %v3581, 16
    %v3584 = vand.u32 %v3580, 65535
    %v3585 = vshrl.u32 %v3580, 16
    %v3586 = vmul.u32 %v3582, %v3584
    %v3587 = vmul.u32 %v3582, %v3585
    %v3588 = vmul.u32 %v3583, %v3584
    %v3589 = vmul.u32 %v3583, %v3585
    %v3590 = vshll.u32 %v3587, 16
    %v3591 = vshrl.u32 %v3587, 16
    %v3592 = vshll.u32 %v3588, 16
    %v3593 = vshrl.u32 %v3588, 16
    %vm3594 = vc.u32 %v3586, %v3590
    %v3595 = vsel %vm3594, 1, 0
    %v3596 = vadd.s32 %v3586, %v3590
    %v3597 = vadd.s32 %v3589, %v3595
    %vm3598 = vc.u32 %v3596, %v3592
    %v3599 = vsel %vm3598, 1, 0
    %v3600 = vadd.s32 %v3596, %v3592
    %v3601 = vadd.s32 %v3597, %v3599
    %v3602 = vadd.s32 %v3601, %v3591
    %v3603 = vadd.s32 %v3602, %v3593
    %v3604 = vand.u32 %v3581, 65535
    %v3605 = vshrl.u32 %v3581, 16
    %v3606 = vand.u32 %v3576, 65535
    %v3607 = vshrl.u32 %v3576, 16
    %v3608 = vmul.u32 %v3604, %v3606
    %v3609 = vmul.u32 %v3604, %v3607
    %v3610 = vmul.u32 %v3605, %v3606
    %v3611 = vmul.u32 %v3605, %v3607
    %v3612 = vshll.u32 %v3609, 16
    %v3613 = vshrl.u32 %v3609, 16
    %v3614 = vshll.u32 %v3610, 16
    %v3615 = vshrl.u32 %v3610, 16
    %vm3616 = vc.u32 %v3608, %v3612
    %v3617 = vsel %vm3616, 1, 0
    %v3618 = vadd.s32 %v3608, %v3612
    %v3619 = vadd.s32 %v3611, %v3617
    %vm3620 = vc.u32 %v3618, %v3614
    %v3621 = vsel %vm3620, 1, 0
    %v3622 = vadd.s32 %v3618, %v3614
    %v3623 = vadd.s32 %v3619, %v3621
    %v3624 = vadd.s32 %v3623, %v3613
    %v3625 = vadd.s32 %v3624, %v3615
    %v3626 = vmul.u32 %v3581, %v3572
    %v3627 = vadd.s32 %v3603, %v3622
    %vm3628 = vc.u32 %v3603, %v3622
    %v3629 = vadd.s32 %v3625, 1
    %v3630 = vsel %vm3628, %v3629, %v3625
    %v3631 = vadd.s32 %v3626, %v3630
    %v3632 = vadd.s32 %v3631, 536870912
    %v3633 = vshrl.u32 %v3632, 30
    %v3634 = vshll.u32 %v3633, 30
    %v3635 = vsub.s32 %v3631, %v3634
    %vm3636 = vcmp.lt.s32.totalorder %v3635, 0
    %v3637 = vsub.s32 0, %v3635
    %v3638 = vsel %vm3636, %v3637, %v3635
    %v3639 = vclz %v3638
    %v3640 = vsub.s32 %v3639, 2
    %vm3641 = vcmp.gt.s32.totalorder 0, %v3640
    %v3642 = vsel %vm3641, 0, %v3640
    %v3643 = vsub.s32 32, %v3642
    %v3644 = vshll.u32 %v3635, %v3642
    %v3645 = vshrl.u32 %v3627, %v3643
    %v3646 = vor.u32 %v3644, %v3645
    %v3647 = vsub.s32 4294967266, %v3642
    %v3648 = vadd.s32 %v3647, 127
    %v3649 = vshll.u32 %v3648, 23
    %v3650 = vor.u32 4788187, %v3649
    %v3651 = vand.u32 2147483647, %v3650
    %v3653 = vcvt.s32.f32 %v3646
    %v3654 = vmul.f32 %v3653, %v3651
    %v3655 = vxor.u32 %v3654, 2147483648
    %v3656 = vsel %vm3535, %v3655, %v3654
    %v3657 = vsub.s32 4, %v3633
    %v3658 = vsel %vm3535, %v3657, %v3633
    %v3659 = vsel %vm3534, %v2909, %v3656
    %v3660 = vsel %vm3534, 0, %v3658
    %v3661 = vmul.f32 %v3659, %v3659
    %v3662 = vmul.f32 %v3661, -0.001358992
    %v3663 = vadd.f32 %v3662, 0.041655596
    %v3664 = vmul.f32 %v3661, %v3663
    %v3665 = vadd.f32 %v3664, -0.4999988
    %v3666 = vmul.f32 %v3661, %v3665
    %v3667 = vadd.f32 1.0, %v3666
    %v3668 = vmul.f32 %v3659, %v3659
    %v3669 = vmul.f32 %v3668, -0.00019511016
    %v3670 = vadd.f32 %v3669, 0.008332121
    %v3671 = vmul.f32 %v3668, %v3670
    %v3672 = vadd.f32 %v3671, -0.16666654
    %v3673 = vmul.f32 %v3668, %v3672
    %v3674 = vadd.f32 %v3673, 1.0
    %v3675 = vmul.f32 %v3674, %v3659
    %vm3676 = vweird.f32 %v2909
    %v3677 = vadd.s32 %v3660, 3
    %v3678 = vand.u32 %v3677, 3
    %vm3679 = vcmp.lt.s32.totalorder %v3678, 2
    %vm3680 = vcmp.eq.s32.totalorder %v3678, 0
    %v3681 = vxor.u32 %v3675, 2147483648
    %v3682 = vsel %vm3680, %v3667, %v3681
    %vm3683 = vcmp.eq.s32.totalorder %v3678, 2
    %v3684 = vxor.u32 %v3667, 2147483648
    %v3685 = vsel %vm3683, %v3684, %v3675
    %v3686 = vsel %vm3679, %v3682, %v3685
    %v3687 = vsel %vm3676, nan, %v3686
    %v3688 = vand.u32 2147483647, %v2910
    %vm3689 = vcmp.le.f32.partialorder %v3688, 0.7853982
    %vm3690 = vcmp.lt.s32.totalorder %v2910, 0
    %v3691 = vand.u32 %v2910, 2139095040
    %v3692 = vshrl.u32 %v3691, 23
    %v3693 = vsub.s32 %v3692, 127
    %v3694 = vand.u32 2147483647, %v2910
    %v3695 = vand.u32 %v3694, 8388607
    %v3696 = vor.u32 %v3695, 8388608
    %v3697 = vsub.s32 0, %v3696
    %v3698 = vadd.s32 %v3693, 1
    %vm3699 = vcmp.gt.s32.totalorder %v3698, 0
    %v3700 = vsel %vm3699, %v3698, 0
    %v3701 = vshrl.u32 %v3700, 5
    %v3702 = vand.u32 %v3700, 31
    %v3703 = vsub.s32 32, %v3702
    %v3704 = vshrl.u32 683565275, %v3703
    %v3705 = vshll.u32 683565275, %v3702
    %v3706 = vshrl.u32 2475754826, %v3703
    %v3707 = vor.u32 %v3705, %v3706
    %v3708 = vshll.u32 2475754826, %v3702
    %v3709 = vshrl.u32 2131351028, %v3703
    %v3710 = vor.u32 %v3708, %v3709
    %v3711 = vshll.u32 2131351028, %v3702
    %v3712 = vshrl.u32 2102212464, %v3703
    %v3713 = vor.u32 %v3711, %v3712
    %v3714 = vshll.u32 2102212464, %v3702
    %v3715 = vshrl.u32 920167782, %v3703
    %v3716 = vor.u32 %v3714, %v3715
    %v3717 = vshll.u32 920167782, %v3702
    %v3718 = vshrl.u32 1326507024, %v3703
    %v3719 = vor.u32 %v3717, %v3718
    %vm3720 = vcmp.lt.s32.totalorder %v3701, 1
    %vm3721 = vcmp.lt.s32.totalorder %v3701, 2
    %vm3722 = vcmp.lt.s32.totalorder %v3701, 3
    %vm3723 = vcmp.lt.s32.totalorder %v3701, 4
    %v3724 = vsel %vm3720, %v3704, %v3707
    %v3725 = vsel %vm3723, %v3713, 2102212464
    %v3726 = vsel %vm3722, %v3710, %v3725
    %v3727 = vsel %vm3721, %v3724, %v3726
    %v3728 = vsel %vm3720, %v3707, %v3710
    %v3729 = vsel %vm3723, %v3716, 920167782
    %v3730 = vsel %vm3722, %v3713, %v3729
    %v3731 = vsel %vm3721, %v3728, %v3730
    %v3732 = vsel %vm3720, %v3710, %v3713
    %v3733 = vsel %vm3723, %v3719, 1326507024
    %v3734 = vsel %vm3722, %v3716, %v3733
    %v3735 = vsel %vm3721, %v3732, %v3734
    %v3736 = vshll.u32 %v3696, 8
    %v3737 = vand.u32 %v3736, 65535
    %v3738 = vshrl.u32 %v3736, 16
    %v3739 = vand.u32 %v3735, 65535
    %v3740 = vshrl.u32 %v3735, 16
    %v3741 = vmul.u32 %v3737, %v3739
    %v3742 = vmul.u32 %v3737, %v3740
    %v3743 = vmul.u32 %v3738, %v3739
    %v3744 = vmul.u32 %v3738, %v3740
    %v3745 = vshll.u32 %v3742, 16
    %v3746 = vshrl.u32 %v3742, 16
    %v3747 = vshll.u32 %v3743, 16
    %v3748 = vshrl.u32 %v3743, 16
    %vm3749 = vc.u32 %v3741, %v3745
    %v3750 = vsel %vm3749, 1, 0
    %v3751 = vadd.s32 %v3741, %v3745
    %v3752 = vadd.s32 %v3744, %v3750
    %vm3753 = vc.u32 %v3751, %v3747
    %v3754 = vsel %vm3753, 1, 0
    %v3755 = vadd.s32 %v3751, %v3747
    %v3756 = vadd.s32 %v3752, %v3754
    %v3757 = vadd.s32 %v3756, %v3746
    %v3758 = vadd.s32 %v3757, %v3748
    %v3759 = vand.u32 %v3736, 65535
    %v3760 = vshrl.u32 %v3736, 16
    %v3761 = vand.u32 %v3731, 65535
    %v3762 = vshrl.u32 %v3731, 16
    %v3763 = vmul.u32 %v3759, %v3761
    %v3764 = vmul.u32 %v3759, %v3762
    %v3765 = vmul.u32 %v3760, %v3761
    %v3766 = vmul.u32 %v3760, %v3762
    %v3767 = vshll.u32 %v3764, 16
    %v3768 = vshrl.u32 %v3764, 16
    %v3769 = vshll.u32 %v3765, 16
    %v3770 = vshrl.u32 %v3765, 16
    %vm3771 = vc.u32 %v3763, %v3767
    %v3772 = vsel %vm3771, 1, 0
    %v3773 = vadd.s32 %v3763, %v3767
    %v3774 = vadd.s32 %v3766, %v3772
    %vm3775 = vc.u32 %v3773, %v3769
    %v3776 = vsel %vm3775, 1, 0
    %v3777 = vadd.s32 %v3773, %v3769
    %v3778 = vadd.s32 %v3774, %v3776
    %v3779 = vadd.s32 %v3778, %v3768
    %v3780 = vadd.s32 %v3779, %v3770
    %v3781 = vmul.u32 %v3736, %v3727
    %v3782 = vadd.s32 %v3758, %v3777
    %vm3783 = vc.u32 %v3758, %v3777
    %v3784 = vadd.s32 %v3780, 1
    %v3785 = vsel %vm3783, %v3784, %v3780
    %v3786 = vadd.s32 %v3781, %v3785
    %v3787 = vadd.s32 %v3786, 536870912
    %v3788 = vshrl.u32 %v3787, 30
    %v3789 = vshll.u32 %v3788, 30
    %v3790 = vsub.s32 %v3786, %v3789
    %vm3791 = vcmp.lt.s32.totalorder %v3790, 0
    %v3792 = vsub.s32 0, %v3790
    %v3793 = vsel %vm3791, %v3792, %v3790
    %v3794 = vclz %v3793
    %v3795 = vsub.s32 %v3794, 2
    %vm3796 = vcmp.gt.s32.totalorder 0, %v3795
    %v3797 = vsel %vm3796, 0, %v3795
    %v3798 = vsub.s32 32, %v3797
    %v3799 = vshll.u32 %v3790, %v3797
    %v3800 = vshrl.u32 %v3782, %v3798
    %v3801 = vor.u32 %v3799, %v3800
    %v3802 = vsub.s32 4294967266, %v3797
    %v3803 = vadd.s32 %v3802, 127
    %v3804 = vshll.u32 %v3803, 23
    %v3805 = vor.u32 4788187, %v3804
    %v3806 = vand.u32 2147483647, %v3805
    %v3808 = vcvt.s32.f32 %v3801
    %v3809 = vmul.f32 %v3808, %v3806
    %v3810 = vxor.u32 %v3809, 2147483648
    %v3811 = vsel %vm3690, %v3810, %v3809
    %v3812 = vsub.s32 4, %v3788
    %v3813 = vsel %vm3690, %v3812, %v3788
    %v3814 = vsel %vm3689, %v2910, %v3811
    %v3815 = vsel %vm3689, 0, %v3813
    %v3816 = vmul.f32 %v3814, %v3814
    %v3817 = vmul.f32 %v3816, -0.001358992
    %v3818 = vadd.f32 %v3817, 0.041655596
    %v3819 = vmul.f32 %v3816, %v3818
    %v3820 = vadd.f32 %v3819, -0.4999988
    %v3821 = vmul.f32 %v3816, %v3820
    %v3822 = vadd.f32 1.0, %v3821
    %v3823 = vmul.f32 %v3814, %v3814
    %v3824 = vmul.f32 %v3823, -0.00019511016
    %v3825 = vadd.f32 %v3824, 0.008332121
    %v3826 = vmul.f32 %v3823, %v3825
    %v3827 = vadd.f32 %v3826, -0.16666654
    %v3828 = vmul.f32 %v3823, %v3827
    %v3829 = vadd.f32 %v3828, 1.0
    %v3830 = vmul.f32 %v3829, %v3814
    %vm3831 = vweird.f32 %v2910
    %v3832 = vadd.s32 %v3815, 3
    %v3833 = vand.u32 %v3832, 3
    %vm3834 = vcmp.lt.s32.totalorder %v3833, 2
    %vm3835 = vcmp.eq.s32.totalorder %v3833, 0
    %v3836 = vxor.u32 %v3830, 2147483648
    %v3837 = vsel %vm3835, %v3822, %v3836
    %vm3838 = vcmp.eq.s32.totalorder %v3833, 2
    %v3839 = vxor.u32 %v3822, 2147483648
    %v3840 = vsel %vm3838, %v3839, %v3830
    %v3841 = vsel %vm3834, %v3837, %v3840
    %v3842 = vsel %vm3831, nan, %v3841
    %v3843 = vand.u32 2147483647, %v2911
    %vm3844 = vcmp.le.f32.partialorder %v3843, 0.7853982
    %vm3845 = vcmp.lt.s32.totalorder %v2911, 0
    %v3846 = vand.u32 %v2911, 2139095040
    %v3847 = vshrl.u32 %v3846, 23
    %v3848 = vsub.s32 %v3847, 127
    %v3849 = vand.u32 2147483647, %v2911
    %v3850 = vand.u32 %v3849, 8388607
    %v3851 = vor.u32 %v3850, 8388608
    %v3852 = vsub.s32 0, %v3851
    %v3853 = vadd.s32 %v3848, 1
    %vm3854 = vcmp.gt.s32.totalorder %v3853, 0
    %v3855 = vsel %vm3854, %v3853, 0
    %v3856 = vshrl.u32 %v3855, 5
    %v3857 = vand.u32 %v3855, 31
    %v3858 = vsub.s32 32, %v3857
    %v3859 = vshrl.u32 683565275, %v3858
    %v3860 = vshll.u32 683565275, %v3857
    %v3861 = vshrl.u32 2475754826, %v3858
    %v3862 = vor.u32 %v3860, %v3861
    %v3863 = vshll.u32 2475754826, %v3857
    %v3864 = vshrl.u32 2131351028, %v3858
    %v3865 = vor.u32 %v3863, %v3864
    %v3866 = vshll.u32 2131351028, %v3857
    %v3867 = vshrl.u32 2102212464, %v3858
    %v3868 = vor.u32 %v3866, %v3867
    %v3869 = vshll.u32 2102212464, %v3857
    %v3870 = vshrl.u32 920167782, %v3858
    %v3871 = vor.u32 %v3869, %v3870
    %v3872 = vshll.u32 920167782, %v3857
    %v3873 = vshrl.u32 1326507024, %v3858
    %v3874 = vor.u32 %v3872, %v3873
    %vm3875 = vcmp.lt.s32.totalorder %v3856, 1
    %vm3876 = vcmp.lt.s32.totalorder %v3856, 2
    %vm3877 = vcmp.lt.s32.totalorder %v3856, 3
    %vm3878 = vcmp.lt.s32.totalorder %v3856, 4
    %v3879 = vsel %vm3875, %v3859, %v3862
    %v3880 = vsel %vm3878, %v3868, 2102212464
    %v3881 = vsel %vm3877, %v3865, %v3880
    %v3882 = vsel %vm3876, %v3879, %v3881
    %v3883 = vsel %vm3875, %v3862, %v3865
    %v3884 = vsel %vm3878, %v3871, 920167782
    %v3885 = vsel %vm3877, %v3868, %v3884
    %v3886 = vsel %vm3876, %v3883, %v3885
    %v3887 = vsel %vm3875, %v3865, %v3868
    %v3888 = vsel %vm3878, %v3874, 1326507024
    %v3889 = vsel %vm3877, %v3871, %v3888
    %v3890 = vsel %vm3876, %v3887, %v3889
    %v3891 = vshll.u32 %v3851, 8
    %v3892 = vand.u32 %v3891, 65535
    %v3893 = vshrl.u32 %v3891, 16
    %v3894 = vand.u32 %v3890, 65535
    %v3895 = vshrl.u32 %v3890, 16
    %v3896 = vmul.u32 %v3892, %v3894
    %v3897 = vmul.u32 %v3892, %v3895
    %v3898 = vmul.u32 %v3893, %v3894
    %v3899 = vmul.u32 %v3893, %v3895
    %v3900 = vshll.u32 %v3897, 16
    %v3901 = vshrl.u32 %v3897, 16
    %v3902 = vshll.u32 %v3898, 16
    %v3903 = vshrl.u32 %v3898, 16
    %vm3904 = vc.u32 %v3896, %v3900
    %v3905 = vsel %vm3904, 1, 0
    %v3906 = vadd.s32 %v3896, %v3900
    %v3907 = vadd.s32 %v3899, %v3905
    %vm3908 = vc.u32 %v3906, %v3902
    %v3909 = vsel %vm3908, 1, 0
    %v3910 = vadd.s32 %v3906, %v3902
    %v3911 = vadd.s32 %v3907, %v3909
    %v3912 = vadd.s32 %v3911, %v3901
    %v3913 = vadd.s32 %v3912, %v3903
    %v3914 = vand.u32 %v3891, 65535
    %v3915 = vshrl.u32 %v3891, 16
    %v3916 = vand.u32 %v3886, 65535
    %v3917 = vshrl.u32 %v3886, 16
    %v3918 = vmul.u32 %v3914, %v3916
    %v3919 = vmul.u32 %v3914, %v3917
    %v3920 = vmul.u32 %v3915, %v3916
    %v3921 = vmul.u32 %v3915, %v3917
    %v3922 = vshll.u32 %v3919, 16
    %v3923 = vshrl.u32 %v3919, 16
    %v3924 = vshll.u32 %v3920, 16
    %v3925 = vshrl.u32 %v3920, 16
    %vm3926 = vc.u32 %v3918, %v3922
    %v3927 = vsel %vm3926, 1, 0
    %v3928 = vadd.s32 %v3918, %v3922
    %v3929 = vadd.s32 %v3921, %v3927
    %vm3930 = vc.u32 %v3928, %v3924
    %v3931 = vsel %vm3930, 1, 0
    %v3932 = vadd.s32 %v3928, %v3924
    %v3933 = vadd.s32 %v3929, %v3931
    %v3934 = vadd.s32 %v3933, %v3923
    %v3935 = vadd.s32 %v3934, %v3925
    %v3936 = vmul.u32 %v3891, %v3882
    %v3937 = vadd.s32 %v3913, %v3932
    %vm3938 = vc.u32 %v3913, %v3932
    %v3939 = vadd.s32 %v3935, 1
    %v3940 = vsel %vm3938, %v3939, %v3935
    %v3941 = vadd.s32 %v3936, %v3940
    %v3942 = vadd.s32 %v3941, 536870912
    %v3943 = vshrl.u32 %v3942, 30
    %v3944 = vshll.u32 %v3943, 30
    %v3945 = vsub.s32 %v3941, %v3944
    %vm3946 = vcmp.lt.s32.totalorder %v3945, 0
    %v3947 = vsub.s32 0, %v3945
    %v3948 = vsel %vm3946, %v3947, %v3945
    %v3949 = vclz %v3948
    %v3950 = vsub.s32 %v3949, 2
    %vm3951 = vcmp.gt.s32.totalorder 0, %v3950
    %v3952 = vsel %vm3951, 0, %v3950
    %v3953 = vsub.s32 32, %v3952
    %v3954 = vshll.u32 %v3945, %v3952
    %v3955 = vshrl.u32 %v3937, %v3953
    %v3956 = vor.u32 %v3954, %v3955
    %v3957 = vsub.s32 4294967266, %v3952
    %v3958 = vadd.s32 %v3957, 127
    %v3959 = vshll.u32 %v3958, 23
    %v3960 = vor.u32 4788187, %v3959
    %v3961 = vand.u32 2147483647, %v3960
    %v3963 = vcvt.s32.f32 %v3956
    %v3964 = vmul.f32 %v3963, %v3961
    %v3965 = vxor.u32 %v3964, 2147483648
    %v3966 = vsel %vm3845, %v3965, %v3964
    %v3967 = vsub.s32 4, %v3943
    %v3968 = vsel %vm3845, %v3967, %v3943
    %v3969 = vsel %vm3844, %v2911, %v3966
    %v3970 = vsel %vm3844, 0, %v3968
    %v3971 = vmul.f32 %v3969, %v3969
    %v3972 = vmul.f32 %v3971, -0.001358992
    %v3973 = vadd.f32 %v3972, 0.041655596
    %v3974 = vmul.f32 %v3971, %v3973
    %v3975 = vadd.f32 %v3974, -0.4999988
    %v3976 = vmul.f32 %v3971, %v3975
    %v3977 = vadd.f32 1.0, %v3976
    %v3978 = vmul.f32 %v3969, %v3969
    %v3979 = vmul.f32 %v3978, -0.00019511016
    %v3980 = vadd.f32 %v3979, 0.008332121
    %v3981 = vmul.f32 %v3978, %v3980
    %v3982 = vadd.f32 %v3981, -0.16666654
    %v3983 = vmul.f32 %v3978, %v3982
    %v3984 = vadd.f32 %v3983, 1.0
    %v3985 = vmul.f32 %v3984, %v3969
    %vm3986 = vweird.f32 %v2911
    %v3987 = vadd.s32 %v3970, 3
    %v3988 = vand.u32 %v3987, 3
    %vm3989 = vcmp.lt.s32.totalorder %v3988, 2
    %vm3990 = vcmp.eq.s32.totalorder %v3988, 0
    %v3991 = vxor.u32 %v3985, 2147483648
    %v3992 = vsel %vm3990, %v3977, %v3991
    %vm3993 = vcmp.eq.s32.totalorder %v3988, 2
    %v3994 = vxor.u32 %v3977, 2147483648
    %v3995 = vsel %vm3993, %v3994, %v3985
    %v3996 = vsel %vm3989, %v3992, %v3995
    %v3997 = vsel %vm3986, nan, %v3996
    %v3998 = vand.u32 2147483647, %v2912
    %vm3999 = vcmp.le.f32.partialorder %v3998, 0.7853982
    %vm4000 = vcmp.lt.s32.totalorder %v2912, 0
    %v4001 = vand.u32 %v2912, 2139095040
    %v4002 = vshrl.u32 %v4001, 23
    %v4003 = vsub.s32 %v4002, 127
    %v4004 = vand.u32 2147483647, %v2912
    %v4005 = vand.u32 %v4004, 8388607
    %v4006 = vor.u32 %v4005, 8388608
    %v4007 = vsub.s32 0, %v4006
    %v4008 = vadd.s32 %v4003, 1
    %vm4009 = vcmp.gt.s32.totalorder %v4008, 0
    %v4010 = vsel %vm4009, %v4008, 0
    %v4011 = vshrl.u32 %v4010, 5
    %v4012 = vand.u32 %v4010, 31
    %v4013 = vsub.s32 32, %v4012
    %v4014 = vshrl.u32 683565275, %v4013
    %v4015 = vshll.u32 683565275, %v4012
    %v4016 = vshrl.u32 2475754826, %v4013
    %v4017 = vor.u32 %v4015, %v4016
    %v4018 = vshll.u32 2475754826, %v4012
    %v4019 = vshrl.u32 2131351028, %v4013
    %v4020 = vor.u32 %v4018, %v4019
    %v4021 = vshll.u32 2131351028, %v4012
    %v4022 = vshrl.u32 2102212464, %v4013
    %v4023 = vor.u32 %v4021, %v4022
    %v4024 = vshll.u32 2102212464, %v4012
    %v4025 = vshrl.u32 920167782, %v4013
    %v4026 = vor.u32 %v4024, %v4025
    %v4027 = vshll.u32 920167782, %v4012
    %v4028 = vshrl.u32 1326507024, %v4013
    %v4029 = vor.u32 %v4027, %v4028
    %vm4030 = vcmp.lt.s32.totalorder %v4011, 1
    %vm4031 = vcmp.lt.s32.totalorder %v4011, 2
    %vm4032 = vcmp.lt.s32.totalorder %v4011, 3
    %vm4033 = vcmp.lt.s32.totalorder %v4011, 4
    %v4034 = vsel %vm4030, %v4014, %v4017
    %v4035 = vsel %vm4033, %v4023, 2102212464
    %v4036 = vsel %vm4032, %v4020, %v4035
    %v4037 = vsel %vm4031, %v4034, %v4036
    %v4038 = vsel %vm4030, %v4017, %v4020
    %v4039 = vsel %vm4033, %v4026, 920167782
    %v4040 = vsel %vm4032, %v4023, %v4039
    %v4041 = vsel %vm4031, %v4038, %v4040
    %v4042 = vsel %vm4030, %v4020, %v4023
    %v4043 = vsel %vm4033, %v4029, 1326507024
    %v4044 = vsel %vm4032, %v4026, %v4043
    %v4045 = vsel %vm4031, %v4042, %v4044
    %v4046 = vshll.u32 %v4006, 8
    %v4047 = vand.u32 %v4046, 65535
    %v4048 = vshrl.u32 %v4046, 16
    %v4049 = vand.u32 %v4045, 65535
    %v4050 = vshrl.u32 %v4045, 16
    %v4051 = vmul.u32 %v4047, %v4049
    %v4052 = vmul.u32 %v4047, %v4050
    %v4053 = vmul.u32 %v4048, %v4049
    %v4054 = vmul.u32 %v4048, %v4050
    %v4055 = vshll.u32 %v4052, 16
    %v4056 = vshrl.u32 %v4052, 16
    %v4057 = vshll.u32 %v4053, 16
    %v4058 = vshrl.u32 %v4053, 16
    %vm4059 = vc.u32 %v4051, %v4055
    %v4060 = vsel %vm4059, 1, 0
    %v4061 = vadd.s32 %v4051, %v4055
    %v4062 = vadd.s32 %v4054, %v4060
    %vm4063 = vc.u32 %v4061, %v4057
    %v4064 = vsel %vm4063, 1, 0
    %v4065 = vadd.s32 %v4061, %v4057
    %v4066 = vadd.s32 %v4062, %v4064
    %v4067 = vadd.s32 %v4066, %v4056
    %v4068 = vadd.s32 %v4067, %v4058
    %v4069 = vand.u32 %v4046, 65535
    %v4070 = vshrl.u32 %v4046, 16
    %v4071 = vand.u32 %v4041, 65535
    %v4072 = vshrl.u32 %v4041, 16
    %v4073 = vmul.u32 %v4069, %v4071
    %v4074 = vmul.u32 %v4069, %v4072
    %v4075 = vmul.u32 %v4070, %v4071
    %v4076 = vmul.u32 %v4070, %v4072
    %v4077 = vshll.u32 %v4074, 16
    %v4078 = vshrl.u32 %v4074, 16
    %v4079 = vshll.u32 %v4075, 16
    %v4080 = vshrl.u32 %v4075, 16
    %vm4081 = vc.u32 %v4073, %v4077
    %v4082 = vsel %vm4081, 1, 0
    %v4083 = vadd.s32 %v4073, %v4077
    %v4084 = vadd.s32 %v4076, %v4082
    %vm4085 = vc.u32 %v4083, %v4079
    %v4086 = vsel %vm4085, 1, 0
    %v4087 = vadd.s32 %v4083, %v4079
    %v4088 = vadd.s32 %v4084, %v4086
    %v4089 = vadd.s32 %v4088, %v4078
    %v4090 = vadd.s32 %v4089, %v4080
    %v4091 = vmul.u32 %v4046, %v4037
    %v4092 = vadd.s32 %v4068, %v4087
    %vm4093 = vc.u32 %v4068, %v4087
    %v4094 = vadd.s32 %v4090, 1
    %v4095 = vsel %vm4093, %v4094, %v4090
    %v4096 = vadd.s32 %v4091, %v4095
    %v4097 = vadd.s32 %v4096, 536870912
    %v4098 = vshrl.u32 %v4097, 30
    %v4099 = vshll.u32 %v4098, 30
    %v4100 = vsub.s32 %v4096, %v4099
    %vm4101 = vcmp.lt.s32.totalorder %v4100, 0
    %v4102 = vsub.s32 0, %v4100
    %v4103 = vsel %vm4101, %v4102, %v4100
    %v4104 = vclz %v4103
    %v4105 = vsub.s32 %v4104, 2
    %vm4106 = vcmp.gt.s32.totalorder 0, %v4105
    %v4107 = vsel %vm4106, 0, %v4105
    %v4108 = vsub.s32 32, %v4107
    %v4109 = vshll.u32 %v4100, %v4107
    %v4110 = vshrl.u32 %v4092, %v4108
    %v4111 = vor.u32 %v4109, %v4110
    %v4112 = vsub.s32 4294967266, %v4107
    %v4113 = vadd.s32 %v4112, 127
    %v4114 = vshll.u32 %v4113, 23
    %v4115 = vor.u32 4788187, %v4114
    %v4116 = vand.u32 2147483647, %v4115
    %v4118 = vcvt.s32.f32 %v4111
    %v4119 = vmul.f32 %v4118, %v4116
    %v4120 = vxor.u32 %v4119, 2147483648
    %v4121 = vsel %vm4000, %v4120, %v4119
    %v4122 = vsub.s32 4, %v4098
    %v4123 = vsel %vm4000, %v4122, %v4098
    %v4124 = vsel %vm3999, %v2912, %v4121
    %v4125 = vsel %vm3999, 0, %v4123
    %v4126 = vmul.f32 %v4124, %v4124
    %v4127 = vmul.f32 %v4126, -0.001358992
    %v4128 = vadd.f32 %v4127, 0.041655596
    %v4129 = vmul.f32 %v4126, %v4128
    %v4130 = vadd.f32 %v4129, -0.4999988
    %v4131 = vmul.f32 %v4126, %v4130
    %v4132 = vadd.f32 1.0, %v4131
    %v4133 = vmul.f32 %v4124, %v4124
    %v4134 = vmul.f32 %v4133, -0.00019511016
    %v4135 = vadd.f32 %v4134, 0.008332121
    %v4136 = vmul.f32 %v4133, %v4135
    %v4137 = vadd.f32 %v4136, -0.16666654
    %v4138 = vmul.f32 %v4133, %v4137
    %v4139 = vadd.f32 %v4138, 1.0
    %v4140 = vmul.f32 %v4139, %v4124
    %vm4141 = vweird.f32 %v2912
    %v4142 = vadd.s32 %v4125, 3
    %v4143 = vand.u32 %v4142, 3
    %vm4144 = vcmp.lt.s32.totalorder %v4143, 2
    %vm4145 = vcmp.eq.s32.totalorder %v4143, 0
    %v4146 = vxor.u32 %v4140, 2147483648
    %v4147 = vsel %vm4145, %v4132, %v4146
    %vm4148 = vcmp.eq.s32.totalorder %v4143, 2
    %v4149 = vxor.u32 %v4132, 2147483648
    %v4150 = vsel %vm4148, %v4149, %v4140
    %v4151 = vsel %vm4144, %v4147, %v4150
    %v4152 = vsel %vm4141, nan, %v4151
    %v4153 = vld [vmem:[%s8] sm:$0xff]
    %v4155 = vsel %vm1446, %v4153, 0
    %4157 = vmatpush.msra.mxu0 0.0
    %4158 = vmatpush.msra.mxu0 0.0
    %4159 = vmatpush.msra.mxu0 0.0
    %4160 = vmatpush.msra.mxu0 0.0
    %4161 = vmatpush.msra.mxu0 0.0
    %4162 = vmatpush.msra.mxu0 0.0
    %4163 = vmatpush.msra.mxu0 0.0
    %4164 = vmatpush.msra.mxu0 0.0
    %4165 = vmatpush.msra.mxu0 0.0
    %4166 = vmatpush.msra.mxu0 0.0
    %4167 = vmatpush.msra.mxu0 0.0
    %4168 = vmatpush.msra.mxu0 0.0
    %4169 = vmatpush.msra.mxu0 0.0
    %4170 = vmatpush.msra.mxu0 0.0
    %4171 = vmatpush.msra.mxu0 %v3687
    %4172 = vmatpush.msra.mxu0 %v3067
    %4173 = vmatmul.f32.gmra.mxu0 %v4155
    %v4174 = vpop.f32.mrf.mxu0
    %v4175 = vadd.f32 0.0, %v4174
    %4176 = vdwg.mxu0
    %4177 = vmatpush.msra.mxu0 0.0
    %4178 = vmatpush.msra.mxu0 0.0
    %4179 = vmatpush.msra.mxu0 0.0
    %4180 = vmatpush.msra.mxu0 0.0
    %4181 = vmatpush.msra.mxu0 0.0
    %4182 = vmatpush.msra.mxu0 0.0
    %4183 = vmatpush.msra.mxu0 0.0
    %4184 = vmatpush.msra.mxu0 0.0
    %4185 = vmatpush.msra.mxu0 0.0
    %4186 = vmatpush.msra.mxu0 0.0
    %4187 = vmatpush.msra.mxu0 0.0
    %4188 = vmatpush.msra.mxu0 0.0
    %4189 = vmatpush.msra.mxu0 0.0
    %4190 = vmatpush.msra.mxu0 0.0
    %4191 = vmatpush.msra.mxu0 %v3842
    %4192 = vmatpush.msra.mxu0 %v3222
    %4193 = vmatmul.f32.gmra.mxu0 %v4155
    %v4194 = vpop.f32.mrf.mxu0
    %v4195 = vadd.f32 0.0, %v4194
    %4196 = vdwg.mxu0
    %4197 = vmatpush.msra.mxu0 0.0
    %4198 = vmatpush.msra.mxu0 0.0
    %4199 = vmatpush.msra.mxu0 0.0
    %4200 = vmatpush.msra.mxu0 0.0
    %4201 = vmatpush.msra.mxu0 0.0
    %4202 = vmatpush.msra.mxu0 0.0
    %4203 = vmatpush.msra.mxu0 0.0
    %4204 = vmatpush.msra.mxu0 0.0
    %4205 = vmatpush.msra.mxu0 0.0
    %4206 = vmatpush.msra.mxu0 0.0
    %4207 = vmatpush.msra.mxu0 0.0
    %4208 = vmatpush.msra.mxu0 0.0
    %4209 = vmatpush.msra.mxu0 0.0
    %4210 = vmatpush.msra.mxu0 0.0
    %4211 = vmatpush.msra.mxu0 %v3997
    %4212 = vmatpush.msra.mxu0 %v3377
    %4213 = vmatmul.f32.gmra.mxu0 %v4155
    %v4214 = vpop.f32.mrf.mxu0
    %v4215 = vadd.f32 0.0, %v4214
    %4216 = vdwg.mxu0
    %4217 = vmatpush.msra.mxu0 0.0
    %4218 = vmatpush.msra.mxu0 0.0
    %4219 = vmatpush.msra.mxu0 0.0
    %4220 = vmatpush.msra.mxu0 0.0
    %4221 = vmatpush.msra.mxu0 0.0
    %4222 = vmatpush.msra.mxu0 0.0
    %4223 = vmatpush.msra.mxu0 0.0
    %4224 = vmatpush.msra.mxu0 0.0
    %4225 = vmatpush.msra.mxu0 0.0
    %4226 = vmatpush.msra.mxu0 0.0
    %4227 = vmatpush.msra.mxu0 0.0
    %4228 = vmatpush.msra.mxu0 0.0
    %4229 = vmatpush.msra.mxu0 0.0
    %4230 = vmatpush.msra.mxu0 0.0
    %4231 = vmatpush.msra.mxu0 %v4152
    %4232 = vmatpush.msra.mxu0 %v3532
    %4233 = vmatmul.f32.gmra.mxu0 %v4155
    %v4234 = vpop.f32.mrf.mxu0
    %v4235 = vadd.f32 0.0, %v4234
    %4236 = vdwg.mxu0
    %v4237 = vld [vmem:[%s10] sm:$0xff]
    %v4238 = vsub.f32 0.0, %v4237
    %v4239 = vld [vmem:[%s1] sm:$0xf]
    %4241 = vset.pattern.permute.xlu0 0
    %4242 = vperm.xlu0 %4241, %v4238
    %v4243 = vpop.permute.xlu0 %4242
    %v4246 = vperm.slane %v4239, 0
    %v4247 = vperm.slane %v4239, 1
    %v4248 = vperm.slane %v4239, 2
    %v4249 = vperm.slane %v4239, 3
    %v4254 = vmul.f32 %v4243, %v4246
    %v4255 = vmul.f32 %v4243, %v4247
    %v4256 = vmul.f32 %v4243, %v4248
    %v4257 = vmul.f32 %v4243, %v4249
    %v4258 = vmul.f32 %v4254, 1.442695
    %v4259 = vpow.pop %v4258
    %v4260 = vmul.f32 %v4255, 1.442695
    %v4261 = vpow.pop %v4260
    %v4262 = vmul.f32 %v4256, 1.442695
    %v4263 = vpow.pop %v4262
    %v4264 = vmul.f32 %v4257, 1.442695
    %v4265 = vpow.pop %v4264
    %v4266 = vadd.f32 %v4259, 0.0
    %v4267 = vadd.f32 %v4261, 0.0
    %v4268 = vadd.f32 %v4263, 0.0
    %v4269 = vadd.f32 %v4265, 0.0
    %v4270 = vmul.f32 %v4175, %v4266
    %v4271 = vmul.f32 %v4195, %v4267
    %v4272 = vmul.f32 %v4215, %v4268
    %v4273 = vmul.f32 %v4235, %v4269
    %4274 = vst [vmem:[#allocation2] sm:$0xff] %v4270
    %4275 = vst [vmem:[#allocation2 + $0x8] sm:$0xff] %v4271
    %4276 = vst [vmem:[#allocation2 + $0x10] sm:$0xff] %v4272
    %4277 = vst [vmem:[#allocation2 + $0x18] sm:$0xff] %v4273
    // Predicated region
    $region46: #{tpu_custom_call.1} parent=1 // pred_check
      _
    $region47: #{tpu_custom_call.1} parent=1 // pred_check_branch
      %4279 = sbr.rel (0) target = $region49
    $region48: #{tpu_custom_call.1} parent=1 // pred_region
      %4281 = vsyncadd [#allocation3], 0
      %s4283 = sshll.u32 [#allocation2], 4
      %s4284 = int_to_ptr.vmem [resolvable:$true] %s4283
      %s4285 = sshll.u32 %s11, 4
      %s4286 = int_to_ptr.hbm [resolvable:$true] %s4285
      %4288 = dma.vmem_to_hbm [thread:$0]  %s4284, 512, %s4286, [#allocation3]
    $region49: #{tpu_custom_call.1} parent=1 // pred_fallthru
      _
    // Predicated region
    $region50: #{tpu_custom_call.1} parent=1 // pred_check
      _
    $region51: #{tpu_custom_call.1} parent=1 // pred_check_branch
      %4290 = sbr.rel (0) target = $region53
    $region52: #{tpu_custom_call.1} parent=1 // pred_region
      %4292 = dma.done [#allocation3], 512
    $region53: #{tpu_custom_call.1} parent=1 // pred_fallthru
      _
    %4293 = vsyncpa [#allocation3], 1

</llo_original>
